<compile_context>
chip_gen: v7x
topology: tpu7x:2x2x1
jax: 0.10.0
libtpu: 0.0.40
codegen_flags: <defaults>
</compile_context>

<pallas_src>
import functools

import jax
import jax.numpy as jnp
from jax.experimental import pallas as pl
from jax.experimental.pallas import tpu as pltpu

EPS = 1e-5
H = 1280   # hidden width
Z = 20     # code width


def _dot_bf16(a, w):
    """[M,K] @ [K,N]; bf16 operands, f32 accumulation on the MXU."""
    return jnp.dot(a.astype(jnp.bfloat16), w, preferred_element_type=jnp.float32)


def _dot_bf16_t(a, w_t):
    """[M,K] x [N,K] transposed-RHS contraction (no lane-padded weight copy)."""
    return jax.lax.dot_general(
        a.astype(jnp.bfloat16), w_t,
        dimension_numbers=(((1,), (1,)), ((), ())),
        preferred_element_type=jnp.float32)


def _bn(x, gamma, beta, gb, b):
    """Training-mode BatchNorm1d applied independently to each micro-batch.

    x holds `gb` independent micro-batches of `b` rows stacked along M.
    """
    f = x.shape[-1]
    xg = x.reshape(gb, b, f)
    mean = jnp.mean(xg, axis=1, keepdims=True)
    xc = xg - mean
    var = jnp.mean(xc * xc, axis=1, keepdims=True)     # biased variance
    inv = jax.lax.rsqrt(var + EPS)
    return (xc * (gamma * inv) + beta).reshape(gb * b, f)


def ae_kernel(x_ref, dp_ref, zp_ref, hp_ref,
              w1_ref, w2t_ref, w3_ref, w4_ref,
              recon_ref, code_ref):
    gb, b, d = x_ref.shape
    m = gb * b

    dp = dp_ref[...]            # [3, D] rows: g_in, be_in, b4
    zp = zp_ref[...]            # [3, Z] rows: b2, g2, be2
    hp = hp_ref[...]            # [6, H] rows: b1, g1, be1, b3, g3, be3

    x = x_ref[...].reshape(m, d)

    # batch_norm_in
    a = _bn(x, dp[0:1], dp[1:2], gb, b)

    # encoder_hidden_layer -> relu -> batch_norm1
    a = jnp.maximum(_dot_bf16(a, w1_ref[...]) + hp[0:1], 0.0)
    a = _bn(a, hp[1:2], hp[2:3], gb, b)

    # encoder_output_layer -> relu -> batch_norm2  (the "code")
    c = jnp.maximum(_dot_bf16_t(a, w2t_ref[...]) + zp[0:1], 0.0)
    c = _bn(c, zp[1:2], zp[2:3], gb, b)
    code_ref[...] = c.reshape(gb, b, -1)

    # decoder_hidden_layer -> relu -> batch_norm3
    a = jnp.maximum(_dot_bf16(c, w3_ref[...]) + hp[3:4], 0.0)
    a = _bn(a, hp[4:5], hp[5:6], gb, b)

    # decoder_output_layer
    recon_ref[...] = (_dot_bf16(a, w4_ref[...]) + dp[2:3]).reshape(gb, b, d)


def _const_spec(shape):
    """Whole array resident in VMEM; constant block index => DMA'd only once."""
    return pl.BlockSpec(shape, lambda i: (0,) * len(shape))


@functools.partial(jax.jit, static_argnames=("microbatches_per_step",))
def ae_forward_batched(x, params, *, microbatches_per_step=1):
    """Run G independent AE forward passes in one pallas_call.

    x: [G, B, D].  Each [B, D] micro-batch is one module forward (BatchNorm
    stats are over its B rows).  Weights stream into VMEM once (concurrently,
    in the pipeline prologue) and stay resident across all grid steps.
    """
    G, B, D = x.shape
    dp, zp, hp, w1, w2t, w3, w4 = params
    GB = microbatches_per_step
    assert G % GB == 0, "microbatches_per_step must divide leading dim of x"
    steps = G // GB

    flops = 2 * G * B * (D * H + H * Z + Z * H + H * D)
    weight_bytes = 2 * (D * H + Z * H + Z * H + H * D)            # bf16, DMA'd once
    param_bytes = 4 * (3 * D + 3 * Z + 6 * H)
    io_bytes = 4 * (2 * G * B * D + G * B * Z)
    transcendentals = G * (D + 2 * H + Z)                         # rsqrt per BN feature

    return pl.pallas_call(
        ae_kernel,
        out_shape=(
            jax.ShapeDtypeStruct((G, B, D), jnp.float32),
            jax.ShapeDtypeStruct((G, B, Z), jnp.float32),
        ),
        grid=(steps,),
        in_specs=[
            pl.BlockSpec((GB, B, D), lambda i: (i, 0, 0)),   # activations stream per step
            _const_spec(dp.shape),                           # packed small params
            _const_spec(zp.shape),
            _const_spec(hp.shape),
            _const_spec(w1.shape),                           # weights: resident
            _const_spec(w2t.shape),
            _const_spec(w3.shape),
            _const_spec(w4.shape),
        ],
        out_specs=(
            pl.BlockSpec((GB, B, D), lambda i: (i, 0, 0)),
            pl.BlockSpec((GB, B, Z), lambda i: (i, 0, 0)),
        ),
        compiler_params=pltpu.CompilerParams(
            dimension_semantics=("parallel",),   # shard steps over both TCs on v7x
            vmem_limit_bytes=32 << 20,           # footprint is only a few MB
        ),
        cost_estimate=pl.CostEstimate(
            flops=int(flops),
            transcendentals=int(transcendentals),
            bytes_accessed=int(weight_bytes + param_bytes + io_bytes),
        ),
    )(x, dp, zp, hp, w1, w2t, w3, w4)


def ae_forward(x, params):
    """Single module forward, matching the PyTorch AE: x [B, D] -> (recon, code)."""
    recon, code = ae_forward_batched(x[None], params, microbatches_per_step=1)
    return recon[0], code[0]


def init_params(key, input_shape):
    """Deterministic init mimicking PyTorch defaults.

    Linear: weight/bias ~ U(-1/sqrt(fan_in), 1/sqrt(fan_in)); weights bf16.
    w1/w3/w4 stored [in, out]; w2 stored transposed [out, in] = [20, 1280] to
    avoid 20->128 lane padding.  BatchNorm1d: gamma=1, beta=0 (f32).
    Small per-feature params packed into slabs:
      dp = [g_in; be_in; b4]            -> (3, input_shape)
      zp = [b2; g2; be2]                -> (3, 20)
      hp = [b1; g1; be1; b3; g3; be3]   -> (6, 1280)
    """
    keys = jax.random.split(key, 8)

    def linear(kw, kb, fan_in, fan_out, transposed=False):
        bound = 1.0 / jnp.sqrt(jnp.float32(fan_in))
        shape = (fan_out, fan_in) if transposed else (fan_in, fan_out)
        w = jax.random.uniform(kw, shape, jnp.float32, -bound, bound)
        b = jax.random.uniform(kb, (1, fan_out), jnp.float32, -bound, bound)
        return w.astype(jnp.bfloat16), b

    def bn(dim):
        return jnp.ones((1, dim), jnp.float32), jnp.zeros((1, dim), jnp.float32)

    g_in, be_in = bn(input_shape)
    w1, b1 = linear(keys[0], keys[1], input_shape, H)
    g1, be1 = bn(H)
    w2t, b2 = linear(keys[2], keys[3], H, Z, transposed=True)   # [20, 1280]
    g2, be2 = bn(Z)
    w3, b3 = linear(keys[4], keys[5], Z, H)
    g3, be3 = bn(H)
    w4, b4 = linear(keys[6], keys[7], H, input_shape)

    dp = jnp.concatenate([g_in, be_in, b4], axis=0)           # (3, D)
    zp = jnp.concatenate([b2, g2, be2], axis=0)               # (3, Z)
    hp = jnp.concatenate([b1, g1, be1, b3, g3, be3], axis=0)  # (6, H)
    return (dp, zp, hp, w1, w2t, w3, w4)


def ae_reference_batched(x, params):
    """Pure-JAX reference: same bf16-weight math, BN per micro-batch."""
    dp, zp, hp, w1, w2t, w3, w4 = params

    def bn(v, g, be):
        mean = jnp.mean(v, axis=0, keepdims=True)
        vc = v - mean
        var = jnp.mean(vc * vc, axis=0, keepdims=True)
        return vc * (g * jax.lax.rsqrt(var + EPS)) + be

    def one(xb):
        a = bn(xb, dp[0:1], dp[1:2])
        a = jnp.maximum(_dot_bf16(a, w1) + hp[0:1], 0.0)
        a = bn(a, hp[1:2], hp[2:3])
        c = jnp.maximum(_dot_bf16_t(a, w2t) + zp[0:1], 0.0)
        c = bn(c, zp[1:2], zp[2:3])
        a = jnp.maximum(_dot_bf16(c, w3) + hp[3:4], 0.0)
        a = bn(a, hp[4:5], hp[5:6])
        return _dot_bf16(a, w4) + dp[2:3], c

    return jax.vmap(one)(x)


if __name__ == "__main__":
    INPUT_SHAPE = 256   # kwargs['input_shape']
    B = 8               # rows per forward pass (BatchNorm batch)
    G = 4               # independent forward passes in one pallas_call
    GB = 2              # micro-batches stacked per grid step (MXU M = GB*B)

    key = jax.random.PRNGKey(0)
    kx, kp = jax.random.split(key)
    params = init_params(kp, INPUT_SHAPE)

    # Batched path: weights DMA'd once, resident across grid steps.
    xb = jax.random.normal(kx, (G, B, INPUT_SHAPE), jnp.float32)
    recon_b, code_b = ae_forward_batched(xb, params, microbatches_per_step=GB)
    recon_b, code_b = jax.block_until_ready((recon_b, code_b))

    recon_ref, code_ref = ae_reference_batched(xb, params)
    assert recon_b.shape == (G, B, INPUT_SHAPE) and code_b.shape == (G, B, Z)
    assert jnp.allclose(recon_b, recon_ref, atol=5e-3, rtol=5e-3)
    assert jnp.allclose(code_b, code_ref, atol=5e-3, rtol=5e-3)

    # Single-call path matching the original module forward(features[B, D]).
    x1 = xb[0]
    recon1, code1 = ae_forward(x1, params)
    recon1, code1 = jax.block_until_ready((recon1, code1))
    assert recon1.shape == (B, INPUT_SHAPE) and code1.shape == (B, Z)
    assert jnp.allclose(recon1, recon_ref[0], atol=5e-3, rtol=5e-3)
    assert jnp.allclose(code1, code_ref[0], atol=5e-3, rtol=5e-3)

    print("KERNEL_OK")
</pallas_src>

<mosaic_0001>
module attributes {stable_mosaic.version = 11 : i64} {
  func.func @ae_kernel(%arg0: i32, %arg1: memref<2x8x256xf32, #tpu.memory_space<vmem>>, %arg2: memref<3x256xf32, #tpu.memory_space<vmem>>, %arg3: memref<3x20xf32, #tpu.memory_space<vmem>>, %arg4: memref<6x1280xf32, #tpu.memory_space<vmem>>, %arg5: memref<256x1280xbf16, #tpu.memory_space<vmem>>, %arg6: memref<20x1280xbf16, #tpu.memory_space<vmem>>, %arg7: memref<20x1280xbf16, #tpu.memory_space<vmem>>, %arg8: memref<1280x256xbf16, #tpu.memory_space<vmem>>, %arg9: memref<2x8x256xf32, #tpu.memory_space<vmem>>, %arg10: memref<2x8x20xf32, #tpu.memory_space<vmem>>) attributes {dimension_semantics = [#tpu.dimension_semantics<parallel>], iteration_bounds = array<i64: 2>, scalar_prefetch = 0 : i64, scratch_operands = 0 : i64, tpu.core_type = #tpu.core_type<tc>, window_params = [{transform_indices = @transform_0, window_bounds = array<i64: 2, 8, 256>}, {pipeline_mode = #tpu.pipeline_mode<synchronous>, transform_indices = @transform_1, window_bounds = array<i64: 3, 256>}, {pipeline_mode = #tpu.pipeline_mode<synchronous>, transform_indices = @transform_2, window_bounds = array<i64: 3, 20>}, {pipeline_mode = #tpu.pipeline_mode<synchronous>, transform_indices = @transform_3, window_bounds = array<i64: 6, 1280>}, {pipeline_mode = #tpu.pipeline_mode<synchronous>, transform_indices = @transform_4, window_bounds = array<i64: 256, 1280>}, {pipeline_mode = #tpu.pipeline_mode<synchronous>, transform_indices = @transform_5, window_bounds = array<i64: 20, 1280>}, {pipeline_mode = #tpu.pipeline_mode<synchronous>, transform_indices = @transform_6, window_bounds = array<i64: 20, 1280>}, {pipeline_mode = #tpu.pipeline_mode<synchronous>, transform_indices = @transform_7, window_bounds = array<i64: 1280, 256>}, {transform_indices = @transform_8, window_bounds = array<i64: 2, 8, 256>}, {transform_indices = @transform_9, window_bounds = array<i64: 2, 8, 20>}]} {
    %c0 = arith.constant 0 : index
    %c0_0 = arith.constant 0 : index
    %0 = vector.load %arg2[%c0, %c0_0] : memref<3x256xf32, #tpu.memory_space<vmem>>, vector<3x256xf32>
    %c0_1 = arith.constant 0 : index
    %c0_2 = arith.constant 0 : index
    %1 = vector.load %arg3[%c0_1, %c0_2] : memref<3x20xf32, #tpu.memory_space<vmem>>, vector<3x20xf32>
    %c0_3 = arith.constant 0 : index
    %c0_4 = arith.constant 0 : index
    %2 = vector.load %arg4[%c0_3, %c0_4] : memref<6x1280xf32, #tpu.memory_space<vmem>>, vector<6x1280xf32>
    %c0_5 = arith.constant 0 : index
    %c0_6 = arith.constant 0 : index
    %c0_7 = arith.constant 0 : index
    %3 = vector.load %arg1[%c0_5, %c0_6, %c0_7] : memref<2x8x256xf32, #tpu.memory_space<vmem>>, vector<2x8x256xf32>
    %4 = vector.shape_cast %3 : vector<2x8x256xf32> to vector<16x256xf32>
    %5 = vector.extract_strided_slice %0 {offsets = [0, 0], sizes = [1, 256], strides = [1, 1]} : vector<3x256xf32> to vector<1x256xf32>
    %6 = vector.extract_strided_slice %0 {offsets = [1, 0], sizes = [1, 256], strides = [1, 1]} : vector<3x256xf32> to vector<1x256xf32>
    %7 = vector.shape_cast %4 : vector<16x256xf32> to vector<2x8x256xf32>
    %cst = arith.constant dense<0.000000e+00> : vector<2x256xf32>
    %8 = vector.multi_reduction <add>, %7, %cst [1] : vector<2x8x256xf32> to vector<2x256xf32>
    %9 = vector.shape_cast %8 : vector<2x256xf32> to vector<2x1x256xf32>
    %cst_8 = arith.constant 8.000000e+00 : f32
    %10 = vector.broadcast %cst_8 : f32 to vector<2x1x256xf32>
    %11 = arith.divf %9, %10 : vector<2x1x256xf32>
    %12 = vector.broadcast %11 : vector<2x1x256xf32> to vector<2x8x256xf32>
    %13 = arith.subf %7, %12 : vector<2x8x256xf32>
    %14 = arith.mulf %13, %13 : vector<2x8x256xf32>
    %cst_9 = arith.constant dense<0.000000e+00> : vector<2x256xf32>
    %15 = vector.multi_reduction <add>, %14, %cst_9 [1] : vector<2x8x256xf32> to vector<2x256xf32>
    %16 = vector.shape_cast %15 : vector<2x256xf32> to vector<2x1x256xf32>
    %cst_10 = arith.constant 8.000000e+00 : f32
    %17 = vector.broadcast %cst_10 : f32 to vector<2x1x256xf32>
    %18 = arith.divf %16, %17 : vector<2x1x256xf32>
    %cst_11 = arith.constant 9.99999974E-6 : f32
    %19 = vector.broadcast %cst_11 : f32 to vector<2x1x256xf32>
    %20 = arith.addf %18, %19 : vector<2x1x256xf32>
    %21 = math.rsqrt %20 : vector<2x1x256xf32>
    %22 = vector.shape_cast %5 : vector<1x256xf32> to vector<1x1x256xf32>
    %23 = vector.broadcast %22 : vector<1x1x256xf32> to vector<2x1x256xf32>
    %24 = arith.mulf %23, %21 : vector<2x1x256xf32>
    %25 = vector.broadcast %24 : vector<2x1x256xf32> to vector<2x8x256xf32>
    %26 = arith.mulf %13, %25 : vector<2x8x256xf32>
    %27 = vector.shape_cast %6 : vector<1x256xf32> to vector<1x1x256xf32>
    %28 = vector.broadcast %27 : vector<1x1x256xf32> to vector<2x8x256xf32>
    %29 = arith.addf %26, %28 : vector<2x8x256xf32>
    %30 = vector.shape_cast %29 : vector<2x8x256xf32> to vector<16x256xf32>
    %c0_12 = arith.constant 0 : index
    %c0_13 = arith.constant 0 : index
    %31 = vector.load %arg5[%c0_12, %c0_13] : memref<256x1280xbf16, #tpu.memory_space<vmem>>, vector<256x1280xbf16>
    %32 = arith.truncf %30 : vector<16x256xf32> to vector<16x256xbf16>
    %cst_14 = arith.constant dense<0.000000e+00> : vector<16x1280xf32>
    %33 = tpu.matmul %32, %31, %cst_14 {dimension_numbers = #tpu.dot_dimension_numbers<[1], [0], [0], [1], [0, 0, 1, 1], [], []>} : vector<16x256xbf16>, vector<256x1280xbf16>, vector<16x1280xf32> -> vector<16x1280xf32>
    %34 = vector.extract_strided_slice %2 {offsets = [0, 0], sizes = [1, 1280], strides = [1, 1]} : vector<6x1280xf32> to vector<1x1280xf32>
    %35 = vector.broadcast %34 : vector<1x1280xf32> to vector<16x1280xf32>
    %36 = arith.addf %33, %35 : vector<16x1280xf32>
    %cst_15 = arith.constant 0.000000e+00 : f32
    %37 = vector.broadcast %cst_15 : f32 to vector<16x1280xf32>
    %38 = arith.maximumf %36, %37 : vector<16x1280xf32>
    %39 = vector.extract_strided_slice %2 {offsets = [1, 0], sizes = [1, 1280], strides = [1, 1]} : vector<6x1280xf32> to vector<1x1280xf32>
    %40 = vector.extract_strided_slice %2 {offsets = [2, 0], sizes = [1, 1280], strides = [1, 1]} : vector<6x1280xf32> to vector<1x1280xf32>
    %41 = vector.shape_cast %38 : vector<16x1280xf32> to vector<2x8x1280xf32>
    %cst_16 = arith.constant dense<0.000000e+00> : vector<2x1280xf32>
    %42 = vector.multi_reduction <add>, %41, %cst_16 [1] : vector<2x8x1280xf32> to vector<2x1280xf32>
    %43 = vector.shape_cast %42 : vector<2x1280xf32> to vector<2x1x1280xf32>
    %cst_17 = arith.constant 8.000000e+00 : f32
    %44 = vector.broadcast %cst_17 : f32 to vector<2x1x1280xf32>
    %45 = arith.divf %43, %44 : vector<2x1x1280xf32>
    %46 = vector.broadcast %45 : vector<2x1x1280xf32> to vector<2x8x1280xf32>
    %47 = arith.subf %41, %46 : vector<2x8x1280xf32>
    %48 = arith.mulf %47, %47 : vector<2x8x1280xf32>
    %cst_18 = arith.constant dense<0.000000e+00> : vector<2x1280xf32>
    %49 = vector.multi_reduction <add>, %48, %cst_18 [1] : vector<2x8x1280xf32> to vector<2x1280xf32>
    %50 = vector.shape_cast %49 : vector<2x1280xf32> to vector<2x1x1280xf32>
    %cst_19 = arith.constant 8.000000e+00 : f32
    %51 = vector.broadcast %cst_19 : f32 to vector<2x1x1280xf32>
    %52 = arith.divf %50, %51 : vector<2x1x1280xf32>
    %cst_20 = arith.constant 9.99999974E-6 : f32
    %53 = vector.broadcast %cst_20 : f32 to vector<2x1x1280xf32>
    %54 = arith.addf %52, %53 : vector<2x1x1280xf32>
    %55 = math.rsqrt %54 : vector<2x1x1280xf32>
    %56 = vector.shape_cast %39 : vector<1x1280xf32> to vector<1x1x1280xf32>
    %57 = vector.broadcast %56 : vector<1x1x1280xf32> to vector<2x1x1280xf32>
    %58 = arith.mulf %57, %55 : vector<2x1x1280xf32>
    %59 = vector.broadcast %58 : vector<2x1x1280xf32> to vector<2x8x1280xf32>
    %60 = arith.mulf %47, %59 : vector<2x8x1280xf32>
    %61 = vector.shape_cast %40 : vector<1x1280xf32> to vector<1x1x1280xf32>
    %62 = vector.broadcast %61 : vector<1x1x1280xf32> to vector<2x8x1280xf32>
    %63 = arith.addf %60, %62 : vector<2x8x1280xf32>
    %64 = vector.shape_cast %63 : vector<2x8x1280xf32> to vector<16x1280xf32>
    %c0_21 = arith.constant 0 : index
    %c0_22 = arith.constant 0 : index
    %65 = vector.load %arg6[%c0_21, %c0_22] : memref<20x1280xbf16, #tpu.memory_space<vmem>>, vector<20x1280xbf16>
    %66 = arith.truncf %64 : vector<16x1280xf32> to vector<16x1280xbf16>
    %cst_23 = arith.constant dense<0.000000e+00> : vector<16x20xf32>
    %67 = tpu.matmul %66, %65, %cst_23 {dimension_numbers = #tpu.dot_dimension_numbers<[1], [1], [0], [0], [0, 0, 1, 0], [], []>} : vector<16x1280xbf16>, vector<20x1280xbf16>, vector<16x20xf32> -> vector<16x20xf32>
    %68 = vector.extract_strided_slice %1 {offsets = [0, 0], sizes = [1, 20], strides = [1, 1]} : vector<3x20xf32> to vector<1x20xf32>
    %69 = vector.broadcast %68 : vector<1x20xf32> to vector<16x20xf32>
    %70 = arith.addf %67, %69 : vector<16x20xf32>
    %cst_24 = arith.constant 0.000000e+00 : f32
    %71 = vector.broadcast %cst_24 : f32 to vector<16x20xf32>
    %72 = arith.maximumf %70, %71 : vector<16x20xf32>
    %73 = vector.extract_strided_slice %1 {offsets = [1, 0], sizes = [1, 20], strides = [1, 1]} : vector<3x20xf32> to vector<1x20xf32>
    %74 = vector.extract_strided_slice %1 {offsets = [2, 0], sizes = [1, 20], strides = [1, 1]} : vector<3x20xf32> to vector<1x20xf32>
    %75 = vector.shape_cast %72 : vector<16x20xf32> to vector<2x8x20xf32>
    %cst_25 = arith.constant dense<0.000000e+00> : vector<2x20xf32>
    %76 = vector.multi_reduction <add>, %75, %cst_25 [1] : vector<2x8x20xf32> to vector<2x20xf32>
    %77 = vector.shape_cast %76 : vector<2x20xf32> to vector<2x1x20xf32>
    %cst_26 = arith.constant 8.000000e+00 : f32
    %78 = vector.broadcast %cst_26 : f32 to vector<2x1x20xf32>
    %79 = arith.divf %77, %78 : vector<2x1x20xf32>
    %80 = vector.broadcast %79 : vector<2x1x20xf32> to vector<2x8x20xf32>
    %81 = arith.subf %75, %80 : vector<2x8x20xf32>
    %82 = arith.mulf %81, %81 : vector<2x8x20xf32>
    %cst_27 = arith.constant dense<0.000000e+00> : vector<2x20xf32>
    %83 = vector.multi_reduction <add>, %82, %cst_27 [1] : vector<2x8x20xf32> to vector<2x20xf32>
    %84 = vector.shape_cast %83 : vector<2x20xf32> to vector<2x1x20xf32>
    %cst_28 = arith.constant 8.000000e+00 : f32
    %85 = vector.broadcast %cst_28 : f32 to vector<2x1x20xf32>
    %86 = arith.divf %84, %85 : vector<2x1x20xf32>
    %cst_29 = arith.constant 9.99999974E-6 : f32
    %87 = vector.broadcast %cst_29 : f32 to vector<2x1x20xf32>
    %88 = arith.addf %86, %87 : vector<2x1x20xf32>
    %89 = math.rsqrt %88 : vector<2x1x20xf32>
    %90 = vector.shape_cast %73 : vector<1x20xf32> to vector<1x1x20xf32>
    %91 = vector.broadcast %90 : vector<1x1x20xf32> to vector<2x1x20xf32>
    %92 = arith.mulf %91, %89 : vector<2x1x20xf32>
    %93 = vector.broadcast %92 : vector<2x1x20xf32> to vector<2x8x20xf32>
    %94 = arith.mulf %81, %93 : vector<2x8x20xf32>
    %95 = vector.shape_cast %74 : vector<1x20xf32> to vector<1x1x20xf32>
    %96 = vector.broadcast %95 : vector<1x1x20xf32> to vector<2x8x20xf32>
    %97 = arith.addf %94, %96 : vector<2x8x20xf32>
    %98 = vector.shape_cast %97 : vector<2x8x20xf32> to vector<16x20xf32>
    %99 = vector.shape_cast %98 : vector<16x20xf32> to vector<2x8x20xf32>
    %c0_30 = arith.constant 0 : index
    %c0_31 = arith.constant 0 : index
    %c0_32 = arith.constant 0 : index
    %100 = vector.load %arg10[%c0_30, %c0_31, %c0_32] : memref<2x8x20xf32, #tpu.memory_space<vmem>>, vector<2x8x20xf32>
    tpu.vector_store %arg10[%c0_30, %c0_31, %c0_32], %99 {strides = array<i32>} : memref<2x8x20xf32, #tpu.memory_space<vmem>>, vector<2x8x20xf32>,
    %c0_33 = arith.constant 0 : index
    %c0_34 = arith.constant 0 : index
    %101 = vector.load %arg7[%c0_33, %c0_34] : memref<20x1280xbf16, #tpu.memory_space<vmem>>, vector<20x1280xbf16>
    %102 = arith.truncf %98 : vector<16x20xf32> to vector<16x20xbf16>
    %cst_35 = arith.constant dense<0.000000e+00> : vector<16x1280xf32>
    %103 = tpu.matmul %102, %101, %cst_35 {dimension_numbers = #tpu.dot_dimension_numbers<[1], [0], [0], [1], [0, 0, 1, 1], [], []>} : vector<16x20xbf16>, vector<20x1280xbf16>, vector<16x1280xf32> -> vector<16x1280xf32>
    %104 = vector.extract_strided_slice %2 {offsets = [3, 0], sizes = [1, 1280], strides = [1, 1]} : vector<6x1280xf32> to vector<1x1280xf32>
    %105 = vector.broadcast %104 : vector<1x1280xf32> to vector<16x1280xf32>
    %106 = arith.addf %103, %105 : vector<16x1280xf32>
    %cst_36 = arith.constant 0.000000e+00 : f32
    %107 = vector.broadcast %cst_36 : f32 to vector<16x1280xf32>
    %108 = arith.maximumf %106, %107 : vector<16x1280xf32>
    %109 = vector.extract_strided_slice %2 {offsets = [4, 0], sizes = [1, 1280], strides = [1, 1]} : vector<6x1280xf32> to vector<1x1280xf32>
    %110 = vector.extract_strided_slice %2 {offsets = [5, 0], sizes = [1, 1280], strides = [1, 1]} : vector<6x1280xf32> to vector<1x1280xf32>
    %111 = vector.shape_cast %108 : vector<16x1280xf32> to vector<2x8x1280xf32>
    %cst_37 = arith.constant dense<0.000000e+00> : vector<2x1280xf32>
    %112 = vector.multi_reduction <add>, %111, %cst_37 [1] : vector<2x8x1280xf32> to vector<2x1280xf32>
    %113 = vector.shape_cast %112 : vector<2x1280xf32> to vector<2x1x1280xf32>
    %cst_38 = arith.constant 8.000000e+00 : f32
    %114 = vector.broadcast %cst_38 : f32 to vector<2x1x1280xf32>
    %115 = arith.divf %113, %114 : vector<2x1x1280xf32>
    %116 = vector.broadcast %115 : vector<2x1x1280xf32> to vector<2x8x1280xf32>
    %117 = arith.subf %111, %116 : vector<2x8x1280xf32>
    %118 = arith.mulf %117, %117 : vector<2x8x1280xf32>
    %cst_39 = arith.constant dense<0.000000e+00> : vector<2x1280xf32>
    %119 = vector.multi_reduction <add>, %118, %cst_39 [1] : vector<2x8x1280xf32> to vector<2x1280xf32>
    %120 = vector.shape_cast %119 : vector<2x1280xf32> to vector<2x1x1280xf32>
    %cst_40 = arith.constant 8.000000e+00 : f32
    %121 = vector.broadcast %cst_40 : f32 to vector<2x1x1280xf32>
    %122 = arith.divf %120, %121 : vector<2x1x1280xf32>
    %cst_41 = arith.constant 9.99999974E-6 : f32
    %123 = vector.broadcast %cst_41 : f32 to vector<2x1x1280xf32>
    %124 = arith.addf %122, %123 : vector<2x1x1280xf32>
    %125 = math.rsqrt %124 : vector<2x1x1280xf32>
    %126 = vector.shape_cast %109 : vector<1x1280xf32> to vector<1x1x1280xf32>
    %127 = vector.broadcast %126 : vector<1x1x1280xf32> to vector<2x1x1280xf32>
    %128 = arith.mulf %127, %125 : vector<2x1x1280xf32>
    %129 = vector.broadcast %128 : vector<2x1x1280xf32> to vector<2x8x1280xf32>
    %130 = arith.mulf %117, %129 : vector<2x8x1280xf32>
    %131 = vector.shape_cast %110 : vector<1x1280xf32> to vector<1x1x1280xf32>
    %132 = vector.broadcast %131 : vector<1x1x1280xf32> to vector<2x8x1280xf32>
    %133 = arith.addf %130, %132 : vector<2x8x1280xf32>
    %134 = vector.shape_cast %133 : vector<2x8x1280xf32> to vector<16x1280xf32>
    %c0_42 = arith.constant 0 : index
    %c0_43 = arith.constant 0 : index
    %135 = vector.load %arg8[%c0_42, %c0_43] : memref<1280x256xbf16, #tpu.memory_space<vmem>>, vector<1280x256xbf16>
    %136 = arith.truncf %134 : vector<16x1280xf32> to vector<16x1280xbf16>
    %cst_44 = arith.constant dense<0.000000e+00> : vector<16x256xf32>
    %137 = tpu.matmul %136, %135, %cst_44 {dimension_numbers = #tpu.dot_dimension_numbers<[1], [0], [0], [1], [0, 0, 1, 1], [], []>} : vector<16x1280xbf16>, vector<1280x256xbf16>, vector<16x256xf32> -> vector<16x256xf32>
    %138 = vector.extract_strided_slice %0 {offsets = [2, 0], sizes = [1, 256], strides = [1, 1]} : vector<3x256xf32> to vector<1x256xf32>
    %139 = vector.broadcast %138 : vector<1x256xf32> to vector<16x256xf32>
    %140 = arith.addf %137, %139 : vector<16x256xf32>
    %141 = vector.shape_cast %140 : vector<16x256xf32> to vector<2x8x256xf32>
    %c0_45 = arith.constant 0 : index
    %c0_46 = arith.constant 0 : index
    %c0_47 = arith.constant 0 : index
    %142 = vector.load %arg9[%c0_45, %c0_46, %c0_47] : memref<2x8x256xf32, #tpu.memory_space<vmem>>, vector<2x8x256xf32>
    tpu.vector_store %arg9[%c0_45, %c0_46, %c0_47], %141 {strides = array<i32>} : memref<2x8x256xf32, #tpu.memory_space<vmem>>, vector<2x8x256xf32>,
    return
  }
  func.func @transform_0(%arg0: i32) -> (i32, i32, i32) {
    %c0_i32 = arith.constant 0 : i32
    %c0_i32_0 = arith.constant 0 : i32
    %c0_i32_1 = arith.constant 0 : i32
    return %arg0, %c0_i32, %c0_i32_0 : i32, i32, i32
  }
  func.func @transform_1(%arg0: i32) -> (i32, i32) {
    %c0_i32 = arith.constant 0 : i32
    %c0_i32_0 = arith.constant 0 : i32
    %c0_i32_1 = arith.constant 0 : i32
    return %c0_i32, %c0_i32_0 : i32, i32
  }
  func.func @transform_2(%arg0: i32) -> (i32, i32) {
    %c0_i32 = arith.constant 0 : i32
    %c0_i32_0 = arith.constant 0 : i32
    %c0_i32_1 = arith.constant 0 : i32
    return %c0_i32, %c0_i32_0 : i32, i32
  }
  func.func @transform_3(%arg0: i32) -> (i32, i32) {
    %c0_i32 = arith.constant 0 : i32
    %c0_i32_0 = arith.constant 0 : i32
    %c0_i32_1 = arith.constant 0 : i32
    return %c0_i32, %c0_i32_0 : i32, i32
  }
  func.func @transform_4(%arg0: i32) -> (i32, i32) {
    %c0_i32 = arith.constant 0 : i32
    %c0_i32_0 = arith.constant 0 : i32
    %c0_i32_1 = arith.constant 0 : i32
    return %c0_i32, %c0_i32_0 : i32, i32
  }
  func.func @transform_5(%arg0: i32) -> (i32, i32) {
    %c0_i32 = arith.constant 0 : i32
    %c0_i32_0 = arith.constant 0 : i32
    %c0_i32_1 = arith.constant 0 : i32
    return %c0_i32, %c0_i32_0 : i32, i32
  }
  func.func @transform_6(%arg0: i32) -> (i32, i32) {
    %c0_i32 = arith.constant 0 : i32
    %c0_i32_0 = arith.constant 0 : i32
    %c0_i32_1 = arith.constant 0 : i32
    return %c0_i32, %c0_i32_0 : i32, i32
  }
  func.func @transform_7(%arg0: i32) -> (i32, i32) {
    %c0_i32 = arith.constant 0 : i32
    %c0_i32_0 = arith.constant 0 : i32
    %c0_i32_1 = arith.constant 0 : i32
    return %c0_i32, %c0_i32_0 : i32, i32
  }
  func.func @transform_8(%arg0: i32) -> (i32, i32, i32) {
    %c0_i32 = arith.constant 0 : i32
    %c0_i32_0 = arith.constant 0 : i32
    %c0_i32_1 = arith.constant 0 : i32
    return %arg0, %c0_i32, %c0_i32_0 : i32, i32, i32
  }
  func.func @transform_9(%arg0: i32) -> (i32, i32, i32) {
    %c0_i32 = arith.constant 0 : i32
    %c0_i32_0 = arith.constant 0 : i32
    %c0_i32_1 = arith.constant 0 : i32
    return %arg0, %c0_i32, %c0_i32_0 : i32, i32, i32
  }
}

</mosaic_0001>

<llo_original>
// kernel: ae_forward_batched.1
$region0: #{ae_forward_batched.1}
  #allocation0 [shape = 'u32[]', space=smem, size = 0x4, offset = 0x4, fixed_abs, tag = 'smem constant byte address 0x4 - core index']
  #allocation1 [shape = 'u32[144,128]{1,0:T(1,128)}', space=vmem, size = 0x12000, scoped, tag = 'internal scratch']
  %s0 = inlined_call_operand.hbm [shape: f32[4,8,256], index: 0, kind: input, shape index: {}]
  %s1 = inlined_call_operand.hbm [shape: f32[3,256], index: 1, kind: input, shape index: {}]
  %s2 = inlined_call_operand.vmem [shape: f32[3,20], index: 2, kind: input, shape index: {}]
  %s3 = inlined_call_operand.hbm [shape: f32[6,1280], index: 3, kind: input, shape index: {}]
  %s4 = inlined_call_operand.hbm [shape: bf16[256,1280], index: 4, kind: input, shape index: {}]
  %s5 = inlined_call_operand.hbm [shape: bf16[20,1280], index: 5, kind: input, shape index: {}]
  %s6 = inlined_call_operand.hbm [shape: bf16[20,1280], index: 6, kind: input, shape index: {}]
  %s7 = inlined_call_operand.hbm [shape: bf16[1280,256], index: 7, kind: input, shape index: {}]
  %s8 = inlined_call_operand.hbm [shape: f32[4,8,256], index: 8, kind: output, shape index: {0}]
  %s9 = inlined_call_operand.hbm [shape: f32[4,8,20], index: 9, kind: output, shape index: {1}]
  %10 = xla_tuple %s8, %s9
  %s11 = sld [smem:[#allocation0]]
  $region101: #{ae_forward_batched.1} parent=0
    _
  %s13 = ssub.s32 1, %s11
  %s14 = scalar_select 0, %s13, %s11
  $region1: #{ae_forward_batched.1} parent=0
    #allocation2 [shape = 'u8[32768]{0}', space=vmem, size = 0x8000, scoped, tag = 'input window, operand 0']
    #allocation3 [shape = 's32[2]{0}', space=sflag, size = 0x8, scoped, tag = 'scoped memory for ae_forward_batched.1']
    #allocation4 [shape = 's32[2]{0}', space=sflag, size = 0x8, scoped, tag = 'scoped memory for ae_forward_batched.1']
    #allocation5 [shape = 'u8[4096]{0}', space=vmem, size = 0x1000, scoped, tag = 'input window, operand 1, single buffered']
    #allocation6 [shape = 's32[1]{0}', space=sflag, size = 0x4, scoped, tag = 'scoped memory for ae_forward_batched.1']
    #allocation7 [shape = 'u8[40960]{0}', space=vmem, size = 0xa000, scoped, tag = 'input window, operand 3, single buffered']
    #allocation8 [shape = 'u8[655360]{0}', space=vmem, size = 0xa0000, scoped, tag = 'input window, operand 4, single buffered']
    #allocation9 [shape = 's32[1]{0}', space=sflag, size = 0x4, scoped, tag = 'scoped memory for ae_forward_batched.1']
    #allocation10 [shape = 'u8[61440]{0}', space=vmem, size = 0xf000, scoped, tag = 'input window, operand 5, single buffered']
    #allocation11 [shape = 'u8[61440]{0}', space=vmem, size = 0xf000, scoped, tag = 'input window, operand 6, single buffered']
    #allocation12 [shape = 's32[1]{0}', space=sflag, size = 0x4, scoped, tag = 'scoped memory for ae_forward_batched.1']
    #allocation13 [shape = 'u8[655360]{0}', space=vmem, size = 0xa0000, scoped, tag = 'input window, operand 7, single buffered']
    #allocation14 [shape = 'u8[32768]{0}', space=vmem, size = 0x8000, scoped, tag = 'output window, operand 0']
    #allocation15 [shape = 'u8[16384]{0}', space=vmem, size = 0x4000, scoped, tag = 'output window, operand 1']
    #allocation16 [shape = 's32[2]{0}', space=sflag, size = 0x8, scoped, tag = 'scoped memory for ae_forward_batched.1']
    %15 = vsyncpa [#allocation3], 0
    %s16 = scalar_lea.sflag [#allocation3], 1
    %17 = vsyncpa %s16, 0
    %18 = vsyncpa [#allocation6], 0
    %19 = vsyncpa [#allocation9], 0
    %20 = vsyncpa [#allocation12], 0
    %21 = vsyncpa [#allocation4], 0
    %s22 = scalar_lea.sflag [#allocation4], 1
    %23 = vsyncpa %s22, 0
    %24 = vsyncpa [#allocation16], 0
    %s25 = scalar_lea.sflag [#allocation16], 1
    %26 = vsyncpa %s25, 0
    loop: start=0, step=1, limit=4
    $region2: #{ae_forward_batched.1} parent=1 // loop_pre_header
      _
    $region3: #{ae_forward_batched.1} parent=1 // loop_header
      %s28 = sphi 0, %s32
      %p29 = scmp.ge.s32.totalorder %s28, 4
      %s38 = sphi 0, %s40
      %s41 = sphi 0, %s38
      %s42 = sphi 0, %s41
      %s58 = sphi 0, %s42
      %s62 = sphi 0, %s62
      %s64 = sphi 0, %s62
      %s65 = sphi 0, %s64
      %s79 = sphi 0, %s65
      %s83 = sphi 0, %s83
      %s85 = sphi 0, %s83
      %s86 = sphi 0, %s85
      %s100 = sphi 0, %s86
      %s104 = sphi 0, %s104
      %s106 = sphi 0, %s104
      %s107 = sphi 0, %s106
      %s121 = sphi 0, %s107
      %s125 = sphi 0, %s125
      %s127 = sphi 0, %s125
      %s128 = sphi 0, %s127
      %s142 = sphi 0, %s128
      %s146 = sphi 0, %s146
      %s148 = sphi 0, %s146
      %s149 = sphi 0, %s148
      %s163 = sphi 0, %s149
      %s167 = sphi 0, %s167
      %s169 = sphi 0, %s167
      %s170 = sphi 0, %s169
      %s184 = sphi 0, %s170
      %s188 = sphi 0, %s188
      %s190 = sphi 0, %s188
      %s191 = sphi 0, %s190
      %s205 = sphi 0, %s191
      %s211 = sphi 0, %s213
      %s214 = sphi 0, %s211
      %s215 = sphi 0, %s214
      %s231 = sphi 0, %s215
      %s237 = sphi 0, %s239
      %s240 = sphi 0, %s237
      %s241 = sphi 0, %s240
      %s257 = sphi 0, %s241
    $region4: #{ae_forward_batched.1} parent=1 // loop_header_branch
      %31 = sbr.rel (%p29) target = $region8
    $region5: #{ae_forward_batched.1} parent=1 // loop_body
      %s33 = ssub.s32 %s28, 1
      %s34 = ssub.s32 %s28, 2
      %s35 = sadd.s32 %s28, 1
      %s36 = ssub.s32 %s28, %s35
      %p37 = scmp.eq.s32.totalorder %s36, 0
      %s39 = sadd.s32 %s38, 1
      %s40 = scalar_select %p37, %s38, %s39
      %p43 = pneg %p37
      %p44 = scmp.eq.s32.totalorder %s28, 1
      %p45 = por %p43, %p44
      %p46 = scmp.ne.s32.totalorder %s38, %s41
      %p47 = scmp.eq.s32.totalorder %s28, 0
      %p48 = por %p46, %p47
      %p49 = scmp.ne.s32.totalorder %s38, %s41
      %p50 = scmp.eq.s32.totalorder %s33, 1
      %p51 = por %p49, %p50
      %p52 = scmp.ne.s32.totalorder %s41, %s42
      %p53 = scmp.eq.s32.totalorder %s33, 0
      %p54 = por %p52, %p53
      %p55 = scmp.ne.s32.totalorder %s41, %s42
      %p56 = scmp.eq.s32.totalorder %s34, 1
      %p57 = por %p55, %p56
      %p59 = scmp.ne.s32.totalorder %s42, %s58
      %p60 = scmp.eq.s32.totalorder %s34, 0
      %p61 = por %p59, %p60
      %s63 = sadd.s32 %s62, 1
      %p66 = scmp.eq.s32.totalorder %s28, 1
      %p67 = scmp.ne.s32.totalorder %s62, %s64
      %p68 = scmp.eq.s32.totalorder %s28, 0
      %p69 = por %p67, %p68
      %p70 = scmp.ne.s32.totalorder %s62, %s64
      %p71 = scmp.eq.s32.totalorder %s33, 1
      %p72 = por %p70, %p71
      %p73 = scmp.ne.s32.totalorder %s64, %s65
      %p74 = scmp.eq.s32.totalorder %s33, 0
      %p75 = por %p73, %p74
      %p76 = scmp.ne.s32.totalorder %s64, %s65
      %p77 = scmp.eq.s32.totalorder %s34, 1
      %p78 = por %p76, %p77
      %p80 = scmp.ne.s32.totalorder %s65, %s79
      %p81 = scmp.eq.s32.totalorder %s34, 0
      %p82 = por %p80, %p81
      %s84 = sadd.s32 %s83, 1
      %p87 = scmp.eq.s32.totalorder %s28, 1
      %p88 = scmp.ne.s32.totalorder %s83, %s85
      %p89 = scmp.eq.s32.totalorder %s28, 0
      %p90 = por %p88, %p89
      %p91 = scmp.ne.s32.totalorder %s83, %s85
      %p92 = scmp.eq.s32.totalorder %s33, 1
      %p93 = por %p91, %p92
      %p94 = scmp.ne.s32.totalorder %s85, %s86
      %p95 = scmp.eq.s32.totalorder %s33, 0
      %p96 = por %p94, %p95
      %p97 = scmp.ne.s32.totalorder %s85, %s86
      %p98 = scmp.eq.s32.totalorder %s34, 1
      %p99 = por %p97, %p98
      %p101 = scmp.ne.s32.totalorder %s86, %s100
      %p102 = scmp.eq.s32.totalorder %s34, 0
      %p103 = por %p101, %p102
      %s105 = sadd.s32 %s104, 1
      %p108 = scmp.eq.s32.totalorder %s28, 1
      %p109 = scmp.ne.s32.totalorder %s104, %s106
      %p110 = scmp.eq.s32.totalorder %s28, 0
      %p111 = por %p109, %p110
      %p112 = scmp.ne.s32.totalorder %s104, %s106
      %p113 = scmp.eq.s32.totalorder %s33, 1
      %p114 = por %p112, %p113
      %p115 = scmp.ne.s32.totalorder %s106, %s107
      %p116 = scmp.eq.s32.totalorder %s33, 0
      %p117 = por %p115, %p116
      %p118 = scmp.ne.s32.totalorder %s106, %s107
      %p119 = scmp.eq.s32.totalorder %s34, 1
      %p120 = por %p118, %p119
      %p122 = scmp.ne.s32.totalorder %s107, %s121
      %p123 = scmp.eq.s32.totalorder %s34, 0
      %p124 = por %p122, %p123
      %s126 = sadd.s32 %s125, 1
      %p129 = scmp.eq.s32.totalorder %s28, 1
      %p130 = scmp.ne.s32.totalorder %s125, %s127
      %p131 = scmp.eq.s32.totalorder %s28, 0
      %p132 = por %p130, %p131
      %p133 = scmp.ne.s32.totalorder %s125, %s127
      %p134 = scmp.eq.s32.totalorder %s33, 1
      %p135 = por %p133, %p134
      %p136 = scmp.ne.s32.totalorder %s127, %s128
      %p137 = scmp.eq.s32.totalorder %s33, 0
      %p138 = por %p136, %p137
      %p139 = scmp.ne.s32.totalorder %s127, %s128
      %p140 = scmp.eq.s32.totalorder %s34, 1
      %p141 = por %p139, %p140
      %p143 = scmp.ne.s32.totalorder %s128, %s142
      %p144 = scmp.eq.s32.totalorder %s34, 0
      %p145 = por %p143, %p144
      %s147 = sadd.s32 %s146, 1
      %p150 = scmp.eq.s32.totalorder %s28, 1
      %p151 = scmp.ne.s32.totalorder %s146, %s148
      %p152 = scmp.eq.s32.totalorder %s28, 0
      %p153 = por %p151, %p152
      %p154 = scmp.ne.s32.totalorder %s146, %s148
      %p155 = scmp.eq.s32.totalorder %s33, 1
      %p156 = por %p154, %p155
      %p157 = scmp.ne.s32.totalorder %s148, %s149
      %p158 = scmp.eq.s32.totalorder %s33, 0
      %p159 = por %p157, %p158
      %p160 = scmp.ne.s32.totalorder %s148, %s149
      %p161 = scmp.eq.s32.totalorder %s34, 1
      %p162 = por %p160, %p161
      %p164 = scmp.ne.s32.totalorder %s149, %s163
      %p165 = scmp.eq.s32.totalorder %s34, 0
      %p166 = por %p164, %p165
      %s168 = sadd.s32 %s167, 1
      %p171 = scmp.eq.s32.totalorder %s28, 1
      %p172 = scmp.ne.s32.totalorder %s167, %s169
      %p173 = scmp.eq.s32.totalorder %s28, 0
      %p174 = por %p172, %p173
      %p175 = scmp.ne.s32.totalorder %s167, %s169
      %p176 = scmp.eq.s32.totalorder %s33, 1
      %p177 = por %p175, %p176
      %p178 = scmp.ne.s32.totalorder %s169, %s170
      %p179 = scmp.eq.s32.totalorder %s33, 0
      %p180 = por %p178, %p179
      %p181 = scmp.ne.s32.totalorder %s169, %s170
      %p182 = scmp.eq.s32.totalorder %s34, 1
      %p183 = por %p181, %p182
      %p185 = scmp.ne.s32.totalorder %s170, %s184
      %p186 = scmp.eq.s32.totalorder %s34, 0
      %p187 = por %p185, %p186
      %s189 = sadd.s32 %s188, 1
      %p192 = scmp.eq.s32.totalorder %s28, 1
      %p193 = scmp.ne.s32.totalorder %s188, %s190
      %p194 = scmp.eq.s32.totalorder %s28, 0
      %p195 = por %p193, %p194
      %p196 = scmp.ne.s32.totalorder %s188, %s190
      %p197 = scmp.eq.s32.totalorder %s33, 1
      %p198 = por %p196, %p197
      %p199 = scmp.ne.s32.totalorder %s190, %s191
      %p200 = scmp.eq.s32.totalorder %s33, 0
      %p201 = por %p199, %p200
      %p202 = scmp.ne.s32.totalorder %s190, %s191
      %p203 = scmp.eq.s32.totalorder %s34, 1
      %p204 = por %p202, %p203
      %p206 = scmp.ne.s32.totalorder %s191, %s205
      %p207 = scmp.eq.s32.totalorder %s34, 0
      %p208 = por %p206, %p207
      %s209 = ssub.s32 %s28, %s35
      %p210 = scmp.eq.s32.totalorder %s209, 0
      %s212 = sadd.s32 %s211, 1
      %s213 = scalar_select %p210, %s211, %s212
      %p216 = pneg %p210
      %p217 = scmp.eq.s32.totalorder %s28, 1
      %p218 = por %p216, %p217
      %p219 = scmp.ne.s32.totalorder %s211, %s214
      %p220 = scmp.eq.s32.totalorder %s28, 0
      %p221 = por %p219, %p220
      %p222 = scmp.ne.s32.totalorder %s211, %s214
      %p223 = scmp.eq.s32.totalorder %s33, 1
      %p224 = por %p222, %p223
      %p225 = scmp.ne.s32.totalorder %s214, %s215
      %p226 = scmp.eq.s32.totalorder %s33, 0
      %p227 = por %p225, %p226
      %p228 = scmp.ne.s32.totalorder %s214, %s215
      %p229 = scmp.eq.s32.totalorder %s34, 1
      %p230 = por %p228, %p229
      %p232 = scmp.ne.s32.totalorder %s215, %s231
      %p233 = scmp.eq.s32.totalorder %s34, 0
      %p234 = por %p232, %p233
      %s235 = ssub.s32 %s28, %s35
      %p236 = scmp.eq.s32.totalorder %s235, 0
      %s238 = sadd.s32 %s237, 1
      %s239 = scalar_select %p236, %s237, %s238
      %p242 = pneg %p236
      %p243 = scmp.eq.s32.totalorder %s28, 1
      %p244 = por %p242, %p243
      %p245 = scmp.ne.s32.totalorder %s237, %s240
      %p246 = scmp.eq.s32.totalorder %s28, 0
      %p247 = por %p245, %p246
      %p248 = scmp.ne.s32.totalorder %s237, %s240
      %p249 = scmp.eq.s32.totalorder %s33, 1
      %p250 = por %p248, %p249
      %p251 = scmp.ne.s32.totalorder %s240, %s241
      %p252 = scmp.eq.s32.totalorder %s33, 0
      %p253 = por %p251, %p252
      %p254 = scmp.ne.s32.totalorder %s240, %s241
      %p255 = scmp.eq.s32.totalorder %s34, 1
      %p256 = por %p254, %p255
      %p258 = scmp.ne.s32.totalorder %s241, %s257
      %p259 = scmp.eq.s32.totalorder %s34, 0
      %p260 = por %p258, %p259
      %p261 = scmp.le.s32.totalorder 1, %s28
      %p262 = scmp.lt.s32.totalorder %s28, 3
      %p263 = pnand %p261, %p262
      %p264 = pneg %p263
      // Predicated region
      $region9: #{ae_forward_batched.1} parent=5 // pred_check
        _
      $region10: #{ae_forward_batched.1} parent=5 // pred_check_branch
        %266 = sbr.rel (%p263) target = $region12
      $region11: #{ae_forward_batched.1} parent=5 // pred_region
        %s267 = ssub.s32 %s28, 1
        // Predicated region
        $region13: #{ae_forward_batched.1} parent=11 // pred_check
          %p268 = pneg %p75
        $region14: #{ae_forward_batched.1} parent=11 // pred_check_branch
          %270 = sbr.rel (%p268) target = $region16
        $region15: #{ae_forward_batched.1} parent=11 // pred_region
          %s272 = ssub.s32 128, 128
          %273 = vsyncadd [#allocation6], %s272
          %s275 = sshll.u32 [#allocation5], 4
          %s276 = int_to_ptr.vmem [resolvable:$true] %s275
          %278 = dma.hbm_to_vmem [thread:$0]  %s1, 128, %s276, [#allocation6]
        $region16: #{ae_forward_batched.1} parent=11 // pred_fallthru
          _
        // Predicated region
        $region17: #{ae_forward_batched.1} parent=11 // pred_check
          %p279 = pneg %p96
        $region18: #{ae_forward_batched.1} parent=11 // pred_check_branch
          %281 = sbr.rel (%p279) target = $region20
        $region19: #{ae_forward_batched.1} parent=11 // pred_region
          _
        $region20: #{ae_forward_batched.1} parent=11 // pred_fallthru
          _
        // Predicated region
        $region21: #{ae_forward_batched.1} parent=11 // pred_check
          %p282 = pneg %p117
        $region22: #{ae_forward_batched.1} parent=11 // pred_check_branch
          %284 = sbr.rel (%p282) target = $region24
        $region23: #{ae_forward_batched.1} parent=11 // pred_region
          %s286 = ssub.s32 1280, 1280
          %287 = vsyncadd [#allocation6], %s286
          %s289 = sshll.u32 [#allocation7], 4
          %s290 = int_to_ptr.vmem [resolvable:$true] %s289
          %292 = dma.hbm_to_vmem [thread:$0]  %s3, 1280, %s290, [#allocation6]
        $region24: #{ae_forward_batched.1} parent=11 // pred_fallthru
          _
        // Predicated region
        $region25: #{ae_forward_batched.1} parent=11 // pred_check
          %p293 = pneg %p138
        $region26: #{ae_forward_batched.1} parent=11 // pred_check_branch
          %295 = sbr.rel (%p293) target = $region28
        $region27: #{ae_forward_batched.1} parent=11 // pred_region
          %s297 = ssub.s32 20480, 20480
          %298 = vsyncadd [#allocation9], %s297
          %s299 = sshll.u32 [#allocation8], 4
          %s300 = int_to_ptr.vmem [resolvable:$true] %s299
          %305 = dma.hbm_to_vmem [thread:$0]  %s4, 20480, %s300, [#allocation9], 640, 640, 40
        $region28: #{ae_forward_batched.1} parent=11 // pred_fallthru
          _
        // Predicated region
        $region29: #{ae_forward_batched.1} parent=11 // pred_check
          %p306 = pneg %p159
        $region30: #{ae_forward_batched.1} parent=11 // pred_check_branch
          %308 = sbr.rel (%p306) target = $region32
        $region31: #{ae_forward_batched.1} parent=11 // pred_region
          %s310 = ssub.s32 1920, 1920
          %311 = vsyncadd [#allocation9], %s310
          %s312 = sshll.u32 [#allocation10], 4
          %s313 = int_to_ptr.vmem [resolvable:$true] %s312
          %318 = dma.hbm_to_vmem [thread:$0]  %s5, 1920, %s313, [#allocation9], 640, 640, 40
        $region32: #{ae_forward_batched.1} parent=11 // pred_fallthru
          _
        // Predicated region
        $region33: #{ae_forward_batched.1} parent=11 // pred_check
          %p319 = pneg %p180
        $region34: #{ae_forward_batched.1} parent=11 // pred_check_branch
          %321 = sbr.rel (%p319) target = $region36
        $region35: #{ae_forward_batched.1} parent=11 // pred_region
          %s323 = ssub.s32 1920, 1920
          %324 = vsyncadd [#allocation12], %s323
          %s325 = sshll.u32 [#allocation11], 4
          %s326 = int_to_ptr.vmem [resolvable:$true] %s325
          %331 = dma.hbm_to_vmem [thread:$0]  %s6, 1920, %s326, [#allocation12], 640, 640, 40
        $region36: #{ae_forward_batched.1} parent=11 // pred_fallthru
          _
        // Predicated region
        $region37: #{ae_forward_batched.1} parent=11 // pred_check
          %p332 = pneg %p201
        $region38: #{ae_forward_batched.1} parent=11 // pred_check_branch
          %334 = sbr.rel (%p332) target = $region40
        $region39: #{ae_forward_batched.1} parent=11 // pred_region
          %s336 = ssub.s32 20480, 20480
          %337 = vsyncadd [#allocation12], %s336
          %s338 = sshll.u32 [#allocation13], 4
          %s339 = int_to_ptr.vmem [resolvable:$true] %s338
          %344 = dma.hbm_to_vmem [thread:$0]  %s7, 20480, %s339, [#allocation12], 128, 128, 8
        $region40: #{ae_forward_batched.1} parent=11 // pred_fallthru
          _
      $region12: #{ae_forward_batched.1} parent=5 // pred_fallthru
        _
      %p345 = scmp.lt.s32.totalorder %s28, 2
      // Predicated region
      $region41: #{ae_forward_batched.1} parent=5 // pred_check
        %p346 = pneg %p345
      $region42: #{ae_forward_batched.1} parent=5 // pred_check_branch
        %348 = sbr.rel (%p346) target = $region44
      $region43: #{ae_forward_batched.1} parent=5 // pred_region
        // Predicated region
        $region45: #{ae_forward_batched.1} parent=43 // pred_check
          %p349 = pneg %p48
        $region46: #{ae_forward_batched.1} parent=43 // pred_check_branch
          %351 = sbr.rel (%p349) target = $region48
        $region47: #{ae_forward_batched.1} parent=43 // pred_region
          %s352 = sand.u32 %s38, 1
          %s353 = scalar_lea.sflag [#allocation3], %s352
          %s354 = sand.u32 %s38, 1
          %s355 = smul.addr %s354, 32
          %s356 = scalar_lea.vmem [#allocation2], %s355
          %s357 = smul.u32 2, %s28
          %s359 = ssub.s32 512, 512
          %360 = vsyncadd %s353, %s359
          %s361 = smul.addr %s357, 2
          %s362 = smul.addr %s361, 128
          %s363 = scalar_lea.hbm %s0, %s362
          %s364 = sshll.u32 %s356, 4
          %s365 = int_to_ptr.vmem [resolvable:$true] %s364
          %370 = dma.hbm_to_vmem [thread:$0]  %s363, 512, %s365, %s353, 256, 256, 16
        $region48: #{ae_forward_batched.1} parent=43 // pred_fallthru
          _
      $region44: #{ae_forward_batched.1} parent=5 // pred_fallthru
        _
      %p371 = scmp.le.s32.totalorder 1, %s28
      %p372 = scmp.lt.s32.totalorder %s28, 3
      %p373 = pnand %p371, %p372
      %p374 = pneg %p373
      // Predicated region
      $region49: #{ae_forward_batched.1} parent=5 // pred_check
        _
      $region50: #{ae_forward_batched.1} parent=5 // pred_check_branch
        %376 = sbr.rel (%p373) target = $region52
      $region51: #{ae_forward_batched.1} parent=5 // pred_region
        %s377 = ssub.s32 %s28, 1
        %s378 = sand.u32 %s41, 1
        %s379 = scalar_lea.sflag [#allocation3], %s378
        %s380 = sand.u32 %s41, 1
        %s381 = smul.addr %s380, 32
        %s382 = scalar_lea.vmem [#allocation2], %s381
        // Predicated region
        $region53: #{ae_forward_batched.1} parent=51 // pred_check
          %p383 = pneg %p54
        $region54: #{ae_forward_batched.1} parent=51 // pred_check_branch
          %385 = sbr.rel (%p383) target = $region56
        $region55: #{ae_forward_batched.1} parent=51 // pred_region
          %386 = dma.done %s379, 512
        $region56: #{ae_forward_batched.1} parent=51 // pred_fallthru
          _
        // Predicated region
        $region57: #{ae_forward_batched.1} parent=51 // pred_check
          %p387 = pneg %p75
        $region58: #{ae_forward_batched.1} parent=51 // pred_check_branch
          %389 = sbr.rel (%p387) target = $region60
        $region59: #{ae_forward_batched.1} parent=51 // pred_region
          %390 = dma.done [#allocation6], 128
        $region60: #{ae_forward_batched.1} parent=51 // pred_fallthru
          _
        // Predicated region
        $region61: #{ae_forward_batched.1} parent=51 // pred_check
          %p391 = pneg %p117
        $region62: #{ae_forward_batched.1} parent=51 // pred_check_branch
          %393 = sbr.rel (%p391) target = $region64
        $region63: #{ae_forward_batched.1} parent=51 // pred_region
          %394 = dma.done [#allocation6], 1280
        $region64: #{ae_forward_batched.1} parent=51 // pred_fallthru
          _
        // Predicated region
        $region65: #{ae_forward_batched.1} parent=51 // pred_check
          %p395 = pneg %p138
        $region66: #{ae_forward_batched.1} parent=51 // pred_check_branch
          %397 = sbr.rel (%p395) target = $region68
        $region67: #{ae_forward_batched.1} parent=51 // pred_region
          %398 = dma.done [#allocation9], 20480
        $region68: #{ae_forward_batched.1} parent=51 // pred_fallthru
          _
        // Predicated region
        $region69: #{ae_forward_batched.1} parent=51 // pred_check
          %p399 = pneg %p159
        $region70: #{ae_forward_batched.1} parent=51 // pred_check_branch
          %401 = sbr.rel (%p399) target = $region72
        $region71: #{ae_forward_batched.1} parent=51 // pred_region
          %402 = dma.done [#allocation9], 1920
        $region72: #{ae_forward_batched.1} parent=51 // pred_fallthru
          _
        // Predicated region
        $region73: #{ae_forward_batched.1} parent=51 // pred_check
          %p403 = pneg %p180
        $region74: #{ae_forward_batched.1} parent=51 // pred_check_branch
          %405 = sbr.rel (%p403) target = $region76
        $region75: #{ae_forward_batched.1} parent=51 // pred_region
          %406 = dma.done [#allocation12], 1920
        $region76: #{ae_forward_batched.1} parent=51 // pred_fallthru
          _
        // Predicated region
        $region77: #{ae_forward_batched.1} parent=51 // pred_check
          %p407 = pneg %p201
        $region78: #{ae_forward_batched.1} parent=51 // pred_check_branch
          %409 = sbr.rel (%p407) target = $region80
        $region79: #{ae_forward_batched.1} parent=51 // pred_region
          %410 = dma.done [#allocation12], 20480
        $region80: #{ae_forward_batched.1} parent=51 // pred_fallthru
          _
        %s411 = sand.u32 %s41, 1
        %s412 = scalar_lea.sflag [#allocation3], %s411
        %s413 = sand.u32 %s41, 1
        %s414 = smul.addr %s413, 32
        %s415 = scalar_lea.vmem [#allocation2], %s414
        %p416 = pneg %p54
        %p417 = pneg %p51
        %p418 = pneg %p75
        %p419 = pneg %p72
        %p420 = pneg %p96
        %p421 = pneg %p93
        %p422 = pneg %p117
        %p423 = pneg %p114
        %p424 = pneg %p138
        %p425 = pneg %p135
        %p426 = pneg %p159
        %p427 = pneg %p156
        %p428 = pneg %p180
        %p429 = pneg %p177
        %p430 = pneg %p201
        %p431 = pneg %p198
        %p432 = pneg %p227
        %p433 = pneg %p224
        %s434 = sand.u32 %s214, 1
        %s435 = scalar_lea.sflag [#allocation4], %s434
        %s436 = sand.u32 %s214, 1
        %s437 = smul.addr %s436, 32
        %s438 = scalar_lea.vmem [#allocation14], %s437
        %p439 = pneg %p253
        %p440 = pneg %p250
        %s441 = sand.u32 %s240, 1
        %s442 = scalar_lea.sflag [#allocation16], %s441
        %s443 = sand.u32 %s240, 1
        %s444 = smul.addr %s443, 16
        %s445 = scalar_lea.vmem [#allocation15], %s444
        %s446 = smul.u32 2, %s33
        %s447 = smul.u32 2, %s33
        %s448 = smul.u32 2, %s33
        %v450 = vld [vmem:[#allocation5] sm:$0x77]
        %v451 = vld [vmem:[%s2] sm:$0x7]
        %v452 = vld [vmem:[#allocation7] sm:$0x3f]
        %v453 = vld [vmem:[#allocation7 + $0x8] sm:$0x3f]
        %v454 = vld [vmem:[#allocation7 + $0x10] sm:$0x3f]
        %v455 = vld [vmem:[#allocation7 + $0x18] sm:$0x3f]
        %v456 = vld [vmem:[#allocation7 + $0x20] sm:$0x3f]
        %v457 = vld [vmem:[#allocation7 + $0x28] sm:$0x3f]
        %v458 = vld [vmem:[#allocation7 + $0x30] sm:$0x3f]
        %v459 = vld [vmem:[#allocation7 + $0x38] sm:$0x3f]
        %v460 = vld [vmem:[#allocation7 + $0x40] sm:$0x3f]
        %v461 = vld [vmem:[#allocation7 + $0x48] sm:$0x3f]
        %v462 = vld [vmem:[%s382] sm:$0xff]
        %v463 = vld [vmem:[%s382 + $0x8] sm:$0xff]
        %v464 = vld [vmem:[%s382 + $0x10] sm:$0xff]
        %v465 = vld [vmem:[%s382 + $0x18] sm:$0xff]
        %v466 = vrot.slane %v462, 4
        %v467 = vadd.f32 %v462, %v466
        %v468 = vrot.slane %v467, 2
        %v469 = vadd.f32 %v467, %v468
        %v470 = vrot.slane %v469, 1
        %v471 = vadd.f32 %v469, %v470
        %v472 = vrot.slane %v463, 4
        %v473 = vadd.f32 %v463, %v472
        %v474 = vrot.slane %v473, 2
        %v475 = vadd.f32 %v473, %v474
        %v476 = vrot.slane %v475, 1
        %v477 = vadd.f32 %v475, %v476
        %v478 = vrot.slane %v464, 4
        %v479 = vadd.f32 %v464, %v478
        %v480 = vrot.slane %v479, 2
        %v481 = vadd.f32 %v479, %v480
        %v482 = vrot.slane %v481, 1
        %v483 = vadd.f32 %v481, %v482
        %v484 = vrot.slane %v465, 4
        %v485 = vadd.f32 %v465, %v484
        %v486 = vrot.slane %v485, 2
        %v487 = vadd.f32 %v485, %v486
        %v488 = vrot.slane %v487, 1
        %v489 = vadd.f32 %v487, %v488
        %v490 = vrcp.pop 8.0
        %v491 = vmul.f32 %v471, %v490
        %v492 = vmul.f32 %v477, %v490
        %v493 = vmul.f32 %v483, %v490
        %v494 = vmul.f32 %v489, %v490
        %v495 = vsub.f32 %v462, %v491
        %v496 = vsub.f32 %v463, %v492
        %v497 = vsub.f32 %v464, %v493
        %v498 = vsub.f32 %v465, %v494
        %v499 = vmul.f32 %v495, %v495
        %v500 = vmul.f32 %v496, %v496
        %v501 = vmul.f32 %v497, %v497
        %v502 = vmul.f32 %v498, %v498
        %v503 = vrot.slane %v499, 4
        %v504 = vadd.f32 %v499, %v503
        %v505 = vrot.slane %v504, 2
        %v506 = vadd.f32 %v504, %v505
        %v507 = vrot.slane %v506, 1
        %v508 = vadd.f32 %v506, %v507
        %v509 = vrot.slane %v500, 4
        %v510 = vadd.f32 %v500, %v509
        %v511 = vrot.slane %v510, 2
        %v512 = vadd.f32 %v510, %v511
        %v513 = vrot.slane %v512, 1
        %v514 = vadd.f32 %v512, %v513
        %v515 = vrot.slane %v501, 4
        %v516 = vadd.f32 %v501, %v515
        %v517 = vrot.slane %v516, 2
        %v518 = vadd.f32 %v516, %v517
        %v519 = vrot.slane %v518, 1
        %v520 = vadd.f32 %v518, %v519
        %v521 = vrot.slane %v502, 4
        %v522 = vadd.f32 %v502, %v521
        %v523 = vrot.slane %v522, 2
        %v524 = vadd.f32 %v522, %v523
        %v525 = vrot.slane %v524, 1
        %v526 = vadd.f32 %v524, %v525
        %v527 = vmul.f32 %v508, %v490
        %v528 = vmul.f32 %v514, %v490
        %v529 = vmul.f32 %v520, %v490
        %v530 = vmul.f32 %v526, %v490
        %v531 = vadd.f32 %v527, 1e-05
        %v532 = vadd.f32 %v528, 1e-05
        %v533 = vadd.f32 %v529, 1e-05
        %v534 = vadd.f32 %v530, 1e-05
        %v535 = vrsqrt.pop %v531
        %v536 = vrsqrt.pop %v532
        %v537 = vrsqrt.pop %v533
        %v538 = vrsqrt.pop %v534
        %v543 = vcombine.low %v535, %v536
        %v544 = vcombine.low %v537, %v538
        %v547 = vmul.f32 %v450, %v543
        %v548 = vmul.f32 %v450, %v544
        %v551 = vlaneseq
        %v552 = vshrl.u32 %v551, 7
        %v553 = vsub.s32 0, %v552
        %v554 = vrot.slane %v547, %v553
        %v555 = vlaneseq
        %v556 = vshrl.u32 %v555, 7
        %v557 = vsub.s32 4, %v556
        %v558 = vrot.slane %v547, %v557
        %v559 = vlaneseq
        %v560 = vshrl.u32 %v559, 7
        %v561 = vsub.s32 0, %v560
        %v562 = vrot.slane %v548, %v561
        %v563 = vlaneseq
        %v564 = vshrl.u32 %v563, 7
        %v565 = vsub.s32 4, %v564
        %v566 = vrot.slane %v548, %v565
        %v571 = vlaneseq
        %v572 = vshrl.u32 %v571, 7
        %v573 = vsub.s32 0, %v572
        %v574 = vrot.slane %v554, %v573
        %v575 = vlaneseq
        %v576 = vshrl.u32 %v575, 7
        %v577 = vsub.s32 0, %v576
        %v578 = vrot.slane %v558, %v577
        %v579 = vlaneseq
        %v580 = vshrl.u32 %v579, 7
        %v581 = vsub.s32 0, %v580
        %v582 = vrot.slane %v562, %v581
        %v583 = vlaneseq
        %v584 = vshrl.u32 %v583, 7
        %v585 = vsub.s32 0, %v584
        %v586 = vrot.slane %v566, %v585
        %v587 = vmul.f32 %v495, %v574
        %v588 = vmul.f32 %v496, %v578
        %v589 = vmul.f32 %v497, %v582
        %v590 = vmul.f32 %v498, %v586
        %v592 = vlaneseq
        %v593 = vshrl.u32 %v592, 7
        %v594 = vsub.s32 1, %v593
        %v595 = vrot.slane %v450, %v594
        %v596 = vlaneseq
        %v597 = vshrl.u32 %v596, 7
        %v598 = vsub.s32 5, %v597
        %v599 = vrot.slane %v450, %v598
        %v602 = vlaneseq
        %v603 = vshrl.u32 %v602, 7
        %v604 = vsub.s32 1, %v603
        %v605 = vrot.slane %v595, %v604
        %v606 = vlaneseq
        %v607 = vshrl.u32 %v606, 7
        %v608 = vsub.s32 1, %v607
        %v609 = vrot.slane %v599, %v608
        %v610 = vadd.f32 %v587, %v605
        %v611 = vadd.f32 %v588, %v609
        %v612 = vadd.f32 %v589, %v605
        %v613 = vadd.f32 %v590, %v609
        %v614 = vld [vmem:[#allocation8] sm:$0xff]
        %v615 = vld [vmem:[#allocation8 + $0x8] sm:$0xff]
        %v616 = vld [vmem:[#allocation8 + $0x10] sm:$0xff]
        %v617 = vld [vmem:[#allocation8 + $0x18] sm:$0xff]
        %v618 = vld [vmem:[#allocation8 + $0x20] sm:$0xff]
        %v619 = vld [vmem:[#allocation8 + $0x28] sm:$0xff]
        %v620 = vld [vmem:[#allocation8 + $0x30] sm:$0xff]
        %v621 = vld [vmem:[#allocation8 + $0x38] sm:$0xff]
        %v622 = vld [vmem:[#allocation8 + $0x40] sm:$0xff]
        %v623 = vld [vmem:[#allocation8 + $0x48] sm:$0xff]
        %v624 = vld [vmem:[#allocation8 + $0x50] sm:$0xff]
        %v625 = vld [vmem:[#allocation8 + $0x58] sm:$0xff]
        %v626 = vld [vmem:[#allocation8 + $0x60] sm:$0xff]
        %v627 = vld [vmem:[#allocation8 + $0x68] sm:$0xff]
        %v628 = vld [vmem:[#allocation8 + $0x70] sm:$0xff]
        %v629 = vld [vmem:[#allocation8 + $0x78] sm:$0xff]
        %v630 = vld [vmem:[#allocation8 + $0x80] sm:$0xff]
        %v631 = vld [vmem:[#allocation8 + $0x88] sm:$0xff]
        %v632 = vld [vmem:[#allocation8 + $0x90] sm:$0xff]
        %v633 = vld [vmem:[#allocation8 + $0x98] sm:$0xff]
        %v634 = vld [vmem:[#allocation8 + $0xa0] sm:$0xff]
        %v635 = vld [vmem:[#allocation8 + $0xa8] sm:$0xff]
        %v636 = vld [vmem:[#allocation8 + $0xb0] sm:$0xff]
        %v637 = vld [vmem:[#allocation8 + $0xb8] sm:$0xff]
        %v638 = vld [vmem:[#allocation8 + $0xc0] sm:$0xff]
        %v639 = vld [vmem:[#allocation8 + $0xc8] sm:$0xff]
        %v640 = vld [vmem:[#allocation8 + $0xd0] sm:$0xff]
        %v641 = vld [vmem:[#allocation8 + $0xd8] sm:$0xff]
        %v642 = vld [vmem:[#allocation8 + $0xe0] sm:$0xff]
        %v643 = vld [vmem:[#allocation8 + $0xe8] sm:$0xff]
        %v644 = vld [vmem:[#allocation8 + $0xf0] sm:$0xff]
        %v645 = vld [vmem:[#allocation8 + $0xf8] sm:$0xff]
        %v646 = vld [vmem:[#allocation8 + $0x100] sm:$0xff]
        %v647 = vld [vmem:[#allocation8 + $0x108] sm:$0xff]
        %v648 = vld [vmem:[#allocation8 + $0x110] sm:$0xff]
        %v649 = vld [vmem:[#allocation8 + $0x118] sm:$0xff]
        %v650 = vld [vmem:[#allocation8 + $0x120] sm:$0xff]
        %v651 = vld [vmem:[#allocation8 + $0x128] sm:$0xff]
        %v652 = vld [vmem:[#allocation8 + $0x130] sm:$0xff]
        %v653 = vld [vmem:[#allocation8 + $0x138] sm:$0xff]
        %v654 = vld [vmem:[#allocation8 + $0x140] sm:$0xff]
        %v655 = vld [vmem:[#allocation8 + $0x148] sm:$0xff]
        %v656 = vld [vmem:[#allocation8 + $0x150] sm:$0xff]
        %v657 = vld [vmem:[#allocation8 + $0x158] sm:$0xff]
        %v658 = vld [vmem:[#allocation8 + $0x160] sm:$0xff]
        %v659 = vld [vmem:[#allocation8 + $0x168] sm:$0xff]
        %v660 = vld [vmem:[#allocation8 + $0x170] sm:$0xff]
        %v661 = vld [vmem:[#allocation8 + $0x178] sm:$0xff]
        %v662 = vld [vmem:[#allocation8 + $0x180] sm:$0xff]
        %v663 = vld [vmem:[#allocation8 + $0x188] sm:$0xff]
        %v664 = vld [vmem:[#allocation8 + $0x190] sm:$0xff]
        %v665 = vld [vmem:[#allocation8 + $0x198] sm:$0xff]
        %v666 = vld [vmem:[#allocation8 + $0x1a0] sm:$0xff]
        %v667 = vld [vmem:[#allocation8 + $0x1a8] sm:$0xff]
        %v668 = vld [vmem:[#allocation8 + $0x1b0] sm:$0xff]
        %v669 = vld [vmem:[#allocation8 + $0x1b8] sm:$0xff]
        %v670 = vld [vmem:[#allocation8 + $0x1c0] sm:$0xff]
        %v671 = vld [vmem:[#allocation8 + $0x1c8] sm:$0xff]
        %v672 = vld [vmem:[#allocation8 + $0x1d0] sm:$0xff]
        %v673 = vld [vmem:[#allocation8 + $0x1d8] sm:$0xff]
        %v674 = vld [vmem:[#allocation8 + $0x1e0] sm:$0xff]
        %v675 = vld [vmem:[#allocation8 + $0x1e8] sm:$0xff]
        %v676 = vld [vmem:[#allocation8 + $0x1f0] sm:$0xff]
        %v677 = vld [vmem:[#allocation8 + $0x1f8] sm:$0xff]
        %v678 = vld [vmem:[#allocation8 + $0x200] sm:$0xff]
        %v679 = vld [vmem:[#allocation8 + $0x208] sm:$0xff]
        %v680 = vld [vmem:[#allocation8 + $0x210] sm:$0xff]
        %v681 = vld [vmem:[#allocation8 + $0x218] sm:$0xff]
        %v682 = vld [vmem:[#allocation8 + $0x220] sm:$0xff]
        %v683 = vld [vmem:[#allocation8 + $0x228] sm:$0xff]
        %v684 = vld [vmem:[#allocation8 + $0x230] sm:$0xff]
        %v685 = vld [vmem:[#allocation8 + $0x238] sm:$0xff]
        %v686 = vld [vmem:[#allocation8 + $0x240] sm:$0xff]
        %v687 = vld [vmem:[#allocation8 + $0x248] sm:$0xff]
        %v688 = vld [vmem:[#allocation8 + $0x250] sm:$0xff]
        %v689 = vld [vmem:[#allocation8 + $0x258] sm:$0xff]
        %v690 = vld [vmem:[#allocation8 + $0x260] sm:$0xff]
        %v691 = vld [vmem:[#allocation8 + $0x268] sm:$0xff]
        %v692 = vld [vmem:[#allocation8 + $0x270] sm:$0xff]
        %v693 = vld [vmem:[#allocation8 + $0x278] sm:$0xff]
        %v694 = vld [vmem:[#allocation8 + $0x280] sm:$0xff]
        %v695 = vld [vmem:[#allocation8 + $0x288] sm:$0xff]
        %v696 = vld [vmem:[#allocation8 + $0x290] sm:$0xff]
        %v697 = vld [vmem:[#allocation8 + $0x298] sm:$0xff]
        %v698 = vld [vmem:[#allocation8 + $0x2a0] sm:$0xff]
        %v699 = vld [vmem:[#allocation8 + $0x2a8] sm:$0xff]
        %v700 = vld [vmem:[#allocation8 + $0x2b0] sm:$0xff]
        %v701 = vld [vmem:[#allocation8 + $0x2b8] sm:$0xff]
        %v702 = vld [vmem:[#allocation8 + $0x2c0] sm:$0xff]
        %v703 = vld [vmem:[#allocation8 + $0x2c8] sm:$0xff]
        %v704 = vld [vmem:[#allocation8 + $0x2d0] sm:$0xff]
        %v705 = vld [vmem:[#allocation8 + $0x2d8] sm:$0xff]
        %v706 = vld [vmem:[#allocation8 + $0x2e0] sm:$0xff]
        %v707 = vld [vmem:[#allocation8 + $0x2e8] sm:$0xff]
        %v708 = vld [vmem:[#allocation8 + $0x2f0] sm:$0xff]
        %v709 = vld [vmem:[#allocation8 + $0x2f8] sm:$0xff]
        %v710 = vld [vmem:[#allocation8 + $0x300] sm:$0xff]
        %v711 = vld [vmem:[#allocation8 + $0x308] sm:$0xff]
        %v712 = vld [vmem:[#allocation8 + $0x310] sm:$0xff]
        %v713 = vld [vmem:[#allocation8 + $0x318] sm:$0xff]
        %v714 = vld [vmem:[#allocation8 + $0x320] sm:$0xff]
        %v715 = vld [vmem:[#allocation8 + $0x328] sm:$0xff]
        %v716 = vld [vmem:[#allocation8 + $0x330] sm:$0xff]
        %v717 = vld [vmem:[#allocation8 + $0x338] sm:$0xff]
        %v718 = vld [vmem:[#allocation8 + $0x340] sm:$0xff]
        %v719 = vld [vmem:[#allocation8 + $0x348] sm:$0xff]
        %v720 = vld [vmem:[#allocation8 + $0x350] sm:$0xff]
        %v721 = vld [vmem:[#allocation8 + $0x358] sm:$0xff]
        %v722 = vld [vmem:[#allocation8 + $0x360] sm:$0xff]
        %v723 = vld [vmem:[#allocation8 + $0x368] sm:$0xff]
        %v724 = vld [vmem:[#allocation8 + $0x370] sm:$0xff]
        %v725 = vld [vmem:[#allocation8 + $0x378] sm:$0xff]
        %v726 = vld [vmem:[#allocation8 + $0x380] sm:$0xff]
        %v727 = vld [vmem:[#allocation8 + $0x388] sm:$0xff]
        %v728 = vld [vmem:[#allocation8 + $0x390] sm:$0xff]
        %v729 = vld [vmem:[#allocation8 + $0x398] sm:$0xff]
        %v730 = vld [vmem:[#allocation8 + $0x3a0] sm:$0xff]
        %v731 = vld [vmem:[#allocation8 + $0x3a8] sm:$0xff]
        %v732 = vld [vmem:[#allocation8 + $0x3b0] sm:$0xff]
        %v733 = vld [vmem:[#allocation8 + $0x3b8] sm:$0xff]
        %v734 = vld [vmem:[#allocation8 + $0x3c0] sm:$0xff]
        %v735 = vld [vmem:[#allocation8 + $0x3c8] sm:$0xff]
        %v736 = vld [vmem:[#allocation8 + $0x3d0] sm:$0xff]
        %v737 = vld [vmem:[#allocation8 + $0x3d8] sm:$0xff]
        %v738 = vld [vmem:[#allocation8 + $0x3e0] sm:$0xff]
        %v739 = vld [vmem:[#allocation8 + $0x3e8] sm:$0xff]
        %v740 = vld [vmem:[#allocation8 + $0x3f0] sm:$0xff]
        %v741 = vld [vmem:[#allocation8 + $0x3f8] sm:$0xff]
        %v742 = vld [vmem:[#allocation8 + $0x400] sm:$0xff]
        %v743 = vld [vmem:[#allocation8 + $0x408] sm:$0xff]
        %v744 = vld [vmem:[#allocation8 + $0x410] sm:$0xff]
        %v745 = vld [vmem:[#allocation8 + $0x418] sm:$0xff]
        %v746 = vld [vmem:[#allocation8 + $0x420] sm:$0xff]
        %v747 = vld [vmem:[#allocation8 + $0x428] sm:$0xff]
        %v748 = vld [vmem:[#allocation8 + $0x430] sm:$0xff]
        %v749 = vld [vmem:[#allocation8 + $0x438] sm:$0xff]
        %v750 = vld [vmem:[#allocation8 + $0x440] sm:$0xff]
        %v751 = vld [vmem:[#allocation8 + $0x448] sm:$0xff]
        %v752 = vld [vmem:[#allocation8 + $0x450] sm:$0xff]
        %v753 = vld [vmem:[#allocation8 + $0x458] sm:$0xff]
        %v754 = vld [vmem:[#allocation8 + $0x460] sm:$0xff]
        %v755 = vld [vmem:[#allocation8 + $0x468] sm:$0xff]
        %v756 = vld [vmem:[#allocation8 + $0x470] sm:$0xff]
        %v757 = vld [vmem:[#allocation8 + $0x478] sm:$0xff]
        %v758 = vld [vmem:[#allocation8 + $0x480] sm:$0xff]
        %v759 = vld [vmem:[#allocation8 + $0x488] sm:$0xff]
        %v760 = vld [vmem:[#allocation8 + $0x490] sm:$0xff]
        %v761 = vld [vmem:[#allocation8 + $0x498] sm:$0xff]
        %v762 = vld [vmem:[#allocation8 + $0x4a0] sm:$0xff]
        %v763 = vld [vmem:[#allocation8 + $0x4a8] sm:$0xff]
        %v764 = vld [vmem:[#allocation8 + $0x4b0] sm:$0xff]
        %v765 = vld [vmem:[#allocation8 + $0x4b8] sm:$0xff]
        %v766 = vld [vmem:[#allocation8 + $0x4c0] sm:$0xff]
        %v767 = vld [vmem:[#allocation8 + $0x4c8] sm:$0xff]
        %v768 = vld [vmem:[#allocation8 + $0x4d0] sm:$0xff]
        %v769 = vld [vmem:[#allocation8 + $0x4d8] sm:$0xff]
        %v770 = vld [vmem:[#allocation8 + $0x4e0] sm:$0xff]
        %v771 = vld [vmem:[#allocation8 + $0x4e8] sm:$0xff]
        %v772 = vld [vmem:[#allocation8 + $0x4f0] sm:$0xff]
        %v773 = vld [vmem:[#allocation8 + $0x4f8] sm:$0xff]
        %v774 = vpack.c.bf16 %v612, %v610
        %v775 = vpack.c.bf16 %v613, %v611
        %v776 = vlaneseq
        %v777 = vshrl.u32 %v776, 7
        %v778 = vsub.s32 0, %v777
        %v779 = vrot.slane %v452, %v778
        %v780 = vlaneseq
        %v781 = vshrl.u32 %v780, 7
        %v782 = vsub.s32 0, %v781
        %v783 = vrot.slane %v453, %v782
        %v784 = vlaneseq
        %v785 = vshrl.u32 %v784, 7
        %v786 = vsub.s32 0, %v785
        %v787 = vrot.slane %v454, %v786
        %v788 = vlaneseq
        %v789 = vshrl.u32 %v788, 7
        %v790 = vsub.s32 0, %v789
        %v791 = vrot.slane %v455, %v790
        %v792 = vlaneseq
        %v793 = vshrl.u32 %v792, 7
        %v794 = vsub.s32 0, %v793
        %v795 = vrot.slane %v456, %v794
        %v796 = vlaneseq
        %v797 = vshrl.u32 %v796, 7
        %v798 = vsub.s32 0, %v797
        %v799 = vrot.slane %v457, %v798
        %v800 = vlaneseq
        %v801 = vshrl.u32 %v800, 7
        %v802 = vsub.s32 0, %v801
        %v803 = vrot.slane %v458, %v802
        %v804 = vlaneseq
        %v805 = vshrl.u32 %v804, 7
        %v806 = vsub.s32 0, %v805
        %v807 = vrot.slane %v459, %v806
        %v808 = vlaneseq
        %v809 = vshrl.u32 %v808, 7
        %v810 = vsub.s32 0, %v809
        %v811 = vrot.slane %v460, %v810
        %v812 = vlaneseq
        %v813 = vshrl.u32 %v812, 7
        %v814 = vsub.s32 0, %v813
        %v815 = vrot.slane %v461, %v814
        %v976 = vunpack.c.l.b16 %v614
        %v977 = vunpack.c.h.b16 %v614
        %v978 = vunpack.c.l.b16 %v615
        %v979 = vunpack.c.h.b16 %v615
        %v980 = vunpack.c.l.b16 %v616
        %v981 = vunpack.c.h.b16 %v616
        %v982 = vunpack.c.l.b16 %v617
        %v983 = vunpack.c.h.b16 %v617
        %v984 = vunpack.c.l.b16 %v618
        %v985 = vunpack.c.h.b16 %v618
        %v986 = vunpack.c.l.b16 %v619
        %v987 = vunpack.c.h.b16 %v619
        %v988 = vunpack.c.l.b16 %v620
        %v989 = vunpack.c.h.b16 %v620
        %v990 = vunpack.c.l.b16 %v621
        %v991 = vunpack.c.h.b16 %v621
        %v992 = vunpack.c.l.b16 %v622
        %v993 = vunpack.c.h.b16 %v622
        %v994 = vunpack.c.l.b16 %v623
        %v995 = vunpack.c.h.b16 %v623
        %v996 = vunpack.c.l.b16 %v624
        %v997 = vunpack.c.h.b16 %v624
        %v998 = vunpack.c.l.b16 %v625
        %v999 = vunpack.c.h.b16 %v625
        %v1000 = vunpack.c.l.b16 %v626
        %v1001 = vunpack.c.h.b16 %v626
        %v1002 = vunpack.c.l.b16 %v627
        %v1003 = vunpack.c.h.b16 %v627
        %v1004 = vunpack.c.l.b16 %v628
        %v1005 = vunpack.c.h.b16 %v628
        %v1006 = vunpack.c.l.b16 %v629
        %v1007 = vunpack.c.h.b16 %v629
        %v1008 = vunpack.c.l.b16 %v630
        %v1009 = vunpack.c.h.b16 %v630
        %v1010 = vunpack.c.l.b16 %v631
        %v1011 = vunpack.c.h.b16 %v631
        %v1012 = vunpack.c.l.b16 %v632
        %v1013 = vunpack.c.h.b16 %v632
        %v1014 = vunpack.c.l.b16 %v633
        %v1015 = vunpack.c.h.b16 %v633
        %v1016 = vunpack.c.l.b16 %v634
        %v1017 = vunpack.c.h.b16 %v634
        %v1018 = vunpack.c.l.b16 %v635
        %v1019 = vunpack.c.h.b16 %v635
        %v1020 = vunpack.c.l.b16 %v636
        %v1021 = vunpack.c.h.b16 %v636
        %v1022 = vunpack.c.l.b16 %v637
        %v1023 = vunpack.c.h.b16 %v637
        %v1024 = vunpack.c.l.b16 %v638
        %v1025 = vunpack.c.h.b16 %v638
        %v1026 = vunpack.c.l.b16 %v639
        %v1027 = vunpack.c.h.b16 %v639
        %v1028 = vunpack.c.l.b16 %v640
        %v1029 = vunpack.c.h.b16 %v640
        %v1030 = vunpack.c.l.b16 %v641
        %v1031 = vunpack.c.h.b16 %v641
        %v1032 = vunpack.c.l.b16 %v642
        %v1033 = vunpack.c.h.b16 %v642
        %v1034 = vunpack.c.l.b16 %v643
        %v1035 = vunpack.c.h.b16 %v643
        %v1036 = vunpack.c.l.b16 %v644
        %v1037 = vunpack.c.h.b16 %v644
        %v1038 = vunpack.c.l.b16 %v645
        %v1039 = vunpack.c.h.b16 %v645
        %v1040 = vunpack.c.l.b16 %v646
        %v1041 = vunpack.c.h.b16 %v646
        %v1042 = vunpack.c.l.b16 %v647
        %v1043 = vunpack.c.h.b16 %v647
        %v1044 = vunpack.c.l.b16 %v648
        %v1045 = vunpack.c.h.b16 %v648
        %v1046 = vunpack.c.l.b16 %v649
        %v1047 = vunpack.c.h.b16 %v649
        %v1048 = vunpack.c.l.b16 %v650
        %v1049 = vunpack.c.h.b16 %v650
        %v1050 = vunpack.c.l.b16 %v651
        %v1051 = vunpack.c.h.b16 %v651
        %v1052 = vunpack.c.l.b16 %v652
        %v1053 = vunpack.c.h.b16 %v652
        %v1054 = vunpack.c.l.b16 %v653
        %v1055 = vunpack.c.h.b16 %v653
        %v1056 = vunpack.c.l.b16 %v654
        %v1057 = vunpack.c.h.b16 %v654
        %v1058 = vunpack.c.l.b16 %v655
        %v1059 = vunpack.c.h.b16 %v655
        %v1060 = vunpack.c.l.b16 %v656
        %v1061 = vunpack.c.h.b16 %v656
        %v1062 = vunpack.c.l.b16 %v657
        %v1063 = vunpack.c.h.b16 %v657
        %v1064 = vunpack.c.l.b16 %v658
        %v1065 = vunpack.c.h.b16 %v658
        %v1066 = vunpack.c.l.b16 %v659
        %v1067 = vunpack.c.h.b16 %v659
        %v1068 = vunpack.c.l.b16 %v660
        %v1069 = vunpack.c.h.b16 %v660
        %v1070 = vunpack.c.l.b16 %v661
        %v1071 = vunpack.c.h.b16 %v661
        %v1072 = vunpack.c.l.b16 %v662
        %v1073 = vunpack.c.h.b16 %v662
        %v1074 = vunpack.c.l.b16 %v663
        %v1075 = vunpack.c.h.b16 %v663
        %v1076 = vunpack.c.l.b16 %v664
        %v1077 = vunpack.c.h.b16 %v664
        %v1078 = vunpack.c.l.b16 %v665
        %v1079 = vunpack.c.h.b16 %v665
        %v1080 = vunpack.c.l.b16 %v666
        %v1081 = vunpack.c.h.b16 %v666
        %v1082 = vunpack.c.l.b16 %v667
        %v1083 = vunpack.c.h.b16 %v667
        %v1084 = vunpack.c.l.b16 %v668
        %v1085 = vunpack.c.h.b16 %v668
        %v1086 = vunpack.c.l.b16 %v669
        %v1087 = vunpack.c.h.b16 %v669
        %v1088 = vunpack.c.l.b16 %v670
        %v1089 = vunpack.c.h.b16 %v670
        %v1090 = vunpack.c.l.b16 %v671
        %v1091 = vunpack.c.h.b16 %v671
        %v1092 = vunpack.c.l.b16 %v672
        %v1093 = vunpack.c.h.b16 %v672
        %v1094 = vunpack.c.l.b16 %v673
        %v1095 = vunpack.c.h.b16 %v673
        %v1096 = vunpack.c.l.b16 %v674
        %v1097 = vunpack.c.h.b16 %v674
        %v1098 = vunpack.c.l.b16 %v675
        %v1099 = vunpack.c.h.b16 %v675
        %v1100 = vunpack.c.l.b16 %v676
        %v1101 = vunpack.c.h.b16 %v676
        %v1102 = vunpack.c.l.b16 %v677
        %v1103 = vunpack.c.h.b16 %v677
        %v1104 = vunpack.c.l.b16 %v678
        %v1105 = vunpack.c.h.b16 %v678
        %v1106 = vunpack.c.l.b16 %v679
        %v1107 = vunpack.c.h.b16 %v679
        %v1108 = vunpack.c.l.b16 %v680
        %v1109 = vunpack.c.h.b16 %v680
        %v1110 = vunpack.c.l.b16 %v681
        %v1111 = vunpack.c.h.b16 %v681
        %v1112 = vunpack.c.l.b16 %v682
        %v1113 = vunpack.c.h.b16 %v682
        %v1114 = vunpack.c.l.b16 %v683
        %v1115 = vunpack.c.h.b16 %v683
        %v1116 = vunpack.c.l.b16 %v684
        %v1117 = vunpack.c.h.b16 %v684
        %v1118 = vunpack.c.l.b16 %v685
        %v1119 = vunpack.c.h.b16 %v685
        %v1120 = vunpack.c.l.b16 %v686
        %v1121 = vunpack.c.h.b16 %v686
        %v1122 = vunpack.c.l.b16 %v687
        %v1123 = vunpack.c.h.b16 %v687
        %v1124 = vunpack.c.l.b16 %v688
        %v1125 = vunpack.c.h.b16 %v688
        %v1126 = vunpack.c.l.b16 %v689
        %v1127 = vunpack.c.h.b16 %v689
        %v1128 = vunpack.c.l.b16 %v690
        %v1129 = vunpack.c.h.b16 %v690
        %v1130 = vunpack.c.l.b16 %v691
        %v1131 = vunpack.c.h.b16 %v691
        %v1132 = vunpack.c.l.b16 %v692
        %v1133 = vunpack.c.h.b16 %v692
        %v1134 = vunpack.c.l.b16 %v693
        %v1135 = vunpack.c.h.b16 %v693
        %v1136 = vunpack.c.l.b16 %v694
        %v1137 = vunpack.c.h.b16 %v694
        %v1138 = vunpack.c.l.b16 %v695
        %v1139 = vunpack.c.h.b16 %v695
        %v1140 = vunpack.c.l.b16 %v696
        %v1141 = vunpack.c.h.b16 %v696
        %v1142 = vunpack.c.l.b16 %v697
        %v1143 = vunpack.c.h.b16 %v697
        %v1144 = vunpack.c.l.b16 %v698
        %v1145 = vunpack.c.h.b16 %v698
        %v1146 = vunpack.c.l.b16 %v699
        %v1147 = vunpack.c.h.b16 %v699
        %v1148 = vunpack.c.l.b16 %v700
        %v1149 = vunpack.c.h.b16 %v700
        %v1150 = vunpack.c.l.b16 %v701
        %v1151 = vunpack.c.h.b16 %v701
        %v1152 = vunpack.c.l.b16 %v702
        %v1153 = vunpack.c.h.b16 %v702
        %v1154 = vunpack.c.l.b16 %v703
        %v1155 = vunpack.c.h.b16 %v703
        %v1156 = vunpack.c.l.b16 %v704
        %v1157 = vunpack.c.h.b16 %v704
        %v1158 = vunpack.c.l.b16 %v705
        %v1159 = vunpack.c.h.b16 %v705
        %v1160 = vunpack.c.l.b16 %v706
        %v1161 = vunpack.c.h.b16 %v706
        %v1162 = vunpack.c.l.b16 %v707
        %v1163 = vunpack.c.h.b16 %v707
        %v1164 = vunpack.c.l.b16 %v708
        %v1165 = vunpack.c.h.b16 %v708
        %v1166 = vunpack.c.l.b16 %v709
        %v1167 = vunpack.c.h.b16 %v709
        %v1168 = vunpack.c.l.b16 %v710
        %v1169 = vunpack.c.h.b16 %v710
        %v1170 = vunpack.c.l.b16 %v711
        %v1171 = vunpack.c.h.b16 %v711
        %v1172 = vunpack.c.l.b16 %v712
        %v1173 = vunpack.c.h.b16 %v712
        %v1174 = vunpack.c.l.b16 %v713
        %v1175 = vunpack.c.h.b16 %v713
        %v1176 = vunpack.c.l.b16 %v714
        %v1177 = vunpack.c.h.b16 %v714
        %v1178 = vunpack.c.l.b16 %v715
        %v1179 = vunpack.c.h.b16 %v715
        %v1180 = vunpack.c.l.b16 %v716
        %v1181 = vunpack.c.h.b16 %v716
        %v1182 = vunpack.c.l.b16 %v717
        %v1183 = vunpack.c.h.b16 %v717
        %v1184 = vunpack.c.l.b16 %v718
        %v1185 = vunpack.c.h.b16 %v718
        %v1186 = vunpack.c.l.b16 %v719
        %v1187 = vunpack.c.h.b16 %v719
        %v1188 = vunpack.c.l.b16 %v720
        %v1189 = vunpack.c.h.b16 %v720
        %v1190 = vunpack.c.l.b16 %v721
        %v1191 = vunpack.c.h.b16 %v721
        %v1192 = vunpack.c.l.b16 %v722
        %v1193 = vunpack.c.h.b16 %v722
        %v1194 = vunpack.c.l.b16 %v723
        %v1195 = vunpack.c.h.b16 %v723
        %v1196 = vunpack.c.l.b16 %v724
        %v1197 = vunpack.c.h.b16 %v724
        %v1198 = vunpack.c.l.b16 %v725
        %v1199 = vunpack.c.h.b16 %v725
        %v1200 = vunpack.c.l.b16 %v726
        %v1201 = vunpack.c.h.b16 %v726
        %v1202 = vunpack.c.l.b16 %v727
        %v1203 = vunpack.c.h.b16 %v727
        %v1204 = vunpack.c.l.b16 %v728
        %v1205 = vunpack.c.h.b16 %v728
        %v1206 = vunpack.c.l.b16 %v729
        %v1207 = vunpack.c.h.b16 %v729
        %v1208 = vunpack.c.l.b16 %v730
        %v1209 = vunpack.c.h.b16 %v730
        %v1210 = vunpack.c.l.b16 %v731
        %v1211 = vunpack.c.h.b16 %v731
        %v1212 = vunpack.c.l.b16 %v732
        %v1213 = vunpack.c.h.b16 %v732
        %v1214 = vunpack.c.l.b16 %v733
        %v1215 = vunpack.c.h.b16 %v733
        %v1216 = vunpack.c.l.b16 %v734
        %v1217 = vunpack.c.h.b16 %v734
        %v1218 = vunpack.c.l.b16 %v735
        %v1219 = vunpack.c.h.b16 %v735
        %v1220 = vunpack.c.l.b16 %v736
        %v1221 = vunpack.c.h.b16 %v736
        %v1222 = vunpack.c.l.b16 %v737
        %v1223 = vunpack.c.h.b16 %v737
        %v1224 = vunpack.c.l.b16 %v738
        %v1225 = vunpack.c.h.b16 %v738
        %v1226 = vunpack.c.l.b16 %v739
        %v1227 = vunpack.c.h.b16 %v739
        %v1228 = vunpack.c.l.b16 %v740
        %v1229 = vunpack.c.h.b16 %v740
        %v1230 = vunpack.c.l.b16 %v741
        %v1231 = vunpack.c.h.b16 %v741
        %v1232 = vunpack.c.l.b16 %v742
        %v1233 = vunpack.c.h.b16 %v742
        %v1234 = vunpack.c.l.b16 %v743
        %v1235 = vunpack.c.h.b16 %v743
        %v1236 = vunpack.c.l.b16 %v744
        %v1237 = vunpack.c.h.b16 %v744
        %v1238 = vunpack.c.l.b16 %v745
        %v1239 = vunpack.c.h.b16 %v745
        %v1240 = vunpack.c.l.b16 %v746
        %v1241 = vunpack.c.h.b16 %v746
        %v1242 = vunpack.c.l.b16 %v747
        %v1243 = vunpack.c.h.b16 %v747
        %v1244 = vunpack.c.l.b16 %v748
        %v1245 = vunpack.c.h.b16 %v748
        %v1246 = vunpack.c.l.b16 %v749
        %v1247 = vunpack.c.h.b16 %v749
        %v1248 = vunpack.c.l.b16 %v750
        %v1249 = vunpack.c.h.b16 %v750
        %v1250 = vunpack.c.l.b16 %v751
        %v1251 = vunpack.c.h.b16 %v751
        %v1252 = vunpack.c.l.b16 %v752
        %v1253 = vunpack.c.h.b16 %v752
        %v1254 = vunpack.c.l.b16 %v753
        %v1255 = vunpack.c.h.b16 %v753
        %v1256 = vunpack.c.l.b16 %v754
        %v1257 = vunpack.c.h.b16 %v754
        %v1258 = vunpack.c.l.b16 %v755
        %v1259 = vunpack.c.h.b16 %v755
        %v1260 = vunpack.c.l.b16 %v756
        %v1261 = vunpack.c.h.b16 %v756
        %v1262 = vunpack.c.l.b16 %v757
        %v1263 = vunpack.c.h.b16 %v757
        %v1264 = vunpack.c.l.b16 %v758
        %v1265 = vunpack.c.h.b16 %v758
        %v1266 = vunpack.c.l.b16 %v759
        %v1267 = vunpack.c.h.b16 %v759
        %v1268 = vunpack.c.l.b16 %v760
        %v1269 = vunpack.c.h.b16 %v760
        %v1270 = vunpack.c.l.b16 %v761
        %v1271 = vunpack.c.h.b16 %v761
        %v1272 = vunpack.c.l.b16 %v762
        %v1273 = vunpack.c.h.b16 %v762
        %v1274 = vunpack.c.l.b16 %v763
        %v1275 = vunpack.c.h.b16 %v763
        %v1276 = vunpack.c.l.b16 %v764
        %v1277 = vunpack.c.h.b16 %v764
        %v1278 = vunpack.c.l.b16 %v765
        %v1279 = vunpack.c.h.b16 %v765
        %v1280 = vunpack.c.l.b16 %v766
        %v1281 = vunpack.c.h.b16 %v766
        %v1282 = vunpack.c.l.b16 %v767
        %v1283 = vunpack.c.h.b16 %v767
        %v1284 = vunpack.c.l.b16 %v768
        %v1285 = vunpack.c.h.b16 %v768
        %v1286 = vunpack.c.l.b16 %v769
        %v1287 = vunpack.c.h.b16 %v769
        %v1288 = vunpack.c.l.b16 %v770
        %v1289 = vunpack.c.h.b16 %v770
        %v1290 = vunpack.c.l.b16 %v771
        %v1291 = vunpack.c.h.b16 %v771
        %v1292 = vunpack.c.l.b16 %v772
        %v1293 = vunpack.c.h.b16 %v772
        %v1294 = vunpack.c.l.b16 %v773
        %v1295 = vunpack.c.h.b16 %v773
        %v1296 = vpack.c.b16 %v986, %v976
        %v1297 = vpack.c.b16 %v987, %v977
        %v1298 = vpack.c.b16 %v988, %v978
        %v1299 = vpack.c.b16 %v989, %v979
        %v1300 = vpack.c.b16 %v990, %v980
        %v1301 = vpack.c.b16 %v991, %v981
        %v1302 = vpack.c.b16 %v992, %v982
        %v1303 = vpack.c.b16 %v993, %v983
        %v1304 = vpack.c.b16 %v994, %v984
        %v1305 = vpack.c.b16 %v995, %v985
        %v1306 = vpack.c.b16 %v1006, %v996
        %v1307 = vpack.c.b16 %v1007, %v997
        %v1308 = vpack.c.b16 %v1008, %v998
        %v1309 = vpack.c.b16 %v1009, %v999
        %v1310 = vpack.c.b16 %v1010, %v1000
        %v1311 = vpack.c.b16 %v1011, %v1001
        %v1312 = vpack.c.b16 %v1012, %v1002
        %v1313 = vpack.c.b16 %v1013, %v1003
        %v1314 = vpack.c.b16 %v1014, %v1004
        %v1315 = vpack.c.b16 %v1015, %v1005
        %v1316 = vpack.c.b16 %v1026, %v1016
        %v1317 = vpack.c.b16 %v1027, %v1017
        %v1318 = vpack.c.b16 %v1028, %v1018
        %v1319 = vpack.c.b16 %v1029, %v1019
        %v1320 = vpack.c.b16 %v1030, %v1020
        %v1321 = vpack.c.b16 %v1031, %v1021
        %v1322 = vpack.c.b16 %v1032, %v1022
        %v1323 = vpack.c.b16 %v1033, %v1023
        %v1324 = vpack.c.b16 %v1034, %v1024
        %v1325 = vpack.c.b16 %v1035, %v1025
        %v1326 = vpack.c.b16 %v1046, %v1036
        %v1327 = vpack.c.b16 %v1047, %v1037
        %v1328 = vpack.c.b16 %v1048, %v1038
        %v1329 = vpack.c.b16 %v1049, %v1039
        %v1330 = vpack.c.b16 %v1050, %v1040
        %v1331 = vpack.c.b16 %v1051, %v1041
        %v1332 = vpack.c.b16 %v1052, %v1042
        %v1333 = vpack.c.b16 %v1053, %v1043
        %v1334 = vpack.c.b16 %v1054, %v1044
        %v1335 = vpack.c.b16 %v1055, %v1045
        %v1336 = vpack.c.b16 %v1066, %v1056
        %v1337 = vpack.c.b16 %v1067, %v1057
        %v1338 = vpack.c.b16 %v1068, %v1058
        %v1339 = vpack.c.b16 %v1069, %v1059
        %v1340 = vpack.c.b16 %v1070, %v1060
        %v1341 = vpack.c.b16 %v1071, %v1061
        %v1342 = vpack.c.b16 %v1072, %v1062
        %v1343 = vpack.c.b16 %v1073, %v1063
        %v1344 = vpack.c.b16 %v1074, %v1064
        %v1345 = vpack.c.b16 %v1075, %v1065
        %v1346 = vpack.c.b16 %v1086, %v1076
        %v1347 = vpack.c.b16 %v1087, %v1077
        %v1348 = vpack.c.b16 %v1088, %v1078
        %v1349 = vpack.c.b16 %v1089, %v1079
        %v1350 = vpack.c.b16 %v1090, %v1080
        %v1351 = vpack.c.b16 %v1091, %v1081
        %v1352 = vpack.c.b16 %v1092, %v1082
        %v1353 = vpack.c.b16 %v1093, %v1083
        %v1354 = vpack.c.b16 %v1094, %v1084
        %v1355 = vpack.c.b16 %v1095, %v1085
        %v1356 = vpack.c.b16 %v1106, %v1096
        %v1357 = vpack.c.b16 %v1107, %v1097
        %v1358 = vpack.c.b16 %v1108, %v1098
        %v1359 = vpack.c.b16 %v1109, %v1099
        %v1360 = vpack.c.b16 %v1110, %v1100
        %v1361 = vpack.c.b16 %v1111, %v1101
        %v1362 = vpack.c.b16 %v1112, %v1102
        %v1363 = vpack.c.b16 %v1113, %v1103
        %v1364 = vpack.c.b16 %v1114, %v1104
        %v1365 = vpack.c.b16 %v1115, %v1105
        %v1366 = vpack.c.b16 %v1126, %v1116
        %v1367 = vpack.c.b16 %v1127, %v1117
        %v1368 = vpack.c.b16 %v1128, %v1118
        %v1369 = vpack.c.b16 %v1129, %v1119
        %v1370 = vpack.c.b16 %v1130, %v1120
        %v1371 = vpack.c.b16 %v1131, %v1121
        %v1372 = vpack.c.b16 %v1132, %v1122
        %v1373 = vpack.c.b16 %v1133, %v1123
        %v1374 = vpack.c.b16 %v1134, %v1124
        %v1375 = vpack.c.b16 %v1135, %v1125
        %v1376 = vpack.c.b16 %v1146, %v1136
        %v1377 = vpack.c.b16 %v1147, %v1137
        %v1378 = vpack.c.b16 %v1148, %v1138
        %v1379 = vpack.c.b16 %v1149, %v1139
        %v1380 = vpack.c.b16 %v1150, %v1140
        %v1381 = vpack.c.b16 %v1151, %v1141
        %v1382 = vpack.c.b16 %v1152, %v1142
        %v1383 = vpack.c.b16 %v1153, %v1143
        %v1384 = vpack.c.b16 %v1154, %v1144
        %v1385 = vpack.c.b16 %v1155, %v1145
        %v1386 = vpack.c.b16 %v1166, %v1156
        %v1387 = vpack.c.b16 %v1167, %v1157
        %v1388 = vpack.c.b16 %v1168, %v1158
        %v1389 = vpack.c.b16 %v1169, %v1159
        %v1390 = vpack.c.b16 %v1170, %v1160
        %v1391 = vpack.c.b16 %v1171, %v1161
        %v1392 = vpack.c.b16 %v1172, %v1162
        %v1393 = vpack.c.b16 %v1173, %v1163
        %v1394 = vpack.c.b16 %v1174, %v1164
        %v1395 = vpack.c.b16 %v1175, %v1165
        %v1396 = vpack.c.b16 %v1186, %v1176
        %v1397 = vpack.c.b16 %v1187, %v1177
        %v1398 = vpack.c.b16 %v1188, %v1178
        %v1399 = vpack.c.b16 %v1189, %v1179
        %v1400 = vpack.c.b16 %v1190, %v1180
        %v1401 = vpack.c.b16 %v1191, %v1181
        %v1402 = vpack.c.b16 %v1192, %v1182
        %v1403 = vpack.c.b16 %v1193, %v1183
        %v1404 = vpack.c.b16 %v1194, %v1184
        %v1405 = vpack.c.b16 %v1195, %v1185
        %v1406 = vpack.c.b16 %v1206, %v1196
        %v1407 = vpack.c.b16 %v1207, %v1197
        %v1408 = vpack.c.b16 %v1208, %v1198
        %v1409 = vpack.c.b16 %v1209, %v1199
        %v1410 = vpack.c.b16 %v1210, %v1200
        %v1411 = vpack.c.b16 %v1211, %v1201
        %v1412 = vpack.c.b16 %v1212, %v1202
        %v1413 = vpack.c.b16 %v1213, %v1203
        %v1414 = vpack.c.b16 %v1214, %v1204
        %v1415 = vpack.c.b16 %v1215, %v1205
        %v1416 = vpack.c.b16 %v1226, %v1216
        %v1417 = vpack.c.b16 %v1227, %v1217
        %v1418 = vpack.c.b16 %v1228, %v1218
        %v1419 = vpack.c.b16 %v1229, %v1219
        %v1420 = vpack.c.b16 %v1230, %v1220
        %v1421 = vpack.c.b16 %v1231, %v1221
        %v1422 = vpack.c.b16 %v1232, %v1222
        %v1423 = vpack.c.b16 %v1233, %v1223
        %v1424 = vpack.c.b16 %v1234, %v1224
        %v1425 = vpack.c.b16 %v1235, %v1225
        %v1426 = vpack.c.b16 %v1246, %v1236
        %v1427 = vpack.c.b16 %v1247, %v1237
        %v1428 = vpack.c.b16 %v1248, %v1238
        %v1429 = vpack.c.b16 %v1249, %v1239
        %v1430 = vpack.c.b16 %v1250, %v1240
        %v1431 = vpack.c.b16 %v1251, %v1241
        %v1432 = vpack.c.b16 %v1252, %v1242
        %v1433 = vpack.c.b16 %v1253, %v1243
        %v1434 = vpack.c.b16 %v1254, %v1244
        %v1435 = vpack.c.b16 %v1255, %v1245
        %v1436 = vpack.c.b16 %v1266, %v1256
        %v1437 = vpack.c.b16 %v1267, %v1257
        %v1438 = vpack.c.b16 %v1268, %v1258
        %v1439 = vpack.c.b16 %v1269, %v1259
        %v1440 = vpack.c.b16 %v1270, %v1260
        %v1441 = vpack.c.b16 %v1271, %v1261
        %v1442 = vpack.c.b16 %v1272, %v1262
        %v1443 = vpack.c.b16 %v1273, %v1263
        %v1444 = vpack.c.b16 %v1274, %v1264
        %v1445 = vpack.c.b16 %v1275, %v1265
        %v1446 = vpack.c.b16 %v1286, %v1276
        %v1447 = vpack.c.b16 %v1287, %v1277
        %v1448 = vpack.c.b16 %v1288, %v1278
        %v1449 = vpack.c.b16 %v1289, %v1279
        %v1450 = vpack.c.b16 %v1290, %v1280
        %v1451 = vpack.c.b16 %v1291, %v1281
        %v1452 = vpack.c.b16 %v1292, %v1282
        %v1453 = vpack.c.b16 %v1293, %v1283
        %v1454 = vpack.c.b16 %v1294, %v1284
        %v1455 = vpack.c.b16 %v1295, %v1285
        %1616 = vmatprep.subr.bf16.mxu0 %v1297
        %1617 = vmatpush1.bf16.msra.mxu0 %v1296
        %1618 = vmatprep.subr.bf16.mxu0 %v1307
        %1619 = vmatpush1.bf16.msra.mxu0 %v1306
        %1620 = vmatprep.subr.bf16.mxu0 %v1317
        %1621 = vmatpush1.bf16.msra.mxu0 %v1316
        %1622 = vmatprep.subr.bf16.mxu0 %v1327
        %1623 = vmatpush1.bf16.msra.mxu0 %v1326
        %1624 = vmatprep.subr.bf16.mxu0 %v1337
        %1625 = vmatpush1.bf16.msra.mxu0 %v1336
        %1626 = vmatprep.subr.bf16.mxu0 %v1347
        %1627 = vmatpush1.bf16.msra.mxu0 %v1346
        %1628 = vmatprep.subr.bf16.mxu0 %v1357
        %1629 = vmatpush1.bf16.msra.mxu0 %v1356
        %1630 = vmatprep.subr.bf16.mxu0 %v1367
        %1631 = vmatpush1.bf16.msra.mxu0 %v1366
        %1632 = vmatprep.subr.bf16.mxu0 %v1377
        %1633 = vmatpush1.bf16.msra.mxu0 %v1376
        %1634 = vmatprep.subr.bf16.mxu0 %v1387
        %1635 = vmatpush1.bf16.msra.mxu0 %v1386
        %1636 = vmatprep.subr.bf16.mxu0 %v1397
        %1637 = vmatpush1.bf16.msra.mxu0 %v1396
        %1638 = vmatprep.subr.bf16.mxu0 %v1407
        %1639 = vmatpush1.bf16.msra.mxu0 %v1406
        %1640 = vmatprep.subr.bf16.mxu0 %v1417
        %1641 = vmatpush1.bf16.msra.mxu0 %v1416
        %1642 = vmatprep.subr.bf16.mxu0 %v1427
        %1643 = vmatpush1.bf16.msra.mxu0 %v1426
        %1644 = vmatprep.subr.bf16.mxu0 %v1437
        %1645 = vmatpush1.bf16.msra.mxu0 %v1436
        %1646 = vmatprep.subr.bf16.mxu0 %v1447
        %1647 = vmatpush1.bf16.msra.mxu0 %v1446
        %1648 = vmatprep.mubr.bf16.mxu0 %v775
        %1649 = vmatmul.mubr.bf16.gmra.mrb[0].mxu0 %v774
        %v1650 = vpop.f32.mrb[0].mxu0
        %v1651 = vadd.f32 %v779, %v1650
        %v1652 = vpop.f32.mrb[0].mxu0
        %v1653 = vadd.f32 %v783, %v1652
        %v1654 = vpop.f32.mrb[0].mxu0
        %v1655 = vadd.f32 %v779, %v1654
        %v1656 = vpop.f32.mrb[0].mxu0
        %v1657 = vadd.f32 %v783, %v1656
        %1658 = vdwg.mxu0
        %1659 = vmatprep.subr.bf16.mxu0 %v1299
        %1660 = vmatpush1.bf16.msra.mxu0 %v1298
        %1661 = vmatprep.subr.bf16.mxu0 %v1309
        %1662 = vmatpush1.bf16.msra.mxu0 %v1308
        %1663 = vmatprep.subr.bf16.mxu0 %v1319
        %1664 = vmatpush1.bf16.msra.mxu0 %v1318
        %1665 = vmatprep.subr.bf16.mxu0 %v1329
        %1666 = vmatpush1.bf16.msra.mxu0 %v1328
        %1667 = vmatprep.subr.bf16.mxu0 %v1339
        %1668 = vmatpush1.bf16.msra.mxu0 %v1338
        %1669 = vmatprep.subr.bf16.mxu0 %v1349
        %1670 = vmatpush1.bf16.msra.mxu0 %v1348
        %1671 = vmatprep.subr.bf16.mxu0 %v1359
        %1672 = vmatpush1.bf16.msra.mxu0 %v1358
        %1673 = vmatprep.subr.bf16.mxu0 %v1369
        %1674 = vmatpush1.bf16.msra.mxu0 %v1368
        %1675 = vmatprep.subr.bf16.mxu0 %v1379
        %1676 = vmatpush1.bf16.msra.mxu0 %v1378
        %1677 = vmatprep.subr.bf16.mxu0 %v1389
        %1678 = vmatpush1.bf16.msra.mxu0 %v1388
        %1679 = vmatprep.subr.bf16.mxu0 %v1399
        %1680 = vmatpush1.bf16.msra.mxu0 %v1398
        %1681 = vmatprep.subr.bf16.mxu0 %v1409
        %1682 = vmatpush1.bf16.msra.mxu0 %v1408
        %1683 = vmatprep.subr.bf16.mxu0 %v1419
        %1684 = vmatpush1.bf16.msra.mxu0 %v1418
        %1685 = vmatprep.subr.bf16.mxu0 %v1429
        %1686 = vmatpush1.bf16.msra.mxu0 %v1428
        %1687 = vmatprep.subr.bf16.mxu0 %v1439
        %1688 = vmatpush1.bf16.msra.mxu0 %v1438
        %1689 = vmatprep.subr.bf16.mxu0 %v1449
        %1690 = vmatpush1.bf16.msra.mxu0 %v1448
        %1691 = vmatprep.mubr.bf16.mxu0 %v775
        %1692 = vmatmul.mubr.bf16.gmra.mrb[0].mxu0 %v774
        %v1693 = vpop.f32.mrb[0].mxu0
        %v1694 = vadd.f32 %v787, %v1693
        %v1695 = vpop.f32.mrb[0].mxu0
        %v1696 = vadd.f32 %v791, %v1695
        %v1697 = vpop.f32.mrb[0].mxu0
        %v1698 = vadd.f32 %v787, %v1697
        %v1699 = vpop.f32.mrb[0].mxu0
        %v1700 = vadd.f32 %v791, %v1699
        %1701 = vdwg.mxu0
        %1702 = vmatprep.subr.bf16.mxu0 %v1301
        %1703 = vmatpush1.bf16.msra.mxu0 %v1300
        %1704 = vmatprep.subr.bf16.mxu0 %v1311
        %1705 = vmatpush1.bf16.msra.mxu0 %v1310
        %1706 = vmatprep.subr.bf16.mxu0 %v1321
        %1707 = vmatpush1.bf16.msra.mxu0 %v1320
        %1708 = vmatprep.subr.bf16.mxu0 %v1331
        %1709 = vmatpush1.bf16.msra.mxu0 %v1330
        %1710 = vmatprep.subr.bf16.mxu0 %v1341
        %1711 = vmatpush1.bf16.msra.mxu0 %v1340
        %1712 = vmatprep.subr.bf16.mxu0 %v1351
        %1713 = vmatpush1.bf16.msra.mxu0 %v1350
        %1714 = vmatprep.subr.bf16.mxu0 %v1361
        %1715 = vmatpush1.bf16.msra.mxu0 %v1360
        %1716 = vmatprep.subr.bf16.mxu0 %v1371
        %1717 = vmatpush1.bf16.msra.mxu0 %v1370
        %1718 = vmatprep.subr.bf16.mxu0 %v1381
        %1719 = vmatpush1.bf16.msra.mxu0 %v1380
        %1720 = vmatprep.subr.bf16.mxu0 %v1391
        %1721 = vmatpush1.bf16.msra.mxu0 %v1390
        %1722 = vmatprep.subr.bf16.mxu0 %v1401
        %1723 = vmatpush1.bf16.msra.mxu0 %v1400
        %1724 = vmatprep.subr.bf16.mxu0 %v1411
        %1725 = vmatpush1.bf16.msra.mxu0 %v1410
        %1726 = vmatprep.subr.bf16.mxu0 %v1421
        %1727 = vmatpush1.bf16.msra.mxu0 %v1420
        %1728 = vmatprep.subr.bf16.mxu0 %v1431
        %1729 = vmatpush1.bf16.msra.mxu0 %v1430
        %1730 = vmatprep.subr.bf16.mxu0 %v1441
        %1731 = vmatpush1.bf16.msra.mxu0 %v1440
        %1732 = vmatprep.subr.bf16.mxu0 %v1451
        %1733 = vmatpush1.bf16.msra.mxu0 %v1450
        %1734 = vmatprep.mubr.bf16.mxu0 %v775
        %1735 = vmatmul.mubr.bf16.gmra.mrb[0].mxu0 %v774
        %v1736 = vpop.f32.mrb[0].mxu0
        %v1737 = vadd.f32 %v795, %v1736
        %v1738 = vpop.f32.mrb[0].mxu0
        %v1739 = vadd.f32 %v799, %v1738
        %v1740 = vpop.f32.mrb[0].mxu0
        %v1741 = vadd.f32 %v795, %v1740
        %v1742 = vpop.f32.mrb[0].mxu0
        %v1743 = vadd.f32 %v799, %v1742
        %1744 = vdwg.mxu0
        %1745 = vmatprep.subr.bf16.mxu0 %v1303
        %1746 = vmatpush1.bf16.msra.mxu0 %v1302
        %1747 = vmatprep.subr.bf16.mxu0 %v1313
        %1748 = vmatpush1.bf16.msra.mxu0 %v1312
        %1749 = vmatprep.subr.bf16.mxu0 %v1323
        %1750 = vmatpush1.bf16.msra.mxu0 %v1322
        %1751 = vmatprep.subr.bf16.mxu0 %v1333
        %1752 = vmatpush1.bf16.msra.mxu0 %v1332
        %1753 = vmatprep.subr.bf16.mxu0 %v1343
        %1754 = vmatpush1.bf16.msra.mxu0 %v1342
        %1755 = vmatprep.subr.bf16.mxu0 %v1353
        %1756 = vmatpush1.bf16.msra.mxu0 %v1352
        %1757 = vmatprep.subr.bf16.mxu0 %v1363
        %1758 = vmatpush1.bf16.msra.mxu0 %v1362
        %1759 = vmatprep.subr.bf16.mxu0 %v1373
        %1760 = vmatpush1.bf16.msra.mxu0 %v1372
        %1761 = vmatprep.subr.bf16.mxu0 %v1383
        %1762 = vmatpush1.bf16.msra.mxu0 %v1382
        %1763 = vmatprep.subr.bf16.mxu0 %v1393
        %1764 = vmatpush1.bf16.msra.mxu0 %v1392
        %1765 = vmatprep.subr.bf16.mxu0 %v1403
        %1766 = vmatpush1.bf16.msra.mxu0 %v1402
        %1767 = vmatprep.subr.bf16.mxu0 %v1413
        %1768 = vmatpush1.bf16.msra.mxu0 %v1412
        %1769 = vmatprep.subr.bf16.mxu0 %v1423
        %1770 = vmatpush1.bf16.msra.mxu0 %v1422
        %1771 = vmatprep.subr.bf16.mxu0 %v1433
        %1772 = vmatpush1.bf16.msra.mxu0 %v1432
        %1773 = vmatprep.subr.bf16.mxu0 %v1443
        %1774 = vmatpush1.bf16.msra.mxu0 %v1442
        %1775 = vmatprep.subr.bf16.mxu0 %v1453
        %1776 = vmatpush1.bf16.msra.mxu0 %v1452
        %1777 = vmatprep.mubr.bf16.mxu0 %v775
        %1778 = vmatmul.mubr.bf16.gmra.mrb[0].mxu0 %v774
        %v1779 = vpop.f32.mrb[0].mxu0
        %v1780 = vadd.f32 %v803, %v1779
        %v1781 = vpop.f32.mrb[0].mxu0
        %v1782 = vadd.f32 %v807, %v1781
        %v1783 = vpop.f32.mrb[0].mxu0
        %v1784 = vadd.f32 %v803, %v1783
        %v1785 = vpop.f32.mrb[0].mxu0
        %v1786 = vadd.f32 %v807, %v1785
        %1787 = vdwg.mxu0
        %1788 = vmatprep.subr.bf16.mxu0 %v1305
        %1789 = vmatpush1.bf16.msra.mxu0 %v1304
        %1790 = vmatprep.subr.bf16.mxu0 %v1315
        %1791 = vmatpush1.bf16.msra.mxu0 %v1314
        %1792 = vmatprep.subr.bf16.mxu0 %v1325
        %1793 = vmatpush1.bf16.msra.mxu0 %v1324
        %1794 = vmatprep.subr.bf16.mxu0 %v1335
        %1795 = vmatpush1.bf16.msra.mxu0 %v1334
        %1796 = vmatprep.subr.bf16.mxu0 %v1345
        %1797 = vmatpush1.bf16.msra.mxu0 %v1344
        %1798 = vmatprep.subr.bf16.mxu0 %v1355
        %1799 = vmatpush1.bf16.msra.mxu0 %v1354
        %1800 = vmatprep.subr.bf16.mxu0 %v1365
        %1801 = vmatpush1.bf16.msra.mxu0 %v1364
        %1802 = vmatprep.subr.bf16.mxu0 %v1375
        %1803 = vmatpush1.bf16.msra.mxu0 %v1374
        %1804 = vmatprep.subr.bf16.mxu0 %v1385
        %1805 = vmatpush1.bf16.msra.mxu0 %v1384
        %1806 = vmatprep.subr.bf16.mxu0 %v1395
        %1807 = vmatpush1.bf16.msra.mxu0 %v1394
        %1808 = vmatprep.subr.bf16.mxu0 %v1405
        %1809 = vmatpush1.bf16.msra.mxu0 %v1404
        %1810 = vmatprep.subr.bf16.mxu0 %v1415
        %1811 = vmatpush1.bf16.msra.mxu0 %v1414
        %1812 = vmatprep.subr.bf16.mxu0 %v1425
        %1813 = vmatpush1.bf16.msra.mxu0 %v1424
        %1814 = vmatprep.subr.bf16.mxu0 %v1435
        %1815 = vmatpush1.bf16.msra.mxu0 %v1434
        %1816 = vmatprep.subr.bf16.mxu0 %v1445
        %1817 = vmatpush1.bf16.msra.mxu0 %v1444
        %1818 = vmatprep.subr.bf16.mxu0 %v1455
        %1819 = vmatpush1.bf16.msra.mxu0 %v1454
        %1820 = vmatprep.mubr.bf16.mxu0 %v775
        %1821 = vmatmul.mubr.bf16.gmra.mrb[0].mxu0 %v774
        %v1822 = vpop.f32.mrb[0].mxu0
        %v1823 = vadd.f32 %v811, %v1822
        %v1824 = vpop.f32.mrb[0].mxu0
        %v1825 = vadd.f32 %v815, %v1824
        %v1826 = vpop.f32.mrb[0].mxu0
        %v1827 = vadd.f32 %v811, %v1826
        %v1828 = vpop.f32.mrb[0].mxu0
        %v1829 = vadd.f32 %v815, %v1828
        %1830 = vdwg.mxu0
        %v1831 = vmax.f32 %v1651, 0.0
        %v1832 = vmax.f32 %v1653, 0.0
        %v1833 = vmax.f32 %v1694, 0.0
        %v1834 = vmax.f32 %v1696, 0.0
        %v1835 = vmax.f32 %v1737, 0.0
        %v1836 = vmax.f32 %v1739, 0.0
        %v1837 = vmax.f32 %v1780, 0.0
        %v1838 = vmax.f32 %v1782, 0.0
        %v1839 = vmax.f32 %v1823, 0.0
        %v1840 = vmax.f32 %v1825, 0.0
        %v1841 = vmax.f32 %v1655, 0.0
        %v1842 = vmax.f32 %v1657, 0.0
        %v1843 = vmax.f32 %v1698, 0.0
        %v1844 = vmax.f32 %v1700, 0.0
        %v1845 = vmax.f32 %v1741, 0.0
        %v1846 = vmax.f32 %v1743, 0.0
        %v1847 = vmax.f32 %v1784, 0.0
        %v1848 = vmax.f32 %v1786, 0.0
        %v1849 = vmax.f32 %v1827, 0.0
        %v1850 = vmax.f32 %v1829, 0.0
        %v1851 = vrot.slane %v1831, 4
        %v1852 = vadd.f32 %v1831, %v1851
        %v1853 = vrot.slane %v1852, 2
        %v1854 = vadd.f32 %v1852, %v1853
        %v1855 = vrot.slane %v1854, 1
        %v1856 = vadd.f32 %v1854, %v1855
        %v1857 = vrot.slane %v1832, 4
        %v1858 = vadd.f32 %v1832, %v1857
        %v1859 = vrot.slane %v1858, 2
        %v1860 = vadd.f32 %v1858, %v1859
        %v1861 = vrot.slane %v1860, 1
        %v1862 = vadd.f32 %v1860, %v1861
        %v1863 = vrot.slane %v1833, 4
        %v1864 = vadd.f32 %v1833, %v1863
        %v1865 = vrot.slane %v1864, 2
        %v1866 = vadd.f32 %v1864, %v1865
        %v1867 = vrot.slane %v1866, 1
        %v1868 = vadd.f32 %v1866, %v1867
        %v1869 = vrot.slane %v1834, 4
        %v1870 = vadd.f32 %v1834, %v1869
        %v1871 = vrot.slane %v1870, 2
        %v1872 = vadd.f32 %v1870, %v1871
        %v1873 = vrot.slane %v1872, 1
        %v1874 = vadd.f32 %v1872, %v1873
        %v1875 = vrot.slane %v1835, 4
        %v1876 = vadd.f32 %v1835, %v1875
        %v1877 = vrot.slane %v1876, 2
        %v1878 = vadd.f32 %v1876, %v1877
        %v1879 = vrot.slane %v1878, 1
        %v1880 = vadd.f32 %v1878, %v1879
        %v1881 = vrot.slane %v1836, 4
        %v1882 = vadd.f32 %v1836, %v1881
        %v1883 = vrot.slane %v1882, 2
        %v1884 = vadd.f32 %v1882, %v1883
        %v1885 = vrot.slane %v1884, 1
        %v1886 = vadd.f32 %v1884, %v1885
        %v1887 = vrot.slane %v1837, 4
        %v1888 = vadd.f32 %v1837, %v1887
        %v1889 = vrot.slane %v1888, 2
        %v1890 = vadd.f32 %v1888, %v1889
        %v1891 = vrot.slane %v1890, 1
        %v1892 = vadd.f32 %v1890, %v1891
        %v1893 = vrot.slane %v1838, 4
        %v1894 = vadd.f32 %v1838, %v1893
        %v1895 = vrot.slane %v1894, 2
        %v1896 = vadd.f32 %v1894, %v1895
        %v1897 = vrot.slane %v1896, 1
        %v1898 = vadd.f32 %v1896, %v1897
        %v1899 = vrot.slane %v1839, 4
        %v1900 = vadd.f32 %v1839, %v1899
        %v1901 = vrot.slane %v1900, 2
        %v1902 = vadd.f32 %v1900, %v1901
        %v1903 = vrot.slane %v1902, 1
        %v1904 = vadd.f32 %v1902, %v1903
        %v1905 = vrot.slane %v1840, 4
        %v1906 = vadd.f32 %v1840, %v1905
        %v1907 = vrot.slane %v1906, 2
        %v1908 = vadd.f32 %v1906, %v1907
        %v1909 = vrot.slane %v1908, 1
        %v1910 = vadd.f32 %v1908, %v1909
        %v1911 = vrot.slane %v1841, 4
        %v1912 = vadd.f32 %v1841, %v1911
        %v1913 = vrot.slane %v1912, 2
        %v1914 = vadd.f32 %v1912, %v1913
        %v1915 = vrot.slane %v1914, 1
        %v1916 = vadd.f32 %v1914, %v1915
        %v1917 = vrot.slane %v1842, 4
        %v1918 = vadd.f32 %v1842, %v1917
        %v1919 = vrot.slane %v1918, 2
        %v1920 = vadd.f32 %v1918, %v1919
        %v1921 = vrot.slane %v1920, 1
        %v1922 = vadd.f32 %v1920, %v1921
        %v1923 = vrot.slane %v1843, 4
        %v1924 = vadd.f32 %v1843, %v1923
        %v1925 = vrot.slane %v1924, 2
        %v1926 = vadd.f32 %v1924, %v1925
        %v1927 = vrot.slane %v1926, 1
        %v1928 = vadd.f32 %v1926, %v1927
        %v1929 = vrot.slane %v1844, 4
        %v1930 = vadd.f32 %v1844, %v1929
        %v1931 = vrot.slane %v1930, 2
        %v1932 = vadd.f32 %v1930, %v1931
        %v1933 = vrot.slane %v1932, 1
        %v1934 = vadd.f32 %v1932, %v1933
        %v1935 = vrot.slane %v1845, 4
        %v1936 = vadd.f32 %v1845, %v1935
        %v1937 = vrot.slane %v1936, 2
        %v1938 = vadd.f32 %v1936, %v1937
        %v1939 = vrot.slane %v1938, 1
        %v1940 = vadd.f32 %v1938, %v1939
        %v1941 = vrot.slane %v1846, 4
        %v1942 = vadd.f32 %v1846, %v1941
        %v1943 = vrot.slane %v1942, 2
        %v1944 = vadd.f32 %v1942, %v1943
        %v1945 = vrot.slane %v1944, 1
        %v1946 = vadd.f32 %v1944, %v1945
        %v1947 = vrot.slane %v1847, 4
        %v1948 = vadd.f32 %v1847, %v1947
        %v1949 = vrot.slane %v1948, 2
        %v1950 = vadd.f32 %v1948, %v1949
        %v1951 = vrot.slane %v1950, 1
        %v1952 = vadd.f32 %v1950, %v1951
        %v1953 = vrot.slane %v1848, 4
        %v1954 = vadd.f32 %v1848, %v1953
        %v1955 = vrot.slane %v1954, 2
        %v1956 = vadd.f32 %v1954, %v1955
        %v1957 = vrot.slane %v1956, 1
        %v1958 = vadd.f32 %v1956, %v1957
        %v1959 = vrot.slane %v1849, 4
        %v1960 = vadd.f32 %v1849, %v1959
        %v1961 = vrot.slane %v1960, 2
        %v1962 = vadd.f32 %v1960, %v1961
        %v1963 = vrot.slane %v1962, 1
        %v1964 = vadd.f32 %v1962, %v1963
        %v1965 = vrot.slane %v1850, 4
        %v1966 = vadd.f32 %v1850, %v1965
        %v1967 = vrot.slane %v1966, 2
        %v1968 = vadd.f32 %v1966, %v1967
        %v1969 = vrot.slane %v1968, 1
        %v1970 = vadd.f32 %v1968, %v1969
        %v1971 = vmul.f32 %v1856, %v490
        %v1972 = vmul.f32 %v1862, %v490
        %v1973 = vmul.f32 %v1868, %v490
        %v1974 = vmul.f32 %v1874, %v490
        %v1975 = vmul.f32 %v1880, %v490
        %v1976 = vmul.f32 %v1886, %v490
        %v1977 = vmul.f32 %v1892, %v490
        %v1978 = vmul.f32 %v1898, %v490
        %v1979 = vmul.f32 %v1904, %v490
        %v1980 = vmul.f32 %v1910, %v490
        %v1981 = vmul.f32 %v1916, %v490
        %v1982 = vmul.f32 %v1922, %v490
        %v1983 = vmul.f32 %v1928, %v490
        %v1984 = vmul.f32 %v1934, %v490
        %v1985 = vmul.f32 %v1940, %v490
        %v1986 = vmul.f32 %v1946, %v490
        %v1987 = vmul.f32 %v1952, %v490
        %v1988 = vmul.f32 %v1958, %v490
        %v1989 = vmul.f32 %v1964, %v490
        %v1990 = vmul.f32 %v1970, %v490
        %v1991 = vsub.f32 %v1831, %v1971
        %v1992 = vsub.f32 %v1832, %v1972
        %v1993 = vsub.f32 %v1833, %v1973
        %v1994 = vsub.f32 %v1834, %v1974
        %v1995 = vsub.f32 %v1835, %v1975
        %v1996 = vsub.f32 %v1836, %v1976
        %v1997 = vsub.f32 %v1837, %v1977
        %v1998 = vsub.f32 %v1838, %v1978
        %v1999 = vsub.f32 %v1839, %v1979
        %v2000 = vsub.f32 %v1840, %v1980
        %v2001 = vsub.f32 %v1841, %v1981
        %v2002 = vsub.f32 %v1842, %v1982
        %v2003 = vsub.f32 %v1843, %v1983
        %v2004 = vsub.f32 %v1844, %v1984
        %v2005 = vsub.f32 %v1845, %v1985
        %v2006 = vsub.f32 %v1846, %v1986
        %v2007 = vsub.f32 %v1847, %v1987
        %v2008 = vsub.f32 %v1848, %v1988
        %v2009 = vsub.f32 %v1849, %v1989
        %v2010 = vsub.f32 %v1850, %v1990
        %v2011 = vmul.f32 %v1991, %v1991
        %v2012 = vmul.f32 %v1992, %v1992
        %v2013 = vmul.f32 %v1993, %v1993
        %v2014 = vmul.f32 %v1994, %v1994
        %v2015 = vmul.f32 %v1995, %v1995
        %v2016 = vmul.f32 %v1996, %v1996
        %v2017 = vmul.f32 %v1997, %v1997
        %v2018 = vmul.f32 %v1998, %v1998
        %v2019 = vmul.f32 %v1999, %v1999
        %v2020 = vmul.f32 %v2000, %v2000
        %v2021 = vmul.f32 %v2001, %v2001
        %v2022 = vmul.f32 %v2002, %v2002
        %v2023 = vmul.f32 %v2003, %v2003
        %v2024 = vmul.f32 %v2004, %v2004
        %v2025 = vmul.f32 %v2005, %v2005
        %v2026 = vmul.f32 %v2006, %v2006
        %v2027 = vmul.f32 %v2007, %v2007
        %v2028 = vmul.f32 %v2008, %v2008
        %v2029 = vmul.f32 %v2009, %v2009
        %v2030 = vmul.f32 %v2010, %v2010
        %v2031 = vrot.slane %v2011, 4
        %v2032 = vadd.f32 %v2011, %v2031
        %v2033 = vrot.slane %v2032, 2
        %v2034 = vadd.f32 %v2032, %v2033
        %v2035 = vrot.slane %v2034, 1
        %v2036 = vadd.f32 %v2034, %v2035
        %v2037 = vrot.slane %v2012, 4
        %v2038 = vadd.f32 %v2012, %v2037
        %v2039 = vrot.slane %v2038, 2
        %v2040 = vadd.f32 %v2038, %v2039
        %v2041 = vrot.slane %v2040, 1
        %v2042 = vadd.f32 %v2040, %v2041
        %v2043 = vrot.slane %v2013, 4
        %v2044 = vadd.f32 %v2013, %v2043
        %v2045 = vrot.slane %v2044, 2
        %v2046 = vadd.f32 %v2044, %v2045
        %v2047 = vrot.slane %v2046, 1
        %v2048 = vadd.f32 %v2046, %v2047
        %v2049 = vrot.slane %v2014, 4
        %v2050 = vadd.f32 %v2014, %v2049
        %v2051 = vrot.slane %v2050, 2
        %v2052 = vadd.f32 %v2050, %v2051
        %v2053 = vrot.slane %v2052, 1
        %v2054 = vadd.f32 %v2052, %v2053
        %v2055 = vrot.slane %v2015, 4
        %v2056 = vadd.f32 %v2015, %v2055
        %v2057 = vrot.slane %v2056, 2
        %v2058 = vadd.f32 %v2056, %v2057
        %v2059 = vrot.slane %v2058, 1
        %v2060 = vadd.f32 %v2058, %v2059
        %v2061 = vrot.slane %v2016, 4
        %v2062 = vadd.f32 %v2016, %v2061
        %v2063 = vrot.slane %v2062, 2
        %v2064 = vadd.f32 %v2062, %v2063
        %v2065 = vrot.slane %v2064, 1
        %v2066 = vadd.f32 %v2064, %v2065
        %v2067 = vrot.slane %v2017, 4
        %v2068 = vadd.f32 %v2017, %v2067
        %v2069 = vrot.slane %v2068, 2
        %v2070 = vadd.f32 %v2068, %v2069
        %v2071 = vrot.slane %v2070, 1
        %v2072 = vadd.f32 %v2070, %v2071
        %v2073 = vrot.slane %v2018, 4
        %v2074 = vadd.f32 %v2018, %v2073
        %v2075 = vrot.slane %v2074, 2
        %v2076 = vadd.f32 %v2074, %v2075
        %v2077 = vrot.slane %v2076, 1
        %v2078 = vadd.f32 %v2076, %v2077
        %v2079 = vrot.slane %v2019, 4
        %v2080 = vadd.f32 %v2019, %v2079
        %v2081 = vrot.slane %v2080, 2
        %v2082 = vadd.f32 %v2080, %v2081
        %v2083 = vrot.slane %v2082, 1
        %v2084 = vadd.f32 %v2082, %v2083
        %v2085 = vrot.slane %v2020, 4
        %v2086 = vadd.f32 %v2020, %v2085
        %v2087 = vrot.slane %v2086, 2
        %v2088 = vadd.f32 %v2086, %v2087
        %v2089 = vrot.slane %v2088, 1
        %v2090 = vadd.f32 %v2088, %v2089
        %v2091 = vrot.slane %v2021, 4
        %v2092 = vadd.f32 %v2021, %v2091
        %v2093 = vrot.slane %v2092, 2
        %v2094 = vadd.f32 %v2092, %v2093
        %v2095 = vrot.slane %v2094, 1
        %v2096 = vadd.f32 %v2094, %v2095
        %v2097 = vrot.slane %v2022, 4
        %v2098 = vadd.f32 %v2022, %v2097
        %v2099 = vrot.slane %v2098, 2
        %v2100 = vadd.f32 %v2098, %v2099
        %v2101 = vrot.slane %v2100, 1
        %v2102 = vadd.f32 %v2100, %v2101
        %v2103 = vrot.slane %v2023, 4
        %v2104 = vadd.f32 %v2023, %v2103
        %v2105 = vrot.slane %v2104, 2
        %v2106 = vadd.f32 %v2104, %v2105
        %v2107 = vrot.slane %v2106, 1
        %v2108 = vadd.f32 %v2106, %v2107
        %v2109 = vrot.slane %v2024, 4
        %v2110 = vadd.f32 %v2024, %v2109
        %v2111 = vrot.slane %v2110, 2
        %v2112 = vadd.f32 %v2110, %v2111
        %v2113 = vrot.slane %v2112, 1
        %v2114 = vadd.f32 %v2112, %v2113
        %v2115 = vrot.slane %v2025, 4
        %v2116 = vadd.f32 %v2025, %v2115
        %v2117 = vrot.slane %v2116, 2
        %v2118 = vadd.f32 %v2116, %v2117
        %v2119 = vrot.slane %v2118, 1
        %v2120 = vadd.f32 %v2118, %v2119
        %v2121 = vrot.slane %v2026, 4
        %v2122 = vadd.f32 %v2026, %v2121
        %v2123 = vrot.slane %v2122, 2
        %v2124 = vadd.f32 %v2122, %v2123
        %v2125 = vrot.slane %v2124, 1
        %v2126 = vadd.f32 %v2124, %v2125
        %v2127 = vrot.slane %v2027, 4
        %v2128 = vadd.f32 %v2027, %v2127
        %v2129 = vrot.slane %v2128, 2
        %v2130 = vadd.f32 %v2128, %v2129
        %v2131 = vrot.slane %v2130, 1
        %v2132 = vadd.f32 %v2130, %v2131
        %v2133 = vrot.slane %v2028, 4
        %v2134 = vadd.f32 %v2028, %v2133
        %v2135 = vrot.slane %v2134, 2
        %v2136 = vadd.f32 %v2134, %v2135
        %v2137 = vrot.slane %v2136, 1
        %v2138 = vadd.f32 %v2136, %v2137
        %v2139 = vrot.slane %v2029, 4
        %v2140 = vadd.f32 %v2029, %v2139
        %v2141 = vrot.slane %v2140, 2
        %v2142 = vadd.f32 %v2140, %v2141
        %v2143 = vrot.slane %v2142, 1
        %v2144 = vadd.f32 %v2142, %v2143
        %v2145 = vrot.slane %v2030, 4
        %v2146 = vadd.f32 %v2030, %v2145
        %v2147 = vrot.slane %v2146, 2
        %v2148 = vadd.f32 %v2146, %v2147
        %v2149 = vrot.slane %v2148, 1
        %v2150 = vadd.f32 %v2148, %v2149
        %v2151 = vmul.f32 %v2036, %v490
        %v2152 = vmul.f32 %v2042, %v490
        %v2153 = vmul.f32 %v2048, %v490
        %v2154 = vmul.f32 %v2054, %v490
        %v2155 = vmul.f32 %v2060, %v490
        %v2156 = vmul.f32 %v2066, %v490
        %v2157 = vmul.f32 %v2072, %v490
        %v2158 = vmul.f32 %v2078, %v490
        %v2159 = vmul.f32 %v2084, %v490
        %v2160 = vmul.f32 %v2090, %v490
        %v2161 = vmul.f32 %v2096, %v490
        %v2162 = vmul.f32 %v2102, %v490
        %v2163 = vmul.f32 %v2108, %v490
        %v2164 = vmul.f32 %v2114, %v490
        %v2165 = vmul.f32 %v2120, %v490
        %v2166 = vmul.f32 %v2126, %v490
        %v2167 = vmul.f32 %v2132, %v490
        %v2168 = vmul.f32 %v2138, %v490
        %v2169 = vmul.f32 %v2144, %v490
        %v2170 = vmul.f32 %v2150, %v490
        %v2171 = vadd.f32 %v2151, 1e-05
        %v2172 = vadd.f32 %v2152, 1e-05
        %v2173 = vadd.f32 %v2153, 1e-05
        %v2174 = vadd.f32 %v2154, 1e-05
        %v2175 = vadd.f32 %v2155, 1e-05
        %v2176 = vadd.f32 %v2156, 1e-05
        %v2177 = vadd.f32 %v2157, 1e-05
        %v2178 = vadd.f32 %v2158, 1e-05
        %v2179 = vadd.f32 %v2159, 1e-05
        %v2180 = vadd.f32 %v2160, 1e-05
        %v2181 = vadd.f32 %v2161, 1e-05
        %v2182 = vadd.f32 %v2162, 1e-05
        %v2183 = vadd.f32 %v2163, 1e-05
        %v2184 = vadd.f32 %v2164, 1e-05
        %v2185 = vadd.f32 %v2165, 1e-05
        %v2186 = vadd.f32 %v2166, 1e-05
        %v2187 = vadd.f32 %v2167, 1e-05
        %v2188 = vadd.f32 %v2168, 1e-05
        %v2189 = vadd.f32 %v2169, 1e-05
        %v2190 = vadd.f32 %v2170, 1e-05
        %v2191 = vrsqrt.pop %v2171
        %v2192 = vrsqrt.pop %v2172
        %v2193 = vrsqrt.pop %v2173
        %v2194 = vrsqrt.pop %v2174
        %v2195 = vrsqrt.pop %v2175
        %v2196 = vrsqrt.pop %v2176
        %v2197 = vrsqrt.pop %v2177
        %v2198 = vrsqrt.pop %v2178
        %v2199 = vrsqrt.pop %v2179
        %v2200 = vrsqrt.pop %v2180
        %v2201 = vrsqrt.pop %v2181
        %v2202 = vrsqrt.pop %v2182
        %v2203 = vrsqrt.pop %v2183
        %v2204 = vrsqrt.pop %v2184
        %v2205 = vrsqrt.pop %v2185
        %v2206 = vrsqrt.pop %v2186
        %v2207 = vrsqrt.pop %v2187
        %v2208 = vrsqrt.pop %v2188
        %v2209 = vrsqrt.pop %v2189
        %v2210 = vrsqrt.pop %v2190
        %v2211 = vmul.f32 %v452, %v2191
        %v2212 = vmul.f32 %v453, %v2192
        %v2213 = vmul.f32 %v454, %v2193
        %v2214 = vmul.f32 %v455, %v2194
        %v2215 = vmul.f32 %v456, %v2195
        %v2216 = vmul.f32 %v457, %v2196
        %v2217 = vmul.f32 %v458, %v2197
        %v2218 = vmul.f32 %v459, %v2198
        %v2219 = vmul.f32 %v460, %v2199
        %v2220 = vmul.f32 %v461, %v2200
        %v2221 = vmul.f32 %v452, %v2201
        %v2222 = vmul.f32 %v453, %v2202
        %v2223 = vmul.f32 %v454, %v2203
        %v2224 = vmul.f32 %v455, %v2204
        %v2225 = vmul.f32 %v456, %v2205
        %v2226 = vmul.f32 %v457, %v2206
        %v2227 = vmul.f32 %v458, %v2207
        %v2228 = vmul.f32 %v459, %v2208
        %v2229 = vmul.f32 %v460, %v2209
        %v2230 = vmul.f32 %v461, %v2210
        %v2231 = vlaneseq
        %v2232 = vshrl.u32 %v2231, 7
        %v2233 = vsub.s32 1, %v2232
        %v2234 = vrot.slane %v2211, %v2233
        %v2235 = vlaneseq
        %v2236 = vshrl.u32 %v2235, 7
        %v2237 = vsub.s32 1, %v2236
        %v2238 = vrot.slane %v2212, %v2237
        %v2239 = vlaneseq
        %v2240 = vshrl.u32 %v2239, 7
        %v2241 = vsub.s32 1, %v2240
        %v2242 = vrot.slane %v2213, %v2241
        %v2243 = vlaneseq
        %v2244 = vshrl.u32 %v2243, 7
        %v2245 = vsub.s32 1, %v2244
        %v2246 = vrot.slane %v2214, %v2245
        %v2247 = vlaneseq
        %v2248 = vshrl.u32 %v2247, 7
        %v2249 = vsub.s32 1, %v2248
        %v2250 = vrot.slane %v2215, %v2249
        %v2251 = vlaneseq
        %v2252 = vshrl.u32 %v2251, 7
        %v2253 = vsub.s32 1, %v2252
        %v2254 = vrot.slane %v2216, %v2253
        %v2255 = vlaneseq
        %v2256 = vshrl.u32 %v2255, 7
        %v2257 = vsub.s32 1, %v2256
        %v2258 = vrot.slane %v2217, %v2257
        %v2259 = vlaneseq
        %v2260 = vshrl.u32 %v2259, 7
        %v2261 = vsub.s32 1, %v2260
        %v2262 = vrot.slane %v2218, %v2261
        %v2263 = vlaneseq
        %v2264 = vshrl.u32 %v2263, 7
        %v2265 = vsub.s32 1, %v2264
        %v2266 = vrot.slane %v2219, %v2265
        %v2267 = vlaneseq
        %v2268 = vshrl.u32 %v2267, 7
        %v2269 = vsub.s32 1, %v2268
        %v2270 = vrot.slane %v2220, %v2269
        %v2271 = vlaneseq
        %v2272 = vshrl.u32 %v2271, 7
        %v2273 = vsub.s32 1, %v2272
        %v2274 = vrot.slane %v2221, %v2273
        %v2275 = vlaneseq
        %v2276 = vshrl.u32 %v2275, 7
        %v2277 = vsub.s32 1, %v2276
        %v2278 = vrot.slane %v2222, %v2277
        %v2279 = vlaneseq
        %v2280 = vshrl.u32 %v2279, 7
        %v2281 = vsub.s32 1, %v2280
        %v2282 = vrot.slane %v2223, %v2281
        %v2283 = vlaneseq
        %v2284 = vshrl.u32 %v2283, 7
        %v2285 = vsub.s32 1, %v2284
        %v2286 = vrot.slane %v2224, %v2285
        %v2287 = vlaneseq
        %v2288 = vshrl.u32 %v2287, 7
        %v2289 = vsub.s32 1, %v2288
        %v2290 = vrot.slane %v2225, %v2289
        %v2291 = vlaneseq
        %v2292 = vshrl.u32 %v2291, 7
        %v2293 = vsub.s32 1, %v2292
        %v2294 = vrot.slane %v2226, %v2293
        %v2295 = vlaneseq
        %v2296 = vshrl.u32 %v2295, 7
        %v2297 = vsub.s32 1, %v2296
        %v2298 = vrot.slane %v2227, %v2297
        %v2299 = vlaneseq
        %v2300 = vshrl.u32 %v2299, 7
        %v2301 = vsub.s32 1, %v2300
        %v2302 = vrot.slane %v2228, %v2301
        %v2303 = vlaneseq
        %v2304 = vshrl.u32 %v2303, 7
        %v2305 = vsub.s32 1, %v2304
        %v2306 = vrot.slane %v2229, %v2305
        %v2307 = vlaneseq
        %v2308 = vshrl.u32 %v2307, 7
        %v2309 = vsub.s32 1, %v2308
        %v2310 = vrot.slane %v2230, %v2309
        %v2311 = vmul.f32 %v1991, %v2234
        %v2312 = vmul.f32 %v1992, %v2238
        %v2313 = vmul.f32 %v1993, %v2242
        %v2314 = vmul.f32 %v1994, %v2246
        %v2315 = vmul.f32 %v1995, %v2250
        %v2316 = vmul.f32 %v1996, %v2254
        %v2317 = vmul.f32 %v1997, %v2258
        %v2318 = vmul.f32 %v1998, %v2262
        %v2319 = vmul.f32 %v1999, %v2266
        %v2320 = vmul.f32 %v2000, %v2270
        %v2321 = vmul.f32 %v2001, %v2274
        %v2322 = vmul.f32 %v2002, %v2278
        %v2323 = vmul.f32 %v2003, %v2282
        %v2324 = vmul.f32 %v2004, %v2286
        %v2325 = vmul.f32 %v2005, %v2290
        %v2326 = vmul.f32 %v2006, %v2294
        %v2327 = vmul.f32 %v2007, %v2298
        %v2328 = vmul.f32 %v2008, %v2302
        %v2329 = vmul.f32 %v2009, %v2306
        %v2330 = vmul.f32 %v2010, %v2310
        %v2331 = vlaneseq
        %v2332 = vshrl.u32 %v2331, 7
        %v2333 = vsub.s32 2, %v2332
        %v2334 = vrot.slane %v452, %v2333
        %v2335 = vlaneseq
        %v2336 = vshrl.u32 %v2335, 7
        %v2337 = vsub.s32 2, %v2336
        %v2338 = vrot.slane %v453, %v2337
        %v2339 = vlaneseq
        %v2340 = vshrl.u32 %v2339, 7
        %v2341 = vsub.s32 2, %v2340
        %v2342 = vrot.slane %v454, %v2341
        %v2343 = vlaneseq
        %v2344 = vshrl.u32 %v2343, 7
        %v2345 = vsub.s32 2, %v2344
        %v2346 = vrot.slane %v455, %v2345
        %v2347 = vlaneseq
        %v2348 = vshrl.u32 %v2347, 7
        %v2349 = vsub.s32 2, %v2348
        %v2350 = vrot.slane %v456, %v2349
        %v2351 = vlaneseq
        %v2352 = vshrl.u32 %v2351, 7
        %v2353 = vsub.s32 2, %v2352
        %v2354 = vrot.slane %v457, %v2353
        %v2355 = vlaneseq
        %v2356 = vshrl.u32 %v2355, 7
        %v2357 = vsub.s32 2, %v2356
        %v2358 = vrot.slane %v458, %v2357
        %v2359 = vlaneseq
        %v2360 = vshrl.u32 %v2359, 7
        %v2361 = vsub.s32 2, %v2360
        %v2362 = vrot.slane %v459, %v2361
        %v2363 = vlaneseq
        %v2364 = vshrl.u32 %v2363, 7
        %v2365 = vsub.s32 2, %v2364
        %v2366 = vrot.slane %v460, %v2365
        %v2367 = vlaneseq
        %v2368 = vshrl.u32 %v2367, 7
        %v2369 = vsub.s32 2, %v2368
        %v2370 = vrot.slane %v461, %v2369
        %v2371 = vadd.f32 %v2311, %v2334
        %v2372 = vadd.f32 %v2312, %v2338
        %v2373 = vadd.f32 %v2313, %v2342
        %v2374 = vadd.f32 %v2314, %v2346
        %v2375 = vadd.f32 %v2315, %v2350
        %v2376 = vadd.f32 %v2316, %v2354
        %v2377 = vadd.f32 %v2317, %v2358
        %v2378 = vadd.f32 %v2318, %v2362
        %v2379 = vadd.f32 %v2319, %v2366
        %v2380 = vadd.f32 %v2320, %v2370
        %v2381 = vadd.f32 %v2321, %v2334
        %v2382 = vadd.f32 %v2322, %v2338
        %v2383 = vadd.f32 %v2323, %v2342
        %v2384 = vadd.f32 %v2324, %v2346
        %v2385 = vadd.f32 %v2325, %v2350
        %v2386 = vadd.f32 %v2326, %v2354
        %v2387 = vadd.f32 %v2327, %v2358
        %v2388 = vadd.f32 %v2328, %v2362
        %v2389 = vadd.f32 %v2329, %v2366
        %v2390 = vadd.f32 %v2330, %v2370
        %v2391 = vld [vmem:[#allocation10] sm:$0xff]
        %v2392 = vld [vmem:[#allocation10 + $0x8] sm:$0xff]
        %v2393 = vld [vmem:[#allocation10 + $0x10] sm:$0xff]
        %v2394 = vld [vmem:[#allocation10 + $0x18] sm:$0xff]
        %v2395 = vld [vmem:[#allocation10 + $0x20] sm:$0xff]
        %v2396 = vld [vmem:[#allocation10 + $0x28] sm:$0xff]
        %v2397 = vld [vmem:[#allocation10 + $0x30] sm:$0xff]
        %v2398 = vld [vmem:[#allocation10 + $0x38] sm:$0xff]
        %v2399 = vld [vmem:[#allocation10 + $0x40] sm:$0xff]
        %v2400 = vld [vmem:[#allocation10 + $0x48] sm:$0xff]
        %v2401 = vld [vmem:[#allocation10 + $0x50] sm:$0x33]
        %v2402 = vld [vmem:[#allocation10 + $0x58] sm:$0x33]
        %v2403 = vld [vmem:[#allocation10 + $0x60] sm:$0x33]
        %v2404 = vld [vmem:[#allocation10 + $0x68] sm:$0x33]
        %v2405 = vld [vmem:[#allocation10 + $0x70] sm:$0x33]
        %v2406 = vpack.c.bf16 %v2381, %v2371
        %v2407 = vpack.c.bf16 %v2382, %v2372
        %v2408 = vpack.c.bf16 %v2383, %v2373
        %v2409 = vpack.c.bf16 %v2384, %v2374
        %v2410 = vpack.c.bf16 %v2385, %v2375
        %v2411 = vpack.c.bf16 %v2386, %v2376
        %v2412 = vpack.c.bf16 %v2387, %v2377
        %v2413 = vpack.c.bf16 %v2388, %v2378
        %v2414 = vpack.c.bf16 %v2389, %v2379
        %v2415 = vpack.c.bf16 %v2390, %v2380
        %v2416 = vlaneseq
        %v2417 = vshrl.u32 %v2416, 7
        %v2418 = vsub.s32 0, %v2417
        %v2419 = vrot.slane %v451, %v2418
        %v2435 = vunpack.c.l.b16 %v2391
        %v2436 = vunpack.c.h.b16 %v2391
        %v2437 = vunpack.c.l.b16 %v2392
        %v2438 = vunpack.c.h.b16 %v2392
        %v2439 = vunpack.c.l.b16 %v2393
        %v2440 = vunpack.c.h.b16 %v2393
        %v2441 = vunpack.c.l.b16 %v2394
        %v2442 = vunpack.c.h.b16 %v2394
        %v2443 = vunpack.c.l.b16 %v2395
        %v2444 = vunpack.c.h.b16 %v2395
        %v2445 = vunpack.c.l.b16 %v2396
        %v2446 = vunpack.c.h.b16 %v2396
        %v2447 = vunpack.c.l.b16 %v2397
        %v2448 = vunpack.c.h.b16 %v2397
        %v2449 = vunpack.c.l.b16 %v2398
        %v2450 = vunpack.c.h.b16 %v2398
        %v2451 = vunpack.c.l.b16 %v2399
        %v2452 = vunpack.c.h.b16 %v2399
        %v2453 = vunpack.c.l.b16 %v2400
        %v2454 = vunpack.c.h.b16 %v2400
        %v2455 = vunpack.c.l.b16 %v2401
        %v2456 = vunpack.c.h.b16 %v2401
        %v2457 = vunpack.c.l.b16 %v2402
        %v2458 = vunpack.c.h.b16 %v2402
        %v2459 = vunpack.c.l.b16 %v2403
        %v2460 = vunpack.c.h.b16 %v2403
        %v2461 = vunpack.c.l.b16 %v2404
        %v2462 = vunpack.c.h.b16 %v2404
        %v2463 = vunpack.c.l.b16 %v2405
        %v2464 = vunpack.c.h.b16 %v2405
        %v2465 = vpack.c.b16 %v2445, %v2435
        %v2466 = vpack.c.b16 %v2446, %v2436
        %v2467 = vpack.c.b16 %v2447, %v2437
        %v2468 = vpack.c.b16 %v2448, %v2438
        %v2469 = vpack.c.b16 %v2449, %v2439
        %v2470 = vpack.c.b16 %v2450, %v2440
        %v2471 = vpack.c.b16 %v2451, %v2441
        %v2472 = vpack.c.b16 %v2452, %v2442
        %v2473 = vpack.c.b16 %v2453, %v2443
        %v2474 = vpack.c.b16 %v2454, %v2444
        %v2475 = vpack.c.b16 %v2455, %v2455
        %v2476 = vpack.c.b16 %v2456, %v2456
        %v2477 = vpack.c.b16 %v2457, %v2457
        %v2478 = vpack.c.b16 %v2458, %v2458
        %v2479 = vpack.c.b16 %v2459, %v2459
        %v2480 = vpack.c.b16 %v2460, %v2460
        %v2481 = vpack.c.b16 %v2461, %v2461
        %v2482 = vpack.c.b16 %v2462, %v2462
        %v2483 = vpack.c.b16 %v2463, %v2463
        %v2484 = vpack.c.b16 %v2464, %v2464
        %2505 = vmatprep.subr.bf16.mxu0 %v2466
        %2506 = vmatpush1.bf16.xpose.msra.mxu0 %v2465
        %2507 = vmatprep.subr.bf16.mxu0 %v2476
        %2508 = vmatpush1.bf16.xpose.msra.mxu0 %v2475
        %2509 = vmatprep.subr.bf16.mxu0 0
        %2510 = vmatpush1.bf16.xpose.msra.mxu0 0
        %2511 = vmatprep.subr.bf16.mxu0 0
        %2512 = vmatpush1.bf16.xpose.msra.mxu0 0
        %2513 = vmatprep.subr.bf16.mxu0 0
        %2514 = vmatpush1.bf16.xpose.msra.mxu0 0
        %2515 = vmatprep.subr.bf16.mxu0 0
        %2516 = vmatpush1.bf16.xpose.msra.mxu0 0
        %2517 = vmatprep.subr.bf16.mxu0 0
        %2518 = vmatpush1.bf16.xpose.msra.mxu0 0
        %2519 = vmatprep.subr.bf16.mxu0 0
        %2520 = vmatpush1.bf16.xpose.msra.mxu0 0
        %2521 = vmatprep.subr.bf16.mxu0 0
        %2522 = vmatpush1.bf16.xpose.msra.mxu0 0
        %2523 = vmatprep.subr.bf16.mxu0 0
        %2524 = vmatpush1.bf16.xpose.msra.mxu0 0
        %2525 = vmatprep.subr.bf16.mxu0 0
        %2526 = vmatpush1.bf16.xpose.msra.mxu0 0
        %2527 = vmatprep.subr.bf16.mxu0 0
        %2528 = vmatpush1.bf16.xpose.msra.mxu0 0
        %2529 = vmatprep.subr.bf16.mxu0 0
        %2530 = vmatpush1.bf16.xpose.msra.mxu0 0
        %2531 = vmatprep.subr.bf16.mxu0 0
        %2532 = vmatpush1.bf16.xpose.msra.mxu0 0
        %2533 = vmatprep.subr.bf16.mxu0 0
        %2534 = vmatpush1.bf16.xpose.msra.mxu0 0
        %2535 = vmatprep.subr.bf16.mxu0 0
        %2536 = vmatpush1.bf16.xpose.msra.mxu0 0
        %2537 = vmatprep.mubr.bf16.mxu0 %v2407
        %2538 = vmatmul.mubr.bf16.gmra.mrb[0].mxu0 %v2406
        %v2539 = vpop.f32.mrb[0].mxu0
        %v2540 = vadd.f32 %v2419, %v2539
        %v2541 = vpop.f32.mrb[0].mxu0
        %v2542 = vpop.f32.mrb[0].mxu0
        %v2543 = vadd.f32 %v2419, %v2542
        %v2544 = vpop.f32.mrb[0].mxu0
        %2545 = vdwg.mxu0
        %2546 = vmatprep.subr.bf16.mxu0 %v2468
        %2547 = vmatpush1.bf16.xpose.msra.mxu0 %v2467
        %2548 = vmatprep.subr.bf16.mxu0 %v2478
        %2549 = vmatpush1.bf16.xpose.msra.mxu0 %v2477
        %2550 = vmatprep.subr.bf16.mxu0 0
        %2551 = vmatpush1.bf16.xpose.msra.mxu0 0
        %2552 = vmatprep.subr.bf16.mxu0 0
        %2553 = vmatpush1.bf16.xpose.msra.mxu0 0
        %2554 = vmatprep.subr.bf16.mxu0 0
        %2555 = vmatpush1.bf16.xpose.msra.mxu0 0
        %2556 = vmatprep.subr.bf16.mxu0 0
        %2557 = vmatpush1.bf16.xpose.msra.mxu0 0
        %2558 = vmatprep.subr.bf16.mxu0 0
        %2559 = vmatpush1.bf16.xpose.msra.mxu0 0
        %2560 = vmatprep.subr.bf16.mxu0 0
        %2561 = vmatpush1.bf16.xpose.msra.mxu0 0
        %2562 = vmatprep.subr.bf16.mxu0 0
        %2563 = vmatpush1.bf16.xpose.msra.mxu0 0
        %2564 = vmatprep.subr.bf16.mxu0 0
        %2565 = vmatpush1.bf16.xpose.msra.mxu0 0
        %2566 = vmatprep.subr.bf16.mxu0 0
        %2567 = vmatpush1.bf16.xpose.msra.mxu0 0
        %2568 = vmatprep.subr.bf16.mxu0 0
        %2569 = vmatpush1.bf16.xpose.msra.mxu0 0
        %2570 = vmatprep.subr.bf16.mxu0 0
        %2571 = vmatpush1.bf16.xpose.msra.mxu0 0
        %2572 = vmatprep.subr.bf16.mxu0 0
        %2573 = vmatpush1.bf16.xpose.msra.mxu0 0
        %2574 = vmatprep.subr.bf16.mxu0 0
        %2575 = vmatpush1.bf16.xpose.msra.mxu0 0
        %2576 = vmatprep.subr.bf16.mxu0 0
        %2577 = vmatpush1.bf16.xpose.msra.mxu0 0
        %2578 = vmatprep.mubr.bf16.mxu0 %v2409
        %2579 = vmatmul.mubr.bf16.gmra.mrb[0].mxu0 %v2408
        %v2580 = vpop.f32.mrb[0].mxu0
        %v2581 = vadd.f32 %v2540, %v2580
        %v2582 = vpop.f32.mrb[0].mxu0
        %v2583 = vpop.f32.mrb[0].mxu0
        %v2584 = vadd.f32 %v2543, %v2583
        %v2585 = vpop.f32.mrb[0].mxu0
        %2586 = vdwg.mxu0
        %2587 = vmatprep.subr.bf16.mxu0 %v2470
        %2588 = vmatpush1.bf16.xpose.msra.mxu0 %v2469
        %2589 = vmatprep.subr.bf16.mxu0 %v2480
        %2590 = vmatpush1.bf16.xpose.msra.mxu0 %v2479
        %2591 = vmatprep.subr.bf16.mxu0 0
        %2592 = vmatpush1.bf16.xpose.msra.mxu0 0
        %2593 = vmatprep.subr.bf16.mxu0 0
        %2594 = vmatpush1.bf16.xpose.msra.mxu0 0
        %2595 = vmatprep.subr.bf16.mxu0 0
        %2596 = vmatpush1.bf16.xpose.msra.mxu0 0
        %2597 = vmatprep.subr.bf16.mxu0 0
        %2598 = vmatpush1.bf16.xpose.msra.mxu0 0
        %2599 = vmatprep.subr.bf16.mxu0 0
        %2600 = vmatpush1.bf16.xpose.msra.mxu0 0
        %2601 = vmatprep.subr.bf16.mxu0 0
        %2602 = vmatpush1.bf16.xpose.msra.mxu0 0
        %2603 = vmatprep.subr.bf16.mxu0 0
        %2604 = vmatpush1.bf16.xpose.msra.mxu0 0
        %2605 = vmatprep.subr.bf16.mxu0 0
        %2606 = vmatpush1.bf16.xpose.msra.mxu0 0
        %2607 = vmatprep.subr.bf16.mxu0 0
        %2608 = vmatpush1.bf16.xpose.msra.mxu0 0
        %2609 = vmatprep.subr.bf16.mxu0 0
        %2610 = vmatpush1.bf16.xpose.msra.mxu0 0
        %2611 = vmatprep.subr.bf16.mxu0 0
        %2612 = vmatpush1.bf16.xpose.msra.mxu0 0
        %2613 = vmatprep.subr.bf16.mxu0 0
        %2614 = vmatpush1.bf16.xpose.msra.mxu0 0
        %2615 = vmatprep.subr.bf16.mxu0 0
        %2616 = vmatpush1.bf16.xpose.msra.mxu0 0
        %2617 = vmatprep.subr.bf16.mxu0 0
        %2618 = vmatpush1.bf16.xpose.msra.mxu0 0
        %2619 = vmatprep.mubr.bf16.mxu0 %v2411
        %2620 = vmatmul.mubr.bf16.gmra.mrb[0].mxu0 %v2410
        %v2621 = vpop.f32.mrb[0].mxu0
        %v2622 = vadd.f32 %v2581, %v2621
        %v2623 = vpop.f32.mrb[0].mxu0
        %v2624 = vpop.f32.mrb[0].mxu0
        %v2625 = vadd.f32 %v2584, %v2624
        %v2626 = vpop.f32.mrb[0].mxu0
        %2627 = vdwg.mxu0
        %2628 = vmatprep.subr.bf16.mxu0 %v2472
        %2629 = vmatpush1.bf16.xpose.msra.mxu0 %v2471
        %2630 = vmatprep.subr.bf16.mxu0 %v2482
        %2631 = vmatpush1.bf16.xpose.msra.mxu0 %v2481
        %2632 = vmatprep.subr.bf16.mxu0 0
        %2633 = vmatpush1.bf16.xpose.msra.mxu0 0
        %2634 = vmatprep.subr.bf16.mxu0 0
        %2635 = vmatpush1.bf16.xpose.msra.mxu0 0
        %2636 = vmatprep.subr.bf16.mxu0 0
        %2637 = vmatpush1.bf16.xpose.msra.mxu0 0
        %2638 = vmatprep.subr.bf16.mxu0 0
        %2639 = vmatpush1.bf16.xpose.msra.mxu0 0
        %2640 = vmatprep.subr.bf16.mxu0 0
        %2641 = vmatpush1.bf16.xpose.msra.mxu0 0
        %2642 = vmatprep.subr.bf16.mxu0 0
        %2643 = vmatpush1.bf16.xpose.msra.mxu0 0
        %2644 = vmatprep.subr.bf16.mxu0 0
        %2645 = vmatpush1.bf16.xpose.msra.mxu0 0
        %2646 = vmatprep.subr.bf16.mxu0 0
        %2647 = vmatpush1.bf16.xpose.msra.mxu0 0
        %2648 = vmatprep.subr.bf16.mxu0 0
        %2649 = vmatpush1.bf16.xpose.msra.mxu0 0
        %2650 = vmatprep.subr.bf16.mxu0 0
        %2651 = vmatpush1.bf16.xpose.msra.mxu0 0
        %2652 = vmatprep.subr.bf16.mxu0 0
        %2653 = vmatpush1.bf16.xpose.msra.mxu0 0
        %2654 = vmatprep.subr.bf16.mxu0 0
        %2655 = vmatpush1.bf16.xpose.msra.mxu0 0
        %2656 = vmatprep.subr.bf16.mxu0 0
        %2657 = vmatpush1.bf16.xpose.msra.mxu0 0
        %2658 = vmatprep.subr.bf16.mxu0 0
        %2659 = vmatpush1.bf16.xpose.msra.mxu0 0
        %2660 = vmatprep.mubr.bf16.mxu0 %v2413
        %2661 = vmatmul.mubr.bf16.gmra.mrb[0].mxu0 %v2412
        %v2662 = vpop.f32.mrb[0].mxu0
        %v2663 = vadd.f32 %v2622, %v2662
        %v2664 = vpop.f32.mrb[0].mxu0
        %v2665 = vpop.f32.mrb[0].mxu0
        %v2666 = vadd.f32 %v2625, %v2665
        %v2667 = vpop.f32.mrb[0].mxu0
        %2668 = vdwg.mxu0
        %2669 = vmatprep.subr.bf16.mxu0 %v2474
        %2670 = vmatpush1.bf16.xpose.msra.mxu0 %v2473
        %2671 = vmatprep.subr.bf16.mxu0 %v2484
        %2672 = vmatpush1.bf16.xpose.msra.mxu0 %v2483
        %2673 = vmatprep.subr.bf16.mxu0 0
        %2674 = vmatpush1.bf16.xpose.msra.mxu0 0
        %2675 = vmatprep.subr.bf16.mxu0 0
        %2676 = vmatpush1.bf16.xpose.msra.mxu0 0
        %2677 = vmatprep.subr.bf16.mxu0 0
        %2678 = vmatpush1.bf16.xpose.msra.mxu0 0
        %2679 = vmatprep.subr.bf16.mxu0 0
        %2680 = vmatpush1.bf16.xpose.msra.mxu0 0
        %2681 = vmatprep.subr.bf16.mxu0 0
        %2682 = vmatpush1.bf16.xpose.msra.mxu0 0
        %2683 = vmatprep.subr.bf16.mxu0 0
        %2684 = vmatpush1.bf16.xpose.msra.mxu0 0
        %2685 = vmatprep.subr.bf16.mxu0 0
        %2686 = vmatpush1.bf16.xpose.msra.mxu0 0
        %2687 = vmatprep.subr.bf16.mxu0 0
        %2688 = vmatpush1.bf16.xpose.msra.mxu0 0
        %2689 = vmatprep.subr.bf16.mxu0 0
        %2690 = vmatpush1.bf16.xpose.msra.mxu0 0
        %2691 = vmatprep.subr.bf16.mxu0 0
        %2692 = vmatpush1.bf16.xpose.msra.mxu0 0
        %2693 = vmatprep.subr.bf16.mxu0 0
        %2694 = vmatpush1.bf16.xpose.msra.mxu0 0
        %2695 = vmatprep.subr.bf16.mxu0 0
        %2696 = vmatpush1.bf16.xpose.msra.mxu0 0
        %2697 = vmatprep.subr.bf16.mxu0 0
        %2698 = vmatpush1.bf16.xpose.msra.mxu0 0
        %2699 = vmatprep.subr.bf16.mxu0 0
        %2700 = vmatpush1.bf16.xpose.msra.mxu0 0
        %2701 = vmatprep.mubr.bf16.mxu0 %v2415
        %2702 = vmatmul.mubr.bf16.gmra.mrb[0].mxu0 %v2414
        %v2703 = vpop.f32.mrb[0].mxu0
        %v2704 = vadd.f32 %v2663, %v2703
        %v2705 = vpop.f32.mrb[0].mxu0
        %v2706 = vpop.f32.mrb[0].mxu0
        %v2707 = vadd.f32 %v2666, %v2706
        %v2708 = vpop.f32.mrb[0].mxu0
        %2709 = vdwg.mxu0
        %v2710 = vmax.f32 %v2704, 0.0
        %v2711 = vmax.f32 %v2707, 0.0
        %vm2712 = vcmask 162816
        %v2713 = vsel %vm2712, %v2710, 0.0
        %v2714 = vrot.slane %v2713, 4
        %v2715 = vadd.f32 %v2713, %v2714
        %v2716 = vrot.slane %v2715, 2
        %v2717 = vadd.f32 %v2715, %v2716
        %v2718 = vrot.slane %v2717, 1
        %v2719 = vadd.f32 %v2717, %v2718
        %v2720 = vsel %vm2712, %v2711, 0.0
        %v2721 = vrot.slane %v2720, 4
        %v2722 = vadd.f32 %v2720, %v2721
        %v2723 = vrot.slane %v2722, 2
        %v2724 = vadd.f32 %v2722, %v2723
        %v2725 = vrot.slane %v2724, 1
        %v2726 = vadd.f32 %v2724, %v2725
        %v2727 = vmul.f32 %v2719, %v490
        %v2728 = vmul.f32 %v2726, %v490
        %v2729 = vsub.f32 %v2710, %v2727
        %v2730 = vsub.f32 %v2711, %v2728
        %v2731 = vmul.f32 %v2729, %v2729
        %v2732 = vmul.f32 %v2730, %v2730
        %v2733 = vsel %vm2712, %v2731, 0.0
        %v2734 = vrot.slane %v2733, 4
        %v2735 = vadd.f32 %v2733, %v2734
        %v2736 = vrot.slane %v2735, 2
        %v2737 = vadd.f32 %v2735, %v2736
        %v2738 = vrot.slane %v2737, 1
        %v2739 = vadd.f32 %v2737, %v2738
        %v2740 = vsel %vm2712, %v2732, 0.0
        %v2741 = vrot.slane %v2740, 4
        %v2742 = vadd.f32 %v2740, %v2741
        %v2743 = vrot.slane %v2742, 2
        %v2744 = vadd.f32 %v2742, %v2743
        %v2745 = vrot.slane %v2744, 1
        %v2746 = vadd.f32 %v2744, %v2745
        %v2747 = vmul.f32 %v2739, %v490
        %v2748 = vmul.f32 %v2746, %v490
        %v2749 = vadd.f32 %v2747, 1e-05
        %v2750 = vadd.f32 %v2748, 1e-05
        %v2751 = vrsqrt.pop %v2749
        %v2752 = vrsqrt.pop %v2750
        %v2753 = vmul.f32 %v451, %v2751
        %v2754 = vmul.f32 %v451, %v2752
        %v2755 = vlaneseq
        %v2756 = vshrl.u32 %v2755, 7
        %v2757 = vsub.s32 1, %v2756
        %v2758 = vrot.slane %v2753, %v2757
        %v2759 = vlaneseq
        %v2760 = vshrl.u32 %v2759, 7
        %v2761 = vsub.s32 1, %v2760
        %v2762 = vrot.slane %v2754, %v2761
        %v2763 = vmul.f32 %v2729, %v2758
        %v2764 = vmul.f32 %v2730, %v2762
        %v2765 = vlaneseq
        %v2766 = vshrl.u32 %v2765, 7
        %v2767 = vsub.s32 2, %v2766
        %v2768 = vrot.slane %v451, %v2767
        %v2769 = vadd.f32 %v2763, %v2768
        %v2770 = vadd.f32 %v2764, %v2768
        %2771 = vst.msk [vmem:[%s445] sm:$0xff] %vm2712, %v2769
        %2772 = vst.msk [vmem:[%s445 + $0x8] sm:$0xff] %vm2712, %v2770
        %v2773 = vld [vmem:[#allocation11] sm:$0xff]
        %v2774 = vld [vmem:[#allocation11 + $0x8] sm:$0xff]
        %v2775 = vld [vmem:[#allocation11 + $0x10] sm:$0xff]
        %v2776 = vld [vmem:[#allocation11 + $0x18] sm:$0xff]
        %v2777 = vld [vmem:[#allocation11 + $0x20] sm:$0xff]
        %v2778 = vld [vmem:[#allocation11 + $0x28] sm:$0xff]
        %v2779 = vld [vmem:[#allocation11 + $0x30] sm:$0xff]
        %v2780 = vld [vmem:[#allocation11 + $0x38] sm:$0xff]
        %v2781 = vld [vmem:[#allocation11 + $0x40] sm:$0xff]
        %v2782 = vld [vmem:[#allocation11 + $0x48] sm:$0xff]
        %v2783 = vld [vmem:[#allocation11 + $0x50] sm:$0x33]
        %v2784 = vld [vmem:[#allocation11 + $0x58] sm:$0x33]
        %v2785 = vld [vmem:[#allocation11 + $0x60] sm:$0x33]
        %v2786 = vld [vmem:[#allocation11 + $0x68] sm:$0x33]
        %v2787 = vld [vmem:[#allocation11 + $0x70] sm:$0x33]
        %v2788 = vpack.c.bf16 %v2770, %v2769
        %v2789 = vlaneseq
        %v2790 = vshrl.u32 %v2789, 7
        %v2791 = vsub.s32 3, %v2790
        %v2792 = vrot.slane %v452, %v2791
        %v2793 = vlaneseq
        %v2794 = vshrl.u32 %v2793, 7
        %v2795 = vsub.s32 3, %v2794
        %v2796 = vrot.slane %v453, %v2795
        %v2797 = vlaneseq
        %v2798 = vshrl.u32 %v2797, 7
        %v2799 = vsub.s32 3, %v2798
        %v2800 = vrot.slane %v454, %v2799
        %v2801 = vlaneseq
        %v2802 = vshrl.u32 %v2801, 7
        %v2803 = vsub.s32 3, %v2802
        %v2804 = vrot.slane %v455, %v2803
        %v2805 = vlaneseq
        %v2806 = vshrl.u32 %v2805, 7
        %v2807 = vsub.s32 3, %v2806
        %v2808 = vrot.slane %v456, %v2807
        %v2809 = vlaneseq
        %v2810 = vshrl.u32 %v2809, 7
        %v2811 = vsub.s32 3, %v2810
        %v2812 = vrot.slane %v457, %v2811
        %v2813 = vlaneseq
        %v2814 = vshrl.u32 %v2813, 7
        %v2815 = vsub.s32 3, %v2814
        %v2816 = vrot.slane %v458, %v2815
        %v2817 = vlaneseq
        %v2818 = vshrl.u32 %v2817, 7
        %v2819 = vsub.s32 3, %v2818
        %v2820 = vrot.slane %v459, %v2819
        %v2821 = vlaneseq
        %v2822 = vshrl.u32 %v2821, 7
        %v2823 = vsub.s32 3, %v2822
        %v2824 = vrot.slane %v460, %v2823
        %v2825 = vlaneseq
        %v2826 = vshrl.u32 %v2825, 7
        %v2827 = vsub.s32 3, %v2826
        %v2828 = vrot.slane %v461, %v2827
        %v2844 = vunpack.c.l.b16 %v2773
        %v2845 = vunpack.c.h.b16 %v2773
        %v2846 = vunpack.c.l.b16 %v2774
        %v2847 = vunpack.c.h.b16 %v2774
        %v2848 = vunpack.c.l.b16 %v2775
        %v2849 = vunpack.c.h.b16 %v2775
        %v2850 = vunpack.c.l.b16 %v2776
        %v2851 = vunpack.c.h.b16 %v2776
        %v2852 = vunpack.c.l.b16 %v2777
        %v2853 = vunpack.c.h.b16 %v2777
        %v2854 = vunpack.c.l.b16 %v2778
        %v2855 = vunpack.c.h.b16 %v2778
        %v2856 = vunpack.c.l.b16 %v2779
        %v2857 = vunpack.c.h.b16 %v2779
        %v2858 = vunpack.c.l.b16 %v2780
        %v2859 = vunpack.c.h.b16 %v2780
        %v2860 = vunpack.c.l.b16 %v2781
        %v2861 = vunpack.c.h.b16 %v2781
        %v2862 = vunpack.c.l.b16 %v2782
        %v2863 = vunpack.c.h.b16 %v2782
        %v2864 = vunpack.c.l.b16 %v2783
        %v2865 = vunpack.c.h.b16 %v2783
        %v2866 = vunpack.c.l.b16 %v2784
        %v2867 = vunpack.c.h.b16 %v2784
        %v2868 = vunpack.c.l.b16 %v2785
        %v2869 = vunpack.c.h.b16 %v2785
        %v2870 = vunpack.c.l.b16 %v2786
        %v2871 = vunpack.c.h.b16 %v2786
        %v2872 = vunpack.c.l.b16 %v2787
        %v2873 = vunpack.c.h.b16 %v2787
        %v2874 = vpack.c.b16 %v2854, %v2844
        %v2875 = vpack.c.b16 %v2855, %v2845
        %v2876 = vpack.c.b16 %v2856, %v2846
        %v2877 = vpack.c.b16 %v2857, %v2847
        %v2878 = vpack.c.b16 %v2858, %v2848
        %v2879 = vpack.c.b16 %v2859, %v2849
        %v2880 = vpack.c.b16 %v2860, %v2850
        %v2881 = vpack.c.b16 %v2861, %v2851
        %v2882 = vpack.c.b16 %v2862, %v2852
        %v2883 = vpack.c.b16 %v2863, %v2853
        %v2884 = vpack.c.b16 %v2864, %v2864
        %v2885 = vpack.c.b16 %v2865, %v2865
        %v2886 = vpack.c.b16 %v2866, %v2866
        %v2887 = vpack.c.b16 %v2867, %v2867
        %v2888 = vpack.c.b16 %v2868, %v2868
        %v2889 = vpack.c.b16 %v2869, %v2869
        %v2890 = vpack.c.b16 %v2870, %v2870
        %v2891 = vpack.c.b16 %v2871, %v2871
        %v2892 = vpack.c.b16 %v2872, %v2872
        %v2893 = vpack.c.b16 %v2873, %v2873
        %v2905 = vsel %vm2712, %v2788, 0
        %vm2907 = vcmask 1041408
        %v2909 = vsel %vm2907, %v2884, 0
        %v2912 = vsel %vm2907, %v2885, 0
        %v2915 = vsel %vm2907, %v2886, 0
        %v2918 = vsel %vm2907, %v2887, 0
        %v2921 = vsel %vm2907, %v2888, 0
        %v2924 = vsel %vm2907, %v2889, 0
        %v2927 = vsel %vm2907, %v2890, 0
        %v2930 = vsel %vm2907, %v2891, 0
        %v2933 = vsel %vm2907, %v2892, 0
        %v2936 = vsel %vm2907, %v2893, 0
        %2938 = vmatprep.subr.bf16.mxu0 %v2875
        %2939 = vmatpush1.bf16.msra.mxu0 %v2874
        %2940 = vmatprep.subr.bf16.mxu0 %v2912
        %2941 = vmatpush1.bf16.msra.mxu0 %v2909
        %2942 = vmatprep.subr.bf16.mxu0 0
        %2943 = vmatpush1.bf16.msra.mxu0 0
        %2944 = vmatprep.subr.bf16.mxu0 0
        %2945 = vmatpush1.bf16.msra.mxu0 0
        %2946 = vmatprep.subr.bf16.mxu0 0
        %2947 = vmatpush1.bf16.msra.mxu0 0
        %2948 = vmatprep.subr.bf16.mxu0 0
        %2949 = vmatpush1.bf16.msra.mxu0 0
        %2950 = vmatprep.subr.bf16.mxu0 0
        %2951 = vmatpush1.bf16.msra.mxu0 0
        %2952 = vmatprep.subr.bf16.mxu0 0
        %2953 = vmatpush1.bf16.msra.mxu0 0
        %2954 = vmatprep.subr.bf16.mxu0 0
        %2955 = vmatpush1.bf16.msra.mxu0 0
        %2956 = vmatprep.subr.bf16.mxu0 0
        %2957 = vmatpush1.bf16.msra.mxu0 0
        %2958 = vmatprep.subr.bf16.mxu0 0
        %2959 = vmatpush1.bf16.msra.mxu0 0
        %2960 = vmatprep.subr.bf16.mxu0 0
        %2961 = vmatpush1.bf16.msra.mxu0 0
        %2962 = vmatprep.subr.bf16.mxu0 0
        %2963 = vmatpush1.bf16.msra.mxu0 0
        %2964 = vmatprep.subr.bf16.mxu0 0
        %2965 = vmatpush1.bf16.msra.mxu0 0
        %2966 = vmatprep.subr.bf16.mxu0 0
        %2967 = vmatpush1.bf16.msra.mxu0 0
        %2968 = vmatprep.subr.bf16.mxu0 0
        %2969 = vmatpush1.bf16.msra.mxu0 0
        %2970 = vmatprep.mubr.bf16.mxu0 0
        %2971 = vmatmul.mubr.bf16.gmra.mrb[0].mxu0 %v2905
        %v2972 = vpop.f32.mrb[0].mxu0
        %v2973 = vadd.f32 %v2792, %v2972
        %v2974 = vpop.f32.mrb[0].mxu0
        %v2975 = vadd.f32 %v2796, %v2974
        %v2976 = vpop.f32.mrb[0].mxu0
        %v2977 = vadd.f32 %v2792, %v2976
        %v2978 = vpop.f32.mrb[0].mxu0
        %v2979 = vadd.f32 %v2796, %v2978
        %2980 = vdwg.mxu0
        %2981 = vmatprep.subr.bf16.mxu0 %v2877
        %2982 = vmatpush1.bf16.msra.mxu0 %v2876
        %2983 = vmatprep.subr.bf16.mxu0 %v2918
        %2984 = vmatpush1.bf16.msra.mxu0 %v2915
        %2985 = vmatprep.subr.bf16.mxu0 0
        %2986 = vmatpush1.bf16.msra.mxu0 0
        %2987 = vmatprep.subr.bf16.mxu0 0
        %2988 = vmatpush1.bf16.msra.mxu0 0
        %2989 = vmatprep.subr.bf16.mxu0 0
        %2990 = vmatpush1.bf16.msra.mxu0 0
        %2991 = vmatprep.subr.bf16.mxu0 0
        %2992 = vmatpush1.bf16.msra.mxu0 0
        %2993 = vmatprep.subr.bf16.mxu0 0
        %2994 = vmatpush1.bf16.msra.mxu0 0
        %2995 = vmatprep.subr.bf16.mxu0 0
        %2996 = vmatpush1.bf16.msra.mxu0 0
        %2997 = vmatprep.subr.bf16.mxu0 0
        %2998 = vmatpush1.bf16.msra.mxu0 0
        %2999 = vmatprep.subr.bf16.mxu0 0
        %3000 = vmatpush1.bf16.msra.mxu0 0
        %3001 = vmatprep.subr.bf16.mxu0 0
        %3002 = vmatpush1.bf16.msra.mxu0 0
        %3003 = vmatprep.subr.bf16.mxu0 0
        %3004 = vmatpush1.bf16.msra.mxu0 0
        %3005 = vmatprep.subr.bf16.mxu0 0
        %3006 = vmatpush1.bf16.msra.mxu0 0
        %3007 = vmatprep.subr.bf16.mxu0 0
        %3008 = vmatpush1.bf16.msra.mxu0 0
        %3009 = vmatprep.subr.bf16.mxu0 0
        %3010 = vmatpush1.bf16.msra.mxu0 0
        %3011 = vmatprep.subr.bf16.mxu0 0
        %3012 = vmatpush1.bf16.msra.mxu0 0
        %3013 = vmatprep.mubr.bf16.mxu0 0
        %3014 = vmatmul.mubr.bf16.gmra.mrb[0].mxu0 %v2905
        %v3015 = vpop.f32.mrb[0].mxu0
        %v3016 = vadd.f32 %v2800, %v3015
        %v3017 = vpop.f32.mrb[0].mxu0
        %v3018 = vadd.f32 %v2804, %v3017
        %v3019 = vpop.f32.mrb[0].mxu0
        %v3020 = vadd.f32 %v2800, %v3019
        %v3021 = vpop.f32.mrb[0].mxu0
        %v3022 = vadd.f32 %v2804, %v3021
        %3023 = vdwg.mxu0
        %3024 = vmatprep.subr.bf16.mxu0 %v2879
        %3025 = vmatpush1.bf16.msra.mxu0 %v2878
        %3026 = vmatprep.subr.bf16.mxu0 %v2924
        %3027 = vmatpush1.bf16.msra.mxu0 %v2921
        %3028 = vmatprep.subr.bf16.mxu0 0
        %3029 = vmatpush1.bf16.msra.mxu0 0
        %3030 = vmatprep.subr.bf16.mxu0 0
        %3031 = vmatpush1.bf16.msra.mxu0 0
        %3032 = vmatprep.subr.bf16.mxu0 0
        %3033 = vmatpush1.bf16.msra.mxu0 0
        %3034 = vmatprep.subr.bf16.mxu0 0
        %3035 = vmatpush1.bf16.msra.mxu0 0
        %3036 = vmatprep.subr.bf16.mxu0 0
        %3037 = vmatpush1.bf16.msra.mxu0 0
        %3038 = vmatprep.subr.bf16.mxu0 0
        %3039 = vmatpush1.bf16.msra.mxu0 0
        %3040 = vmatprep.subr.bf16.mxu0 0
        %3041 = vmatpush1.bf16.msra.mxu0 0
        %3042 = vmatprep.subr.bf16.mxu0 0
        %3043 = vmatpush1.bf16.msra.mxu0 0
        %3044 = vmatprep.subr.bf16.mxu0 0
        %3045 = vmatpush1.bf16.msra.mxu0 0
        %3046 = vmatprep.subr.bf16.mxu0 0
        %3047 = vmatpush1.bf16.msra.mxu0 0
        %3048 = vmatprep.subr.bf16.mxu0 0
        %3049 = vmatpush1.bf16.msra.mxu0 0
        %3050 = vmatprep.subr.bf16.mxu0 0
        %3051 = vmatpush1.bf16.msra.mxu0 0
        %3052 = vmatprep.subr.bf16.mxu0 0
        %3053 = vmatpush1.bf16.msra.mxu0 0
        %3054 = vmatprep.subr.bf16.mxu0 0
        %3055 = vmatpush1.bf16.msra.mxu0 0
        %3056 = vmatprep.mubr.bf16.mxu0 0
        %3057 = vmatmul.mubr.bf16.gmra.mrb[0].mxu0 %v2905
        %v3058 = vpop.f32.mrb[0].mxu0
        %v3059 = vadd.f32 %v2808, %v3058
        %v3060 = vpop.f32.mrb[0].mxu0
        %v3061 = vadd.f32 %v2812, %v3060
        %v3062 = vpop.f32.mrb[0].mxu0
        %v3063 = vadd.f32 %v2808, %v3062
        %v3064 = vpop.f32.mrb[0].mxu0
        %v3065 = vadd.f32 %v2812, %v3064
        %3066 = vdwg.mxu0
        %3067 = vmatprep.subr.bf16.mxu0 %v2881
        %3068 = vmatpush1.bf16.msra.mxu0 %v2880
        %3069 = vmatprep.subr.bf16.mxu0 %v2930
        %3070 = vmatpush1.bf16.msra.mxu0 %v2927
        %3071 = vmatprep.subr.bf16.mxu0 0
        %3072 = vmatpush1.bf16.msra.mxu0 0
        %3073 = vmatprep.subr.bf16.mxu0 0
        %3074 = vmatpush1.bf16.msra.mxu0 0
        %3075 = vmatprep.subr.bf16.mxu0 0
        %3076 = vmatpush1.bf16.msra.mxu0 0
        %3077 = vmatprep.subr.bf16.mxu0 0
        %3078 = vmatpush1.bf16.msra.mxu0 0
        %3079 = vmatprep.subr.bf16.mxu0 0
        %3080 = vmatpush1.bf16.msra.mxu0 0
        %3081 = vmatprep.subr.bf16.mxu0 0
        %3082 = vmatpush1.bf16.msra.mxu0 0
        %3083 = vmatprep.subr.bf16.mxu0 0
        %3084 = vmatpush1.bf16.msra.mxu0 0
        %3085 = vmatprep.subr.bf16.mxu0 0
        %3086 = vmatpush1.bf16.msra.mxu0 0
        %3087 = vmatprep.subr.bf16.mxu0 0
        %3088 = vmatpush1.bf16.msra.mxu0 0
        %3089 = vmatprep.subr.bf16.mxu0 0
        %3090 = vmatpush1.bf16.msra.mxu0 0
        %3091 = vmatprep.subr.bf16.mxu0 0
        %3092 = vmatpush1.bf16.msra.mxu0 0
        %3093 = vmatprep.subr.bf16.mxu0 0
        %3094 = vmatpush1.bf16.msra.mxu0 0
        %3095 = vmatprep.subr.bf16.mxu0 0
        %3096 = vmatpush1.bf16.msra.mxu0 0
        %3097 = vmatprep.subr.bf16.mxu0 0
        %3098 = vmatpush1.bf16.msra.mxu0 0
        %3099 = vmatprep.mubr.bf16.mxu0 0
        %3100 = vmatmul.mubr.bf16.gmra.mrb[0].mxu0 %v2905
        %v3101 = vpop.f32.mrb[0].mxu0
        %v3102 = vadd.f32 %v2816, %v3101
        %v3103 = vpop.f32.mrb[0].mxu0
        %v3104 = vadd.f32 %v2820, %v3103
        %v3105 = vpop.f32.mrb[0].mxu0
        %v3106 = vadd.f32 %v2816, %v3105
        %v3107 = vpop.f32.mrb[0].mxu0
        %v3108 = vadd.f32 %v2820, %v3107
        %3109 = vdwg.mxu0
        %3110 = vmatprep.subr.bf16.mxu0 %v2883
        %3111 = vmatpush1.bf16.msra.mxu0 %v2882
        %3112 = vmatprep.subr.bf16.mxu0 %v2936
        %3113 = vmatpush1.bf16.msra.mxu0 %v2933
        %3114 = vmatprep.subr.bf16.mxu0 0
        %3115 = vmatpush1.bf16.msra.mxu0 0
        %3116 = vmatprep.subr.bf16.mxu0 0
        %3117 = vmatpush1.bf16.msra.mxu0 0
        %3118 = vmatprep.subr.bf16.mxu0 0
        %3119 = vmatpush1.bf16.msra.mxu0 0
        %3120 = vmatprep.subr.bf16.mxu0 0
        %3121 = vmatpush1.bf16.msra.mxu0 0
        %3122 = vmatprep.subr.bf16.mxu0 0
        %3123 = vmatpush1.bf16.msra.mxu0 0
        %3124 = vmatprep.subr.bf16.mxu0 0
        %3125 = vmatpush1.bf16.msra.mxu0 0
        %3126 = vmatprep.subr.bf16.mxu0 0
        %3127 = vmatpush1.bf16.msra.mxu0 0
        %3128 = vmatprep.subr.bf16.mxu0 0
        %3129 = vmatpush1.bf16.msra.mxu0 0
        %3130 = vmatprep.subr.bf16.mxu0 0
        %3131 = vmatpush1.bf16.msra.mxu0 0
        %3132 = vmatprep.subr.bf16.mxu0 0
        %3133 = vmatpush1.bf16.msra.mxu0 0
        %3134 = vmatprep.subr.bf16.mxu0 0
        %3135 = vmatpush1.bf16.msra.mxu0 0
        %3136 = vmatprep.subr.bf16.mxu0 0
        %3137 = vmatpush1.bf16.msra.mxu0 0
        %3138 = vmatprep.subr.bf16.mxu0 0
        %3139 = vmatpush1.bf16.msra.mxu0 0
        %3140 = vmatprep.subr.bf16.mxu0 0
        %3141 = vmatpush1.bf16.msra.mxu0 0
        %3142 = vmatprep.mubr.bf16.mxu0 0
        %3143 = vmatmul.mubr.bf16.gmra.mrb[0].mxu0 %v2905
        %v3144 = vpop.f32.mrb[0].mxu0
        %v3145 = vadd.f32 %v2824, %v3144
        %v3146 = vpop.f32.mrb[0].mxu0
        %v3147 = vadd.f32 %v2828, %v3146
        %v3148 = vpop.f32.mrb[0].mxu0
        %v3149 = vadd.f32 %v2824, %v3148
        %v3150 = vpop.f32.mrb[0].mxu0
        %v3151 = vadd.f32 %v2828, %v3150
        %3152 = vdwg.mxu0
        %v3153 = vmax.f32 %v2973, 0.0
        %v3154 = vmax.f32 %v2975, 0.0
        %v3155 = vmax.f32 %v3016, 0.0
        %v3156 = vmax.f32 %v3018, 0.0
        %v3157 = vmax.f32 %v3059, 0.0
        %v3158 = vmax.f32 %v3061, 0.0
        %v3159 = vmax.f32 %v3102, 0.0
        %v3160 = vmax.f32 %v3104, 0.0
        %v3161 = vmax.f32 %v3145, 0.0
        %v3162 = vmax.f32 %v3147, 0.0
        %v3163 = vmax.f32 %v2977, 0.0
        %v3164 = vmax.f32 %v2979, 0.0
        %v3165 = vmax.f32 %v3020, 0.0
        %v3166 = vmax.f32 %v3022, 0.0
        %v3167 = vmax.f32 %v3063, 0.0
        %v3168 = vmax.f32 %v3065, 0.0
        %v3169 = vmax.f32 %v3106, 0.0
        %v3170 = vmax.f32 %v3108, 0.0
        %v3171 = vmax.f32 %v3149, 0.0
        %v3172 = vmax.f32 %v3151, 0.0
        %v3173 = vrot.slane %v3153, 4
        %v3174 = vadd.f32 %v3153, %v3173
        %v3175 = vrot.slane %v3174, 2
        %v3176 = vadd.f32 %v3174, %v3175
        %v3177 = vrot.slane %v3176, 1
        %v3178 = vadd.f32 %v3176, %v3177
        %v3179 = vrot.slane %v3154, 4
        %v3180 = vadd.f32 %v3154, %v3179
        %v3181 = vrot.slane %v3180, 2
        %v3182 = vadd.f32 %v3180, %v3181
        %v3183 = vrot.slane %v3182, 1
        %v3184 = vadd.f32 %v3182, %v3183
        %v3185 = vrot.slane %v3155, 4
        %v3186 = vadd.f32 %v3155, %v3185
        %v3187 = vrot.slane %v3186, 2
        %v3188 = vadd.f32 %v3186, %v3187
        %v3189 = vrot.slane %v3188, 1
        %v3190 = vadd.f32 %v3188, %v3189
        %v3191 = vrot.slane %v3156, 4
        %v3192 = vadd.f32 %v3156, %v3191
        %v3193 = vrot.slane %v3192, 2
        %v3194 = vadd.f32 %v3192, %v3193
        %v3195 = vrot.slane %v3194, 1
        %v3196 = vadd.f32 %v3194, %v3195
        %v3197 = vrot.slane %v3157, 4
        %v3198 = vadd.f32 %v3157, %v3197
        %v3199 = vrot.slane %v3198, 2
        %v3200 = vadd.f32 %v3198, %v3199
        %v3201 = vrot.slane %v3200, 1
        %v3202 = vadd.f32 %v3200, %v3201
        %v3203 = vrot.slane %v3158, 4
        %v3204 = vadd.f32 %v3158, %v3203
        %v3205 = vrot.slane %v3204, 2
        %v3206 = vadd.f32 %v3204, %v3205
        %v3207 = vrot.slane %v3206, 1
        %v3208 = vadd.f32 %v3206, %v3207
        %v3209 = vrot.slane %v3159, 4
        %v3210 = vadd.f32 %v3159, %v3209
        %v3211 = vrot.slane %v3210, 2
        %v3212 = vadd.f32 %v3210, %v3211
        %v3213 = vrot.slane %v3212, 1
        %v3214 = vadd.f32 %v3212, %v3213
        %v3215 = vrot.slane %v3160, 4
        %v3216 = vadd.f32 %v3160, %v3215
        %v3217 = vrot.slane %v3216, 2
        %v3218 = vadd.f32 %v3216, %v3217
        %v3219 = vrot.slane %v3218, 1
        %v3220 = vadd.f32 %v3218, %v3219
        %v3221 = vrot.slane %v3161, 4
        %v3222 = vadd.f32 %v3161, %v3221
        %v3223 = vrot.slane %v3222, 2
        %v3224 = vadd.f32 %v3222, %v3223
        %v3225 = vrot.slane %v3224, 1
        %v3226 = vadd.f32 %v3224, %v3225
        %v3227 = vrot.slane %v3162, 4
        %v3228 = vadd.f32 %v3162, %v3227
        %v3229 = vrot.slane %v3228, 2
        %v3230 = vadd.f32 %v3228, %v3229
        %v3231 = vrot.slane %v3230, 1
        %v3232 = vadd.f32 %v3230, %v3231
        %v3233 = vrot.slane %v3163, 4
        %v3234 = vadd.f32 %v3163, %v3233
        %v3235 = vrot.slane %v3234, 2
        %v3236 = vadd.f32 %v3234, %v3235
        %v3237 = vrot.slane %v3236, 1
        %v3238 = vadd.f32 %v3236, %v3237
        %v3239 = vrot.slane %v3164, 4
        %v3240 = vadd.f32 %v3164, %v3239
        %v3241 = vrot.slane %v3240, 2
        %v3242 = vadd.f32 %v3240, %v3241
        %v3243 = vrot.slane %v3242, 1
        %v3244 = vadd.f32 %v3242, %v3243
        %v3245 = vrot.slane %v3165, 4
        %v3246 = vadd.f32 %v3165, %v3245
        %v3247 = vrot.slane %v3246, 2
        %v3248 = vadd.f32 %v3246, %v3247
        %v3249 = vrot.slane %v3248, 1
        %v3250 = vadd.f32 %v3248, %v3249
        %v3251 = vrot.slane %v3166, 4
        %v3252 = vadd.f32 %v3166, %v3251
        %v3253 = vrot.slane %v3252, 2
        %v3254 = vadd.f32 %v3252, %v3253
        %v3255 = vrot.slane %v3254, 1
        %v3256 = vadd.f32 %v3254, %v3255
        %v3257 = vrot.slane %v3167, 4
        %v3258 = vadd.f32 %v3167, %v3257
        %v3259 = vrot.slane %v3258, 2
        %v3260 = vadd.f32 %v3258, %v3259
        %v3261 = vrot.slane %v3260, 1
        %v3262 = vadd.f32 %v3260, %v3261
        %v3263 = vrot.slane %v3168, 4
        %v3264 = vadd.f32 %v3168, %v3263
        %v3265 = vrot.slane %v3264, 2
        %v3266 = vadd.f32 %v3264, %v3265
        %v3267 = vrot.slane %v3266, 1
        %v3268 = vadd.f32 %v3266, %v3267
        %v3269 = vrot.slane %v3169, 4
        %v3270 = vadd.f32 %v3169, %v3269
        %v3271 = vrot.slane %v3270, 2
        %v3272 = vadd.f32 %v3270, %v3271
        %v3273 = vrot.slane %v3272, 1
        %v3274 = vadd.f32 %v3272, %v3273
        %v3275 = vrot.slane %v3170, 4
        %v3276 = vadd.f32 %v3170, %v3275
        %v3277 = vrot.slane %v3276, 2
        %v3278 = vadd.f32 %v3276, %v3277
        %v3279 = vrot.slane %v3278, 1
        %v3280 = vadd.f32 %v3278, %v3279
        %v3281 = vrot.slane %v3171, 4
        %v3282 = vadd.f32 %v3171, %v3281
        %v3283 = vrot.slane %v3282, 2
        %v3284 = vadd.f32 %v3282, %v3283
        %v3285 = vrot.slane %v3284, 1
        %v3286 = vadd.f32 %v3284, %v3285
        %v3287 = vrot.slane %v3172, 4
        %v3288 = vadd.f32 %v3172, %v3287
        %v3289 = vrot.slane %v3288, 2
        %v3290 = vadd.f32 %v3288, %v3289
        %v3291 = vrot.slane %v3290, 1
        %v3292 = vadd.f32 %v3290, %v3291
        %v3293 = vmul.f32 %v3178, %v490
        %v3294 = vmul.f32 %v3184, %v490
        %v3295 = vmul.f32 %v3190, %v490
        %v3296 = vmul.f32 %v3196, %v490
        %v3297 = vmul.f32 %v3202, %v490
        %v3298 = vmul.f32 %v3208, %v490
        %v3299 = vmul.f32 %v3214, %v490
        %v3300 = vmul.f32 %v3220, %v490
        %v3301 = vmul.f32 %v3226, %v490
        %v3302 = vmul.f32 %v3232, %v490
        %v3303 = vmul.f32 %v3238, %v490
        %v3304 = vmul.f32 %v3244, %v490
        %v3305 = vmul.f32 %v3250, %v490
        %v3306 = vmul.f32 %v3256, %v490
        %v3307 = vmul.f32 %v3262, %v490
        %v3308 = vmul.f32 %v3268, %v490
        %v3309 = vmul.f32 %v3274, %v490
        %v3310 = vmul.f32 %v3280, %v490
        %v3311 = vmul.f32 %v3286, %v490
        %v3312 = vmul.f32 %v3292, %v490
        %v3313 = vsub.f32 %v3153, %v3293
        %v3314 = vsub.f32 %v3154, %v3294
        %v3315 = vsub.f32 %v3155, %v3295
        %v3316 = vsub.f32 %v3156, %v3296
        %v3317 = vsub.f32 %v3157, %v3297
        %v3318 = vsub.f32 %v3158, %v3298
        %v3319 = vsub.f32 %v3159, %v3299
        %v3320 = vsub.f32 %v3160, %v3300
        %v3321 = vsub.f32 %v3161, %v3301
        %v3322 = vsub.f32 %v3162, %v3302
        %v3323 = vsub.f32 %v3163, %v3303
        %v3324 = vsub.f32 %v3164, %v3304
        %v3325 = vsub.f32 %v3165, %v3305
        %v3326 = vsub.f32 %v3166, %v3306
        %v3327 = vsub.f32 %v3167, %v3307
        %v3328 = vsub.f32 %v3168, %v3308
        %v3329 = vsub.f32 %v3169, %v3309
        %v3330 = vsub.f32 %v3170, %v3310
        %v3331 = vsub.f32 %v3171, %v3311
        %v3332 = vsub.f32 %v3172, %v3312
        %v3333 = vmul.f32 %v3313, %v3313
        %v3334 = vmul.f32 %v3314, %v3314
        %v3335 = vmul.f32 %v3315, %v3315
        %v3336 = vmul.f32 %v3316, %v3316
        %v3337 = vmul.f32 %v3317, %v3317
        %v3338 = vmul.f32 %v3318, %v3318
        %v3339 = vmul.f32 %v3319, %v3319
        %v3340 = vmul.f32 %v3320, %v3320
        %v3341 = vmul.f32 %v3321, %v3321
        %v3342 = vmul.f32 %v3322, %v3322
        %v3343 = vmul.f32 %v3323, %v3323
        %v3344 = vmul.f32 %v3324, %v3324
        %v3345 = vmul.f32 %v3325, %v3325
        %v3346 = vmul.f32 %v3326, %v3326
        %v3347 = vmul.f32 %v3327, %v3327
        %v3348 = vmul.f32 %v3328, %v3328
        %v3349 = vmul.f32 %v3329, %v3329
        %v3350 = vmul.f32 %v3330, %v3330
        %v3351 = vmul.f32 %v3331, %v3331
        %v3352 = vmul.f32 %v3332, %v3332
        %v3353 = vrot.slane %v3333, 4
        %v3354 = vadd.f32 %v3333, %v3353
        %v3355 = vrot.slane %v3354, 2
        %v3356 = vadd.f32 %v3354, %v3355
        %v3357 = vrot.slane %v3356, 1
        %v3358 = vadd.f32 %v3356, %v3357
        %v3359 = vrot.slane %v3334, 4
        %v3360 = vadd.f32 %v3334, %v3359
        %v3361 = vrot.slane %v3360, 2
        %v3362 = vadd.f32 %v3360, %v3361
        %v3363 = vrot.slane %v3362, 1
        %v3364 = vadd.f32 %v3362, %v3363
        %v3365 = vrot.slane %v3335, 4
        %v3366 = vadd.f32 %v3335, %v3365
        %v3367 = vrot.slane %v3366, 2
        %v3368 = vadd.f32 %v3366, %v3367
        %v3369 = vrot.slane %v3368, 1
        %v3370 = vadd.f32 %v3368, %v3369
        %v3371 = vrot.slane %v3336, 4
        %v3372 = vadd.f32 %v3336, %v3371
        %v3373 = vrot.slane %v3372, 2
        %v3374 = vadd.f32 %v3372, %v3373
        %v3375 = vrot.slane %v3374, 1
        %v3376 = vadd.f32 %v3374, %v3375
        %v3377 = vrot.slane %v3337, 4
        %v3378 = vadd.f32 %v3337, %v3377
        %v3379 = vrot.slane %v3378, 2
        %v3380 = vadd.f32 %v3378, %v3379
        %v3381 = vrot.slane %v3380, 1
        %v3382 = vadd.f32 %v3380, %v3381
        %v3383 = vrot.slane %v3338, 4
        %v3384 = vadd.f32 %v3338, %v3383
        %v3385 = vrot.slane %v3384, 2
        %v3386 = vadd.f32 %v3384, %v3385
        %v3387 = vrot.slane %v3386, 1
        %v3388 = vadd.f32 %v3386, %v3387
        %v3389 = vrot.slane %v3339, 4
        %v3390 = vadd.f32 %v3339, %v3389
        %v3391 = vrot.slane %v3390, 2
        %v3392 = vadd.f32 %v3390, %v3391
        %v3393 = vrot.slane %v3392, 1
        %v3394 = vadd.f32 %v3392, %v3393
        %v3395 = vrot.slane %v3340, 4
        %v3396 = vadd.f32 %v3340, %v3395
        %v3397 = vrot.slane %v3396, 2
        %v3398 = vadd.f32 %v3396, %v3397
        %v3399 = vrot.slane %v3398, 1
        %v3400 = vadd.f32 %v3398, %v3399
        %v3401 = vrot.slane %v3341, 4
        %v3402 = vadd.f32 %v3341, %v3401
        %v3403 = vrot.slane %v3402, 2
        %v3404 = vadd.f32 %v3402, %v3403
        %v3405 = vrot.slane %v3404, 1
        %v3406 = vadd.f32 %v3404, %v3405
        %v3407 = vrot.slane %v3342, 4
        %v3408 = vadd.f32 %v3342, %v3407
        %v3409 = vrot.slane %v3408, 2
        %v3410 = vadd.f32 %v3408, %v3409
        %v3411 = vrot.slane %v3410, 1
        %v3412 = vadd.f32 %v3410, %v3411
        %v3413 = vrot.slane %v3343, 4
        %v3414 = vadd.f32 %v3343, %v3413
        %v3415 = vrot.slane %v3414, 2
        %v3416 = vadd.f32 %v3414, %v3415
        %v3417 = vrot.slane %v3416, 1
        %v3418 = vadd.f32 %v3416, %v3417
        %v3419 = vrot.slane %v3344, 4
        %v3420 = vadd.f32 %v3344, %v3419
        %v3421 = vrot.slane %v3420, 2
        %v3422 = vadd.f32 %v3420, %v3421
        %v3423 = vrot.slane %v3422, 1
        %v3424 = vadd.f32 %v3422, %v3423
        %v3425 = vrot.slane %v3345, 4
        %v3426 = vadd.f32 %v3345, %v3425
        %v3427 = vrot.slane %v3426, 2
        %v3428 = vadd.f32 %v3426, %v3427
        %v3429 = vrot.slane %v3428, 1
        %v3430 = vadd.f32 %v3428, %v3429
        %v3431 = vrot.slane %v3346, 4
        %v3432 = vadd.f32 %v3346, %v3431
        %v3433 = vrot.slane %v3432, 2
        %v3434 = vadd.f32 %v3432, %v3433
        %v3435 = vrot.slane %v3434, 1
        %v3436 = vadd.f32 %v3434, %v3435
        %v3437 = vrot.slane %v3347, 4
        %v3438 = vadd.f32 %v3347, %v3437
        %v3439 = vrot.slane %v3438, 2
        %v3440 = vadd.f32 %v3438, %v3439
        %v3441 = vrot.slane %v3440, 1
        %v3442 = vadd.f32 %v3440, %v3441
        %v3443 = vrot.slane %v3348, 4
        %v3444 = vadd.f32 %v3348, %v3443
        %v3445 = vrot.slane %v3444, 2
        %v3446 = vadd.f32 %v3444, %v3445
        %v3447 = vrot.slane %v3446, 1
        %v3448 = vadd.f32 %v3446, %v3447
        %v3449 = vrot.slane %v3349, 4
        %v3450 = vadd.f32 %v3349, %v3449
        %v3451 = vrot.slane %v3450, 2
        %v3452 = vadd.f32 %v3450, %v3451
        %v3453 = vrot.slane %v3452, 1
        %v3454 = vadd.f32 %v3452, %v3453
        %v3455 = vrot.slane %v3350, 4
        %v3456 = vadd.f32 %v3350, %v3455
        %v3457 = vrot.slane %v3456, 2
        %v3458 = vadd.f32 %v3456, %v3457
        %v3459 = vrot.slane %v3458, 1
        %v3460 = vadd.f32 %v3458, %v3459
        %v3461 = vrot.slane %v3351, 4
        %v3462 = vadd.f32 %v3351, %v3461
        %v3463 = vrot.slane %v3462, 2
        %v3464 = vadd.f32 %v3462, %v3463
        %v3465 = vrot.slane %v3464, 1
        %v3466 = vadd.f32 %v3464, %v3465
        %v3467 = vrot.slane %v3352, 4
        %v3468 = vadd.f32 %v3352, %v3467
        %v3469 = vrot.slane %v3468, 2
        %v3470 = vadd.f32 %v3468, %v3469
        %v3471 = vrot.slane %v3470, 1
        %v3472 = vadd.f32 %v3470, %v3471
        %v3473 = vmul.f32 %v3358, %v490
        %v3474 = vmul.f32 %v3364, %v490
        %v3475 = vmul.f32 %v3370, %v490
        %v3476 = vmul.f32 %v3376, %v490
        %v3477 = vmul.f32 %v3382, %v490
        %v3478 = vmul.f32 %v3388, %v490
        %v3479 = vmul.f32 %v3394, %v490
        %v3480 = vmul.f32 %v3400, %v490
        %v3481 = vmul.f32 %v3406, %v490
        %v3482 = vmul.f32 %v3412, %v490
        %v3483 = vmul.f32 %v3418, %v490
        %v3484 = vmul.f32 %v3424, %v490
        %v3485 = vmul.f32 %v3430, %v490
        %v3486 = vmul.f32 %v3436, %v490
        %v3487 = vmul.f32 %v3442, %v490
        %v3488 = vmul.f32 %v3448, %v490
        %v3489 = vmul.f32 %v3454, %v490
        %v3490 = vmul.f32 %v3460, %v490
        %v3491 = vmul.f32 %v3466, %v490
        %v3492 = vmul.f32 %v3472, %v490
        %v3493 = vadd.f32 %v3473, 1e-05
        %v3494 = vadd.f32 %v3474, 1e-05
        %v3495 = vadd.f32 %v3475, 1e-05
        %v3496 = vadd.f32 %v3476, 1e-05
        %v3497 = vadd.f32 %v3477, 1e-05
        %v3498 = vadd.f32 %v3478, 1e-05
        %v3499 = vadd.f32 %v3479, 1e-05
        %v3500 = vadd.f32 %v3480, 1e-05
        %v3501 = vadd.f32 %v3481, 1e-05
        %v3502 = vadd.f32 %v3482, 1e-05
        %v3503 = vadd.f32 %v3483, 1e-05
        %v3504 = vadd.f32 %v3484, 1e-05
        %v3505 = vadd.f32 %v3485, 1e-05
        %v3506 = vadd.f32 %v3486, 1e-05
        %v3507 = vadd.f32 %v3487, 1e-05
        %v3508 = vadd.f32 %v3488, 1e-05
        %v3509 = vadd.f32 %v3489, 1e-05
        %v3510 = vadd.f32 %v3490, 1e-05
        %v3511 = vadd.f32 %v3491, 1e-05
        %v3512 = vadd.f32 %v3492, 1e-05
        %v3513 = vrsqrt.pop %v3493
        %v3514 = vrsqrt.pop %v3494
        %v3515 = vrsqrt.pop %v3495
        %v3516 = vrsqrt.pop %v3496
        %v3517 = vrsqrt.pop %v3497
        %v3518 = vrsqrt.pop %v3498
        %v3519 = vrsqrt.pop %v3499
        %v3520 = vrsqrt.pop %v3500
        %v3521 = vrsqrt.pop %v3501
        %v3522 = vrsqrt.pop %v3502
        %v3523 = vrsqrt.pop %v3503
        %v3524 = vrsqrt.pop %v3504
        %v3525 = vrsqrt.pop %v3505
        %v3526 = vrsqrt.pop %v3506
        %v3527 = vrsqrt.pop %v3507
        %v3528 = vrsqrt.pop %v3508
        %v3529 = vrsqrt.pop %v3509
        %v3530 = vrsqrt.pop %v3510
        %v3531 = vrsqrt.pop %v3511
        %v3532 = vrsqrt.pop %v3512
        %v3533 = vmul.f32 %v452, %v3513
        %v3534 = vmul.f32 %v453, %v3514
        %v3535 = vmul.f32 %v454, %v3515
        %v3536 = vmul.f32 %v455, %v3516
        %v3537 = vmul.f32 %v456, %v3517
        %v3538 = vmul.f32 %v457, %v3518
        %v3539 = vmul.f32 %v458, %v3519
        %v3540 = vmul.f32 %v459, %v3520
        %v3541 = vmul.f32 %v460, %v3521
        %v3542 = vmul.f32 %v461, %v3522
        %v3543 = vmul.f32 %v452, %v3523
        %v3544 = vmul.f32 %v453, %v3524
        %v3545 = vmul.f32 %v454, %v3525
        %v3546 = vmul.f32 %v455, %v3526
        %v3547 = vmul.f32 %v456, %v3527
        %v3548 = vmul.f32 %v457, %v3528
        %v3549 = vmul.f32 %v458, %v3529
        %v3550 = vmul.f32 %v459, %v3530
        %v3551 = vmul.f32 %v460, %v3531
        %v3552 = vmul.f32 %v461, %v3532
        %v3553 = vlaneseq
        %v3554 = vshrl.u32 %v3553, 7
        %v3555 = vsub.s32 4, %v3554
        %v3556 = vrot.slane %v3533, %v3555
        %v3557 = vlaneseq
        %v3558 = vshrl.u32 %v3557, 7
        %v3559 = vsub.s32 4, %v3558
        %v3560 = vrot.slane %v3534, %v3559
        %v3561 = vlaneseq
        %v3562 = vshrl.u32 %v3561, 7
        %v3563 = vsub.s32 4, %v3562
        %v3564 = vrot.slane %v3535, %v3563
        %v3565 = vlaneseq
        %v3566 = vshrl.u32 %v3565, 7
        %v3567 = vsub.s32 4, %v3566
        %v3568 = vrot.slane %v3536, %v3567
        %v3569 = vlaneseq
        %v3570 = vshrl.u32 %v3569, 7
        %v3571 = vsub.s32 4, %v3570
        %v3572 = vrot.slane %v3537, %v3571
        %v3573 = vlaneseq
        %v3574 = vshrl.u32 %v3573, 7
        %v3575 = vsub.s32 4, %v3574
        %v3576 = vrot.slane %v3538, %v3575
        %v3577 = vlaneseq
        %v3578 = vshrl.u32 %v3577, 7
        %v3579 = vsub.s32 4, %v3578
        %v3580 = vrot.slane %v3539, %v3579
        %v3581 = vlaneseq
        %v3582 = vshrl.u32 %v3581, 7
        %v3583 = vsub.s32 4, %v3582
        %v3584 = vrot.slane %v3540, %v3583
        %v3585 = vlaneseq
        %v3586 = vshrl.u32 %v3585, 7
        %v3587 = vsub.s32 4, %v3586
        %v3588 = vrot.slane %v3541, %v3587
        %v3589 = vlaneseq
        %v3590 = vshrl.u32 %v3589, 7
        %v3591 = vsub.s32 4, %v3590
        %v3592 = vrot.slane %v3542, %v3591
        %v3593 = vlaneseq
        %v3594 = vshrl.u32 %v3593, 7
        %v3595 = vsub.s32 4, %v3594
        %v3596 = vrot.slane %v3543, %v3595
        %v3597 = vlaneseq
        %v3598 = vshrl.u32 %v3597, 7
        %v3599 = vsub.s32 4, %v3598
        %v3600 = vrot.slane %v3544, %v3599
        %v3601 = vlaneseq
        %v3602 = vshrl.u32 %v3601, 7
        %v3603 = vsub.s32 4, %v3602
        %v3604 = vrot.slane %v3545, %v3603
        %v3605 = vlaneseq
        %v3606 = vshrl.u32 %v3605, 7
        %v3607 = vsub.s32 4, %v3606
        %v3608 = vrot.slane %v3546, %v3607
        %v3609 = vlaneseq
        %v3610 = vshrl.u32 %v3609, 7
        %v3611 = vsub.s32 4, %v3610
        %v3612 = vrot.slane %v3547, %v3611
        %v3613 = vlaneseq
        %v3614 = vshrl.u32 %v3613, 7
        %v3615 = vsub.s32 4, %v3614
        %v3616 = vrot.slane %v3548, %v3615
        %v3617 = vlaneseq
        %v3618 = vshrl.u32 %v3617, 7
        %v3619 = vsub.s32 4, %v3618
        %v3620 = vrot.slane %v3549, %v3619
        %v3621 = vlaneseq
        %v3622 = vshrl.u32 %v3621, 7
        %v3623 = vsub.s32 4, %v3622
        %v3624 = vrot.slane %v3550, %v3623
        %v3625 = vlaneseq
        %v3626 = vshrl.u32 %v3625, 7
        %v3627 = vsub.s32 4, %v3626
        %v3628 = vrot.slane %v3551, %v3627
        %v3629 = vlaneseq
        %v3630 = vshrl.u32 %v3629, 7
        %v3631 = vsub.s32 4, %v3630
        %v3632 = vrot.slane %v3552, %v3631
        %v3633 = vmul.f32 %v3313, %v3556
        %v3634 = vmul.f32 %v3314, %v3560
        %v3635 = vmul.f32 %v3315, %v3564
        %v3636 = vmul.f32 %v3316, %v3568
        %v3637 = vmul.f32 %v3317, %v3572
        %v3638 = vmul.f32 %v3318, %v3576
        %v3639 = vmul.f32 %v3319, %v3580
        %v3640 = vmul.f32 %v3320, %v3584
        %v3641 = vmul.f32 %v3321, %v3588
        %v3642 = vmul.f32 %v3322, %v3592
        %v3643 = vmul.f32 %v3323, %v3596
        %v3644 = vmul.f32 %v3324, %v3600
        %v3645 = vmul.f32 %v3325, %v3604
        %v3646 = vmul.f32 %v3326, %v3608
        %v3647 = vmul.f32 %v3327, %v3612
        %v3648 = vmul.f32 %v3328, %v3616
        %v3649 = vmul.f32 %v3329, %v3620
        %v3650 = vmul.f32 %v3330, %v3624
        %v3651 = vmul.f32 %v3331, %v3628
        %v3652 = vmul.f32 %v3332, %v3632
        %v3653 = vlaneseq
        %v3654 = vshrl.u32 %v3653, 7
        %v3655 = vsub.s32 5, %v3654
        %v3656 = vrot.slane %v452, %v3655
        %v3657 = vlaneseq
        %v3658 = vshrl.u32 %v3657, 7
        %v3659 = vsub.s32 5, %v3658
        %v3660 = vrot.slane %v453, %v3659
        %v3661 = vlaneseq
        %v3662 = vshrl.u32 %v3661, 7
        %v3663 = vsub.s32 5, %v3662
        %v3664 = vrot.slane %v454, %v3663
        %v3665 = vlaneseq
        %v3666 = vshrl.u32 %v3665, 7
        %v3667 = vsub.s32 5, %v3666
        %v3668 = vrot.slane %v455, %v3667
        %v3669 = vlaneseq
        %v3670 = vshrl.u32 %v3669, 7
        %v3671 = vsub.s32 5, %v3670
        %v3672 = vrot.slane %v456, %v3671
        %v3673 = vlaneseq
        %v3674 = vshrl.u32 %v3673, 7
        %v3675 = vsub.s32 5, %v3674
        %v3676 = vrot.slane %v457, %v3675
        %v3677 = vlaneseq
        %v3678 = vshrl.u32 %v3677, 7
        %v3679 = vsub.s32 5, %v3678
        %v3680 = vrot.slane %v458, %v3679
        %v3681 = vlaneseq
        %v3682 = vshrl.u32 %v3681, 7
        %v3683 = vsub.s32 5, %v3682
        %v3684 = vrot.slane %v459, %v3683
        %v3685 = vlaneseq
        %v3686 = vshrl.u32 %v3685, 7
        %v3687 = vsub.s32 5, %v3686
        %v3688 = vrot.slane %v460, %v3687
        %v3689 = vlaneseq
        %v3690 = vshrl.u32 %v3689, 7
        %v3691 = vsub.s32 5, %v3690
        %v3692 = vrot.slane %v461, %v3691
        %v3693 = vadd.f32 %v3633, %v3656
        %v3694 = vadd.f32 %v3634, %v3660
        %v3695 = vadd.f32 %v3635, %v3664
        %v3696 = vadd.f32 %v3636, %v3668
        %v3697 = vadd.f32 %v3637, %v3672
        %v3698 = vadd.f32 %v3638, %v3676
        %v3699 = vadd.f32 %v3639, %v3680
        %v3700 = vadd.f32 %v3640, %v3684
        %v3701 = vadd.f32 %v3641, %v3688
        %v3702 = vadd.f32 %v3642, %v3692
        %v3703 = vadd.f32 %v3643, %v3656
        %v3704 = vadd.f32 %v3644, %v3660
        %v3705 = vadd.f32 %v3645, %v3664
        %v3706 = vadd.f32 %v3646, %v3668
        %v3707 = vadd.f32 %v3647, %v3672
        %v3708 = vadd.f32 %v3648, %v3676
        %v3709 = vadd.f32 %v3649, %v3680
        %v3710 = vadd.f32 %v3650, %v3684
        %v3711 = vadd.f32 %v3651, %v3688
        %v3712 = vadd.f32 %v3652, %v3692
        %v3713 = vld [vmem:[#allocation13] sm:$0xff]
        %v3714 = vld [vmem:[#allocation13 + $0x8] sm:$0xff]
        %v3715 = vld [vmem:[#allocation13 + $0x10] sm:$0xff]
        %v3716 = vld [vmem:[#allocation13 + $0x18] sm:$0xff]
        %v3717 = vld [vmem:[#allocation13 + $0x20] sm:$0xff]
        %v3718 = vld [vmem:[#allocation13 + $0x28] sm:$0xff]
        %v3719 = vld [vmem:[#allocation13 + $0x30] sm:$0xff]
        %v3720 = vld [vmem:[#allocation13 + $0x38] sm:$0xff]
        %v3721 = vld [vmem:[#allocation13 + $0x40] sm:$0xff]
        %v3722 = vld [vmem:[#allocation13 + $0x48] sm:$0xff]
        %v3723 = vld [vmem:[#allocation13 + $0x50] sm:$0xff]
        %v3724 = vld [vmem:[#allocation13 + $0x58] sm:$0xff]
        %v3725 = vld [vmem:[#allocation13 + $0x60] sm:$0xff]
        %v3726 = vld [vmem:[#allocation13 + $0x68] sm:$0xff]
        %v3727 = vld [vmem:[#allocation13 + $0x70] sm:$0xff]
        %v3728 = vld [vmem:[#allocation13 + $0x78] sm:$0xff]
        %v3729 = vld [vmem:[#allocation13 + $0x80] sm:$0xff]
        %v3730 = vld [vmem:[#allocation13 + $0x88] sm:$0xff]
        %v3731 = vld [vmem:[#allocation13 + $0x90] sm:$0xff]
        %v3732 = vld [vmem:[#allocation13 + $0x98] sm:$0xff]
        %v3733 = vld [vmem:[#allocation13 + $0xa0] sm:$0xff]
        %v3734 = vld [vmem:[#allocation13 + $0xa8] sm:$0xff]
        %v3735 = vld [vmem:[#allocation13 + $0xb0] sm:$0xff]
        %v3736 = vld [vmem:[#allocation13 + $0xb8] sm:$0xff]
        %v3737 = vld [vmem:[#allocation13 + $0xc0] sm:$0xff]
        %v3738 = vld [vmem:[#allocation13 + $0xc8] sm:$0xff]
        %v3739 = vld [vmem:[#allocation13 + $0xd0] sm:$0xff]
        %v3740 = vld [vmem:[#allocation13 + $0xd8] sm:$0xff]
        %v3741 = vld [vmem:[#allocation13 + $0xe0] sm:$0xff]
        %v3742 = vld [vmem:[#allocation13 + $0xe8] sm:$0xff]
        %v3743 = vld [vmem:[#allocation13 + $0xf0] sm:$0xff]
        %v3744 = vld [vmem:[#allocation13 + $0xf8] sm:$0xff]
        %v3745 = vld [vmem:[#allocation13 + $0x100] sm:$0xff]
        %v3746 = vld [vmem:[#allocation13 + $0x108] sm:$0xff]
        %v3747 = vld [vmem:[#allocation13 + $0x110] sm:$0xff]
        %v3748 = vld [vmem:[#allocation13 + $0x118] sm:$0xff]
        %v3749 = vld [vmem:[#allocation13 + $0x120] sm:$0xff]
        %v3750 = vld [vmem:[#allocation13 + $0x128] sm:$0xff]
        %v3751 = vld [vmem:[#allocation13 + $0x130] sm:$0xff]
        %v3752 = vld [vmem:[#allocation13 + $0x138] sm:$0xff]
        %v3753 = vld [vmem:[#allocation13 + $0x140] sm:$0xff]
        %v3754 = vld [vmem:[#allocation13 + $0x148] sm:$0xff]
        %v3755 = vld [vmem:[#allocation13 + $0x150] sm:$0xff]
        %v3756 = vld [vmem:[#allocation13 + $0x158] sm:$0xff]
        %v3757 = vld [vmem:[#allocation13 + $0x160] sm:$0xff]
        %v3758 = vld [vmem:[#allocation13 + $0x168] sm:$0xff]
        %v3759 = vld [vmem:[#allocation13 + $0x170] sm:$0xff]
        %v3760 = vld [vmem:[#allocation13 + $0x178] sm:$0xff]
        %v3761 = vld [vmem:[#allocation13 + $0x180] sm:$0xff]
        %v3762 = vld [vmem:[#allocation13 + $0x188] sm:$0xff]
        %v3763 = vld [vmem:[#allocation13 + $0x190] sm:$0xff]
        %v3764 = vld [vmem:[#allocation13 + $0x198] sm:$0xff]
        %v3765 = vld [vmem:[#allocation13 + $0x1a0] sm:$0xff]
        %v3766 = vld [vmem:[#allocation13 + $0x1a8] sm:$0xff]
        %v3767 = vld [vmem:[#allocation13 + $0x1b0] sm:$0xff]
        %v3768 = vld [vmem:[#allocation13 + $0x1b8] sm:$0xff]
        %v3769 = vld [vmem:[#allocation13 + $0x1c0] sm:$0xff]
        %v3770 = vld [vmem:[#allocation13 + $0x1c8] sm:$0xff]
        %v3771 = vld [vmem:[#allocation13 + $0x1d0] sm:$0xff]
        %v3772 = vld [vmem:[#allocation13 + $0x1d8] sm:$0xff]
        %v3773 = vld [vmem:[#allocation13 + $0x1e0] sm:$0xff]
        %v3774 = vld [vmem:[#allocation13 + $0x1e8] sm:$0xff]
        %v3775 = vld [vmem:[#allocation13 + $0x1f0] sm:$0xff]
        %v3776 = vld [vmem:[#allocation13 + $0x1f8] sm:$0xff]
        %v3777 = vld [vmem:[#allocation13 + $0x200] sm:$0xff]
        %v3778 = vld [vmem:[#allocation13 + $0x208] sm:$0xff]
        %v3779 = vld [vmem:[#allocation13 + $0x210] sm:$0xff]
        %v3780 = vld [vmem:[#allocation13 + $0x218] sm:$0xff]
        %v3781 = vld [vmem:[#allocation13 + $0x220] sm:$0xff]
        %v3782 = vld [vmem:[#allocation13 + $0x228] sm:$0xff]
        %v3783 = vld [vmem:[#allocation13 + $0x230] sm:$0xff]
        %v3784 = vld [vmem:[#allocation13 + $0x238] sm:$0xff]
        %v3785 = vld [vmem:[#allocation13 + $0x240] sm:$0xff]
        %v3786 = vld [vmem:[#allocation13 + $0x248] sm:$0xff]
        %v3787 = vld [vmem:[#allocation13 + $0x250] sm:$0xff]
        %v3788 = vld [vmem:[#allocation13 + $0x258] sm:$0xff]
        %v3789 = vld [vmem:[#allocation13 + $0x260] sm:$0xff]
        %v3790 = vld [vmem:[#allocation13 + $0x268] sm:$0xff]
        %v3791 = vld [vmem:[#allocation13 + $0x270] sm:$0xff]
        %v3792 = vld [vmem:[#allocation13 + $0x278] sm:$0xff]
        %v3793 = vld [vmem:[#allocation13 + $0x280] sm:$0xff]
        %v3794 = vld [vmem:[#allocation13 + $0x288] sm:$0xff]
        %v3795 = vld [vmem:[#allocation13 + $0x290] sm:$0xff]
        %v3796 = vld [vmem:[#allocation13 + $0x298] sm:$0xff]
        %v3797 = vld [vmem:[#allocation13 + $0x2a0] sm:$0xff]
        %v3798 = vld [vmem:[#allocation13 + $0x2a8] sm:$0xff]
        %v3799 = vld [vmem:[#allocation13 + $0x2b0] sm:$0xff]
        %v3800 = vld [vmem:[#allocation13 + $0x2b8] sm:$0xff]
        %v3801 = vld [vmem:[#allocation13 + $0x2c0] sm:$0xff]
        %v3802 = vld [vmem:[#allocation13 + $0x2c8] sm:$0xff]
        %v3803 = vld [vmem:[#allocation13 + $0x2d0] sm:$0xff]
        %v3804 = vld [vmem:[#allocation13 + $0x2d8] sm:$0xff]
        %v3805 = vld [vmem:[#allocation13 + $0x2e0] sm:$0xff]
        %v3806 = vld [vmem:[#allocation13 + $0x2e8] sm:$0xff]
        %v3807 = vld [vmem:[#allocation13 + $0x2f0] sm:$0xff]
        %v3808 = vld [vmem:[#allocation13 + $0x2f8] sm:$0xff]
        %v3809 = vld [vmem:[#allocation13 + $0x300] sm:$0xff]
        %v3810 = vld [vmem:[#allocation13 + $0x308] sm:$0xff]
        %v3811 = vld [vmem:[#allocation13 + $0x310] sm:$0xff]
        %v3812 = vld [vmem:[#allocation13 + $0x318] sm:$0xff]
        %v3813 = vld [vmem:[#allocation13 + $0x320] sm:$0xff]
        %v3814 = vld [vmem:[#allocation13 + $0x328] sm:$0xff]
        %v3815 = vld [vmem:[#allocation13 + $0x330] sm:$0xff]
        %v3816 = vld [vmem:[#allocation13 + $0x338] sm:$0xff]
        %v3817 = vld [vmem:[#allocation13 + $0x340] sm:$0xff]
        %v3818 = vld [vmem:[#allocation13 + $0x348] sm:$0xff]
        %v3819 = vld [vmem:[#allocation13 + $0x350] sm:$0xff]
        %v3820 = vld [vmem:[#allocation13 + $0x358] sm:$0xff]
        %v3821 = vld [vmem:[#allocation13 + $0x360] sm:$0xff]
        %v3822 = vld [vmem:[#allocation13 + $0x368] sm:$0xff]
        %v3823 = vld [vmem:[#allocation13 + $0x370] sm:$0xff]
        %v3824 = vld [vmem:[#allocation13 + $0x378] sm:$0xff]
        %v3825 = vld [vmem:[#allocation13 + $0x380] sm:$0xff]
        %v3826 = vld [vmem:[#allocation13 + $0x388] sm:$0xff]
        %v3827 = vld [vmem:[#allocation13 + $0x390] sm:$0xff]
        %v3828 = vld [vmem:[#allocation13 + $0x398] sm:$0xff]
        %v3829 = vld [vmem:[#allocation13 + $0x3a0] sm:$0xff]
        %v3830 = vld [vmem:[#allocation13 + $0x3a8] sm:$0xff]
        %v3831 = vld [vmem:[#allocation13 + $0x3b0] sm:$0xff]
        %v3832 = vld [vmem:[#allocation13 + $0x3b8] sm:$0xff]
        %v3833 = vld [vmem:[#allocation13 + $0x3c0] sm:$0xff]
        %v3834 = vld [vmem:[#allocation13 + $0x3c8] sm:$0xff]
        %v3835 = vld [vmem:[#allocation13 + $0x3d0] sm:$0xff]
        %v3836 = vld [vmem:[#allocation13 + $0x3d8] sm:$0xff]
        %v3837 = vld [vmem:[#allocation13 + $0x3e0] sm:$0xff]
        %v3838 = vld [vmem:[#allocation13 + $0x3e8] sm:$0xff]
        %v3839 = vld [vmem:[#allocation13 + $0x3f0] sm:$0xff]
        %v3840 = vld [vmem:[#allocation13 + $0x3f8] sm:$0xff]
        %v3841 = vld [vmem:[#allocation13 + $0x400] sm:$0xff]
        %v3842 = vld [vmem:[#allocation13 + $0x408] sm:$0xff]
        %v3843 = vld [vmem:[#allocation13 + $0x410] sm:$0xff]
        %v3844 = vld [vmem:[#allocation13 + $0x418] sm:$0xff]
        %v3845 = vld [vmem:[#allocation13 + $0x420] sm:$0xff]
        %v3846 = vld [vmem:[#allocation13 + $0x428] sm:$0xff]
        %v3847 = vld [vmem:[#allocation13 + $0x430] sm:$0xff]
        %v3848 = vld [vmem:[#allocation13 + $0x438] sm:$0xff]
        %v3849 = vld [vmem:[#allocation13 + $0x440] sm:$0xff]
        %v3850 = vld [vmem:[#allocation13 + $0x448] sm:$0xff]
        %v3851 = vld [vmem:[#allocation13 + $0x450] sm:$0xff]
        %v3852 = vld [vmem:[#allocation13 + $0x458] sm:$0xff]
        %v3853 = vld [vmem:[#allocation13 + $0x460] sm:$0xff]
        %v3854 = vld [vmem:[#allocation13 + $0x468] sm:$0xff]
        %v3855 = vld [vmem:[#allocation13 + $0x470] sm:$0xff]
        %v3856 = vld [vmem:[#allocation13 + $0x478] sm:$0xff]
        %v3857 = vld [vmem:[#allocation13 + $0x480] sm:$0xff]
        %v3858 = vld [vmem:[#allocation13 + $0x488] sm:$0xff]
        %v3859 = vld [vmem:[#allocation13 + $0x490] sm:$0xff]
        %v3860 = vld [vmem:[#allocation13 + $0x498] sm:$0xff]
        %v3861 = vld [vmem:[#allocation13 + $0x4a0] sm:$0xff]
        %v3862 = vld [vmem:[#allocation13 + $0x4a8] sm:$0xff]
        %v3863 = vld [vmem:[#allocation13 + $0x4b0] sm:$0xff]
        %v3864 = vld [vmem:[#allocation13 + $0x4b8] sm:$0xff]
        %v3865 = vld [vmem:[#allocation13 + $0x4c0] sm:$0xff]
        %v3866 = vld [vmem:[#allocation13 + $0x4c8] sm:$0xff]
        %v3867 = vld [vmem:[#allocation13 + $0x4d0] sm:$0xff]
        %v3868 = vld [vmem:[#allocation13 + $0x4d8] sm:$0xff]
        %v3869 = vld [vmem:[#allocation13 + $0x4e0] sm:$0xff]
        %v3870 = vld [vmem:[#allocation13 + $0x4e8] sm:$0xff]
        %v3871 = vld [vmem:[#allocation13 + $0x4f0] sm:$0xff]
        %v3872 = vld [vmem:[#allocation13 + $0x4f8] sm:$0xff]
        %v3873 = vpack.c.bf16 %v3703, %v3693
        %v3874 = vpack.c.bf16 %v3704, %v3694
        %v3875 = vpack.c.bf16 %v3705, %v3695
        %v3876 = vpack.c.bf16 %v3706, %v3696
        %v3877 = vpack.c.bf16 %v3707, %v3697
        %v3878 = vpack.c.bf16 %v3708, %v3698
        %v3879 = vpack.c.bf16 %v3709, %v3699
        %v3880 = vpack.c.bf16 %v3710, %v3700
        %v3881 = vpack.c.bf16 %v3711, %v3701
        %v3882 = vpack.c.bf16 %v3712, %v3702
        %v3883 = vlaneseq
        %v3884 = vshrl.u32 %v3883, 7
        %v3885 = vsub.s32 2, %v3884
        %v3886 = vrot.slane %v450, %v3885
        %v3887 = vlaneseq
        %v3888 = vshrl.u32 %v3887, 7
        %v3889 = vsub.s32 6, %v3888
        %v3890 = vrot.slane %v450, %v3889
        %v3893 = vlaneseq
        %v3894 = vshrl.u32 %v3893, 7
        %v3895 = vsub.s32 2, %v3894
        %v3896 = vrot.slane %v3886, %v3895
        %v3897 = vlaneseq
        %v3898 = vshrl.u32 %v3897, 7
        %v3899 = vsub.s32 2, %v3898
        %v3900 = vrot.slane %v3890, %v3899
        %v4061 = vunpack.c.l.b16 %v3713
        %v4062 = vunpack.c.h.b16 %v3713
        %v4063 = vunpack.c.l.b16 %v3714
        %v4064 = vunpack.c.h.b16 %v3714
        %v4065 = vunpack.c.l.b16 %v3715
        %v4066 = vunpack.c.h.b16 %v3715
        %v4067 = vunpack.c.l.b16 %v3716
        %v4068 = vunpack.c.h.b16 %v3716
        %v4069 = vunpack.c.l.b16 %v3717
        %v4070 = vunpack.c.h.b16 %v3717
        %v4071 = vunpack.c.l.b16 %v3718
        %v4072 = vunpack.c.h.b16 %v3718
        %v4073 = vunpack.c.l.b16 %v3719
        %v4074 = vunpack.c.h.b16 %v3719
        %v4075 = vunpack.c.l.b16 %v3720
        %v4076 = vunpack.c.h.b16 %v3720
        %v4077 = vunpack.c.l.b16 %v3721
        %v4078 = vunpack.c.h.b16 %v3721
        %v4079 = vunpack.c.l.b16 %v3722
        %v4080 = vunpack.c.h.b16 %v3722
        %v4081 = vunpack.c.l.b16 %v3723
        %v4082 = vunpack.c.h.b16 %v3723
        %v4083 = vunpack.c.l.b16 %v3724
        %v4084 = vunpack.c.h.b16 %v3724
        %v4085 = vunpack.c.l.b16 %v3725
        %v4086 = vunpack.c.h.b16 %v3725
        %v4087 = vunpack.c.l.b16 %v3726
        %v4088 = vunpack.c.h.b16 %v3726
        %v4089 = vunpack.c.l.b16 %v3727
        %v4090 = vunpack.c.h.b16 %v3727
        %v4091 = vunpack.c.l.b16 %v3728
        %v4092 = vunpack.c.h.b16 %v3728
        %v4093 = vunpack.c.l.b16 %v3729
        %v4094 = vunpack.c.h.b16 %v3729
        %v4095 = vunpack.c.l.b16 %v3730
        %v4096 = vunpack.c.h.b16 %v3730
        %v4097 = vunpack.c.l.b16 %v3731
        %v4098 = vunpack.c.h.b16 %v3731
        %v4099 = vunpack.c.l.b16 %v3732
        %v4100 = vunpack.c.h.b16 %v3732
        %v4101 = vunpack.c.l.b16 %v3733
        %v4102 = vunpack.c.h.b16 %v3733
        %v4103 = vunpack.c.l.b16 %v3734
        %v4104 = vunpack.c.h.b16 %v3734
        %v4105 = vunpack.c.l.b16 %v3735
        %v4106 = vunpack.c.h.b16 %v3735
        %v4107 = vunpack.c.l.b16 %v3736
        %v4108 = vunpack.c.h.b16 %v3736
        %v4109 = vunpack.c.l.b16 %v3737
        %v4110 = vunpack.c.h.b16 %v3737
        %v4111 = vunpack.c.l.b16 %v3738
        %v4112 = vunpack.c.h.b16 %v3738
        %v4113 = vunpack.c.l.b16 %v3739
        %v4114 = vunpack.c.h.b16 %v3739
        %v4115 = vunpack.c.l.b16 %v3740
        %v4116 = vunpack.c.h.b16 %v3740
        %v4117 = vunpack.c.l.b16 %v3741
        %v4118 = vunpack.c.h.b16 %v3741
        %v4119 = vunpack.c.l.b16 %v3742
        %v4120 = vunpack.c.h.b16 %v3742
        %v4121 = vunpack.c.l.b16 %v3743
        %v4122 = vunpack.c.h.b16 %v3743
        %v4123 = vunpack.c.l.b16 %v3744
        %v4124 = vunpack.c.h.b16 %v3744
        %v4125 = vunpack.c.l.b16 %v3745
        %v4126 = vunpack.c.h.b16 %v3745
        %v4127 = vunpack.c.l.b16 %v3746
        %v4128 = vunpack.c.h.b16 %v3746
        %v4129 = vunpack.c.l.b16 %v3747
        %v4130 = vunpack.c.h.b16 %v3747
        %v4131 = vunpack.c.l.b16 %v3748
        %v4132 = vunpack.c.h.b16 %v3748
        %v4133 = vunpack.c.l.b16 %v3749
        %v4134 = vunpack.c.h.b16 %v3749
        %v4135 = vunpack.c.l.b16 %v3750
        %v4136 = vunpack.c.h.b16 %v3750
        %v4137 = vunpack.c.l.b16 %v3751
        %v4138 = vunpack.c.h.b16 %v3751
        %v4139 = vunpack.c.l.b16 %v3752
        %v4140 = vunpack.c.h.b16 %v3752
        %v4141 = vunpack.c.l.b16 %v3753
        %v4142 = vunpack.c.h.b16 %v3753
        %v4143 = vunpack.c.l.b16 %v3754
        %v4144 = vunpack.c.h.b16 %v3754
        %v4145 = vunpack.c.l.b16 %v3755
        %v4146 = vunpack.c.h.b16 %v3755
        %v4147 = vunpack.c.l.b16 %v3756
        %v4148 = vunpack.c.h.b16 %v3756
        %v4149 = vunpack.c.l.b16 %v3757
        %v4150 = vunpack.c.h.b16 %v3757
        %v4151 = vunpack.c.l.b16 %v3758
        %v4152 = vunpack.c.h.b16 %v3758
        %v4153 = vunpack.c.l.b16 %v3759
        %v4154 = vunpack.c.h.b16 %v3759
        %v4155 = vunpack.c.l.b16 %v3760
        %v4156 = vunpack.c.h.b16 %v3760
        %v4157 = vunpack.c.l.b16 %v3761
        %v4158 = vunpack.c.h.b16 %v3761
        %v4159 = vunpack.c.l.b16 %v3762
        %v4160 = vunpack.c.h.b16 %v3762
        %v4161 = vunpack.c.l.b16 %v3763
        %v4162 = vunpack.c.h.b16 %v3763
        %v4163 = vunpack.c.l.b16 %v3764
        %v4164 = vunpack.c.h.b16 %v3764
        %v4165 = vunpack.c.l.b16 %v3765
        %v4166 = vunpack.c.h.b16 %v3765
        %v4167 = vunpack.c.l.b16 %v3766
        %v4168 = vunpack.c.h.b16 %v3766
        %v4169 = vunpack.c.l.b16 %v3767
        %v4170 = vunpack.c.h.b16 %v3767
        %v4171 = vunpack.c.l.b16 %v3768
        %v4172 = vunpack.c.h.b16 %v3768
        %v4173 = vunpack.c.l.b16 %v3769
        %v4174 = vunpack.c.h.b16 %v3769
        %v4175 = vunpack.c.l.b16 %v3770
        %v4176 = vunpack.c.h.b16 %v3770
        %v4177 = vunpack.c.l.b16 %v3771
        %v4178 = vunpack.c.h.b16 %v3771
        %v4179 = vunpack.c.l.b16 %v3772
        %v4180 = vunpack.c.h.b16 %v3772
        %v4181 = vunpack.c.l.b16 %v3773
        %v4182 = vunpack.c.h.b16 %v3773
        %v4183 = vunpack.c.l.b16 %v3774
        %v4184 = vunpack.c.h.b16 %v3774
        %v4185 = vunpack.c.l.b16 %v3775
        %v4186 = vunpack.c.h.b16 %v3775
        %v4187 = vunpack.c.l.b16 %v3776
        %v4188 = vunpack.c.h.b16 %v3776
        %v4189 = vunpack.c.l.b16 %v3777
        %v4190 = vunpack.c.h.b16 %v3777
        %v4191 = vunpack.c.l.b16 %v3778
        %v4192 = vunpack.c.h.b16 %v3778
        %v4193 = vunpack.c.l.b16 %v3779
        %v4194 = vunpack.c.h.b16 %v3779
        %v4195 = vunpack.c.l.b16 %v3780
        %v4196 = vunpack.c.h.b16 %v3780
        %v4197 = vunpack.c.l.b16 %v3781
        %v4198 = vunpack.c.h.b16 %v3781
        %v4199 = vunpack.c.l.b16 %v3782
        %v4200 = vunpack.c.h.b16 %v3782
        %v4201 = vunpack.c.l.b16 %v3783
        %v4202 = vunpack.c.h.b16 %v3783
        %v4203 = vunpack.c.l.b16 %v3784
        %v4204 = vunpack.c.h.b16 %v3784
        %v4205 = vunpack.c.l.b16 %v3785
        %v4206 = vunpack.c.h.b16 %v3785
        %v4207 = vunpack.c.l.b16 %v3786
        %v4208 = vunpack.c.h.b16 %v3786
        %v4209 = vunpack.c.l.b16 %v3787
        %v4210 = vunpack.c.h.b16 %v3787
        %v4211 = vunpack.c.l.b16 %v3788
        %v4212 = vunpack.c.h.b16 %v3788
        %v4213 = vunpack.c.l.b16 %v3789
        %v4214 = vunpack.c.h.b16 %v3789
        %v4215 = vunpack.c.l.b16 %v3790
        %v4216 = vunpack.c.h.b16 %v3790
        %v4217 = vunpack.c.l.b16 %v3791
        %v4218 = vunpack.c.h.b16 %v3791
        %v4219 = vunpack.c.l.b16 %v3792
        %v4220 = vunpack.c.h.b16 %v3792
        %v4221 = vunpack.c.l.b16 %v3793
        %v4222 = vunpack.c.h.b16 %v3793
        %v4223 = vunpack.c.l.b16 %v3794
        %v4224 = vunpack.c.h.b16 %v3794
        %v4225 = vunpack.c.l.b16 %v3795
        %v4226 = vunpack.c.h.b16 %v3795
        %v4227 = vunpack.c.l.b16 %v3796
        %v4228 = vunpack.c.h.b16 %v3796
        %v4229 = vunpack.c.l.b16 %v3797
        %v4230 = vunpack.c.h.b16 %v3797
        %v4231 = vunpack.c.l.b16 %v3798
        %v4232 = vunpack.c.h.b16 %v3798
        %v4233 = vunpack.c.l.b16 %v3799
        %v4234 = vunpack.c.h.b16 %v3799
        %v4235 = vunpack.c.l.b16 %v3800
        %v4236 = vunpack.c.h.b16 %v3800
        %v4237 = vunpack.c.l.b16 %v3801
        %v4238 = vunpack.c.h.b16 %v3801
        %v4239 = vunpack.c.l.b16 %v3802
        %v4240 = vunpack.c.h.b16 %v3802
        %v4241 = vunpack.c.l.b16 %v3803
        %v4242 = vunpack.c.h.b16 %v3803
        %v4243 = vunpack.c.l.b16 %v3804
        %v4244 = vunpack.c.h.b16 %v3804
        %v4245 = vunpack.c.l.b16 %v3805
        %v4246 = vunpack.c.h.b16 %v3805
        %v4247 = vunpack.c.l.b16 %v3806
        %v4248 = vunpack.c.h.b16 %v3806
        %v4249 = vunpack.c.l.b16 %v3807
        %v4250 = vunpack.c.h.b16 %v3807
        %v4251 = vunpack.c.l.b16 %v3808
        %v4252 = vunpack.c.h.b16 %v3808
        %v4253 = vunpack.c.l.b16 %v3809
        %v4254 = vunpack.c.h.b16 %v3809
        %v4255 = vunpack.c.l.b16 %v3810
        %v4256 = vunpack.c.h.b16 %v3810
        %v4257 = vunpack.c.l.b16 %v3811
        %v4258 = vunpack.c.h.b16 %v3811
        %v4259 = vunpack.c.l.b16 %v3812
        %v4260 = vunpack.c.h.b16 %v3812
        %v4261 = vunpack.c.l.b16 %v3813
        %v4262 = vunpack.c.h.b16 %v3813
        %v4263 = vunpack.c.l.b16 %v3814
        %v4264 = vunpack.c.h.b16 %v3814
        %v4265 = vunpack.c.l.b16 %v3815
        %v4266 = vunpack.c.h.b16 %v3815
        %v4267 = vunpack.c.l.b16 %v3816
        %v4268 = vunpack.c.h.b16 %v3816
        %v4269 = vunpack.c.l.b16 %v3817
        %v4270 = vunpack.c.h.b16 %v3817
        %v4271 = vunpack.c.l.b16 %v3818
        %v4272 = vunpack.c.h.b16 %v3818
        %v4273 = vunpack.c.l.b16 %v3819
        %v4274 = vunpack.c.h.b16 %v3819
        %v4275 = vunpack.c.l.b16 %v3820
        %v4276 = vunpack.c.h.b16 %v3820
        %v4277 = vunpack.c.l.b16 %v3821
        %v4278 = vunpack.c.h.b16 %v3821
        %v4279 = vunpack.c.l.b16 %v3822
        %v4280 = vunpack.c.h.b16 %v3822
        %v4281 = vunpack.c.l.b16 %v3823
        %v4282 = vunpack.c.h.b16 %v3823
        %v4283 = vunpack.c.l.b16 %v3824
        %v4284 = vunpack.c.h.b16 %v3824
        %v4285 = vunpack.c.l.b16 %v3825
        %v4286 = vunpack.c.h.b16 %v3825
        %v4287 = vunpack.c.l.b16 %v3826
        %v4288 = vunpack.c.h.b16 %v3826
        %v4289 = vunpack.c.l.b16 %v3827
        %v4290 = vunpack.c.h.b16 %v3827
        %v4291 = vunpack.c.l.b16 %v3828
        %v4292 = vunpack.c.h.b16 %v3828
        %v4293 = vunpack.c.l.b16 %v3829
        %v4294 = vunpack.c.h.b16 %v3829
        %v4295 = vunpack.c.l.b16 %v3830
        %v4296 = vunpack.c.h.b16 %v3830
        %v4297 = vunpack.c.l.b16 %v3831
        %v4298 = vunpack.c.h.b16 %v3831
        %v4299 = vunpack.c.l.b16 %v3832
        %v4300 = vunpack.c.h.b16 %v3832
        %v4301 = vunpack.c.l.b16 %v3833
        %v4302 = vunpack.c.h.b16 %v3833
        %v4303 = vunpack.c.l.b16 %v3834
        %v4304 = vunpack.c.h.b16 %v3834
        %v4305 = vunpack.c.l.b16 %v3835
        %v4306 = vunpack.c.h.b16 %v3835
        %v4307 = vunpack.c.l.b16 %v3836
        %v4308 = vunpack.c.h.b16 %v3836
        %v4309 = vunpack.c.l.b16 %v3837
        %v4310 = vunpack.c.h.b16 %v3837
        %v4311 = vunpack.c.l.b16 %v3838
        %v4312 = vunpack.c.h.b16 %v3838
        %v4313 = vunpack.c.l.b16 %v3839
        %v4314 = vunpack.c.h.b16 %v3839
        %v4315 = vunpack.c.l.b16 %v3840
        %v4316 = vunpack.c.h.b16 %v3840
        %v4317 = vunpack.c.l.b16 %v3841
        %v4318 = vunpack.c.h.b16 %v3841
        %v4319 = vunpack.c.l.b16 %v3842
        %v4320 = vunpack.c.h.b16 %v3842
        %v4321 = vunpack.c.l.b16 %v3843
        %v4322 = vunpack.c.h.b16 %v3843
        %v4323 = vunpack.c.l.b16 %v3844
        %v4324 = vunpack.c.h.b16 %v3844
        %v4325 = vunpack.c.l.b16 %v3845
        %v4326 = vunpack.c.h.b16 %v3845
        %v4327 = vunpack.c.l.b16 %v3846
        %v4328 = vunpack.c.h.b16 %v3846
        %v4329 = vunpack.c.l.b16 %v3847
        %v4330 = vunpack.c.h.b16 %v3847
        %v4331 = vunpack.c.l.b16 %v3848
        %v4332 = vunpack.c.h.b16 %v3848
        %v4333 = vunpack.c.l.b16 %v3849
        %v4334 = vunpack.c.h.b16 %v3849
        %v4335 = vunpack.c.l.b16 %v3850
        %v4336 = vunpack.c.h.b16 %v3850
        %v4337 = vunpack.c.l.b16 %v3851
        %v4338 = vunpack.c.h.b16 %v3851
        %v4339 = vunpack.c.l.b16 %v3852
        %v4340 = vunpack.c.h.b16 %v3852
        %v4341 = vunpack.c.l.b16 %v3853
        %v4342 = vunpack.c.h.b16 %v3853
        %v4343 = vunpack.c.l.b16 %v3854
        %v4344 = vunpack.c.h.b16 %v3854
        %v4345 = vunpack.c.l.b16 %v3855
        %v4346 = vunpack.c.h.b16 %v3855
        %v4347 = vunpack.c.l.b16 %v3856
        %v4348 = vunpack.c.h.b16 %v3856
        %v4349 = vunpack.c.l.b16 %v3857
        %v4350 = vunpack.c.h.b16 %v3857
        %v4351 = vunpack.c.l.b16 %v3858
        %v4352 = vunpack.c.h.b16 %v3858
        %v4353 = vunpack.c.l.b16 %v3859
        %v4354 = vunpack.c.h.b16 %v3859
        %v4355 = vunpack.c.l.b16 %v3860
        %v4356 = vunpack.c.h.b16 %v3860
        %v4357 = vunpack.c.l.b16 %v3861
        %v4358 = vunpack.c.h.b16 %v3861
        %v4359 = vunpack.c.l.b16 %v3862
        %v4360 = vunpack.c.h.b16 %v3862
        %v4361 = vunpack.c.l.b16 %v3863
        %v4362 = vunpack.c.h.b16 %v3863
        %v4363 = vunpack.c.l.b16 %v3864
        %v4364 = vunpack.c.h.b16 %v3864
        %v4365 = vunpack.c.l.b16 %v3865
        %v4366 = vunpack.c.h.b16 %v3865
        %v4367 = vunpack.c.l.b16 %v3866
        %v4368 = vunpack.c.h.b16 %v3866
        %v4369 = vunpack.c.l.b16 %v3867
        %v4370 = vunpack.c.h.b16 %v3867
        %v4371 = vunpack.c.l.b16 %v3868
        %v4372 = vunpack.c.h.b16 %v3868
        %v4373 = vunpack.c.l.b16 %v3869
        %v4374 = vunpack.c.h.b16 %v3869
        %v4375 = vunpack.c.l.b16 %v3870
        %v4376 = vunpack.c.h.b16 %v3870
        %v4377 = vunpack.c.l.b16 %v3871
        %v4378 = vunpack.c.h.b16 %v3871
        %v4379 = vunpack.c.l.b16 %v3872
        %v4380 = vunpack.c.h.b16 %v3872
        %v4381 = vpack.c.b16 %v4063, %v4061
        %v4382 = vpack.c.b16 %v4064, %v4062
        %v4383 = vpack.c.b16 %v4067, %v4065
        %v4384 = vpack.c.b16 %v4068, %v4066
        %v4385 = vpack.c.b16 %v4071, %v4069
        %v4386 = vpack.c.b16 %v4072, %v4070
        %v4387 = vpack.c.b16 %v4075, %v4073
        %v4388 = vpack.c.b16 %v4076, %v4074
        %v4389 = vpack.c.b16 %v4079, %v4077
        %v4390 = vpack.c.b16 %v4080, %v4078
        %v4391 = vpack.c.b16 %v4083, %v4081
        %v4392 = vpack.c.b16 %v4084, %v4082
        %v4393 = vpack.c.b16 %v4087, %v4085
        %v4394 = vpack.c.b16 %v4088, %v4086
        %v4395 = vpack.c.b16 %v4091, %v4089
        %v4396 = vpack.c.b16 %v4092, %v4090
        %v4397 = vpack.c.b16 %v4095, %v4093
        %v4398 = vpack.c.b16 %v4096, %v4094
        %v4399 = vpack.c.b16 %v4099, %v4097
        %v4400 = vpack.c.b16 %v4100, %v4098
        %v4401 = vpack.c.b16 %v4103, %v4101
        %v4402 = vpack.c.b16 %v4104, %v4102
        %v4403 = vpack.c.b16 %v4107, %v4105
        %v4404 = vpack.c.b16 %v4108, %v4106
        %v4405 = vpack.c.b16 %v4111, %v4109
        %v4406 = vpack.c.b16 %v4112, %v4110
        %v4407 = vpack.c.b16 %v4115, %v4113
        %v4408 = vpack.c.b16 %v4116, %v4114
        %v4409 = vpack.c.b16 %v4119, %v4117
        %v4410 = vpack.c.b16 %v4120, %v4118
        %v4411 = vpack.c.b16 %v4123, %v4121
        %v4412 = vpack.c.b16 %v4124, %v4122
        %v4413 = vpack.c.b16 %v4127, %v4125
        %v4414 = vpack.c.b16 %v4128, %v4126
        %v4415 = vpack.c.b16 %v4131, %v4129
        %v4416 = vpack.c.b16 %v4132, %v4130
        %v4417 = vpack.c.b16 %v4135, %v4133
        %v4418 = vpack.c.b16 %v4136, %v4134
        %v4419 = vpack.c.b16 %v4139, %v4137
        %v4420 = vpack.c.b16 %v4140, %v4138
        %v4421 = vpack.c.b16 %v4143, %v4141
        %v4422 = vpack.c.b16 %v4144, %v4142
        %v4423 = vpack.c.b16 %v4147, %v4145
        %v4424 = vpack.c.b16 %v4148, %v4146
        %v4425 = vpack.c.b16 %v4151, %v4149
        %v4426 = vpack.c.b16 %v4152, %v4150
        %v4427 = vpack.c.b16 %v4155, %v4153
        %v4428 = vpack.c.b16 %v4156, %v4154
        %v4429 = vpack.c.b16 %v4159, %v4157
        %v4430 = vpack.c.b16 %v4160, %v4158
        %v4431 = vpack.c.b16 %v4163, %v4161
        %v4432 = vpack.c.b16 %v4164, %v4162
        %v4433 = vpack.c.b16 %v4167, %v4165
        %v4434 = vpack.c.b16 %v4168, %v4166
        %v4435 = vpack.c.b16 %v4171, %v4169
        %v4436 = vpack.c.b16 %v4172, %v4170
        %v4437 = vpack.c.b16 %v4175, %v4173
        %v4438 = vpack.c.b16 %v4176, %v4174
        %v4439 = vpack.c.b16 %v4179, %v4177
        %v4440 = vpack.c.b16 %v4180, %v4178
        %v4441 = vpack.c.b16 %v4183, %v4181
        %v4442 = vpack.c.b16 %v4184, %v4182
        %v4443 = vpack.c.b16 %v4187, %v4185
        %v4444 = vpack.c.b16 %v4188, %v4186
        %v4445 = vpack.c.b16 %v4191, %v4189
        %v4446 = vpack.c.b16 %v4192, %v4190
        %v4447 = vpack.c.b16 %v4195, %v4193
        %v4448 = vpack.c.b16 %v4196, %v4194
        %v4449 = vpack.c.b16 %v4199, %v4197
        %v4450 = vpack.c.b16 %v4200, %v4198
        %v4451 = vpack.c.b16 %v4203, %v4201
        %v4452 = vpack.c.b16 %v4204, %v4202
        %v4453 = vpack.c.b16 %v4207, %v4205
        %v4454 = vpack.c.b16 %v4208, %v4206
        %v4455 = vpack.c.b16 %v4211, %v4209
        %v4456 = vpack.c.b16 %v4212, %v4210
        %v4457 = vpack.c.b16 %v4215, %v4213
        %v4458 = vpack.c.b16 %v4216, %v4214
        %v4459 = vpack.c.b16 %v4219, %v4217
        %v4460 = vpack.c.b16 %v4220, %v4218
        %v4461 = vpack.c.b16 %v4223, %v4221
        %v4462 = vpack.c.b16 %v4224, %v4222
        %v4463 = vpack.c.b16 %v4227, %v4225
        %v4464 = vpack.c.b16 %v4228, %v4226
        %v4465 = vpack.c.b16 %v4231, %v4229
        %v4466 = vpack.c.b16 %v4232, %v4230
        %v4467 = vpack.c.b16 %v4235, %v4233
        %v4468 = vpack.c.b16 %v4236, %v4234
        %v4469 = vpack.c.b16 %v4239, %v4237
        %v4470 = vpack.c.b16 %v4240, %v4238
        %v4471 = vpack.c.b16 %v4243, %v4241
        %v4472 = vpack.c.b16 %v4244, %v4242
        %v4473 = vpack.c.b16 %v4247, %v4245
        %v4474 = vpack.c.b16 %v4248, %v4246
        %v4475 = vpack.c.b16 %v4251, %v4249
        %v4476 = vpack.c.b16 %v4252, %v4250
        %v4477 = vpack.c.b16 %v4255, %v4253
        %v4478 = vpack.c.b16 %v4256, %v4254
        %v4479 = vpack.c.b16 %v4259, %v4257
        %v4480 = vpack.c.b16 %v4260, %v4258
        %v4481 = vpack.c.b16 %v4263, %v4261
        %v4482 = vpack.c.b16 %v4264, %v4262
        %v4483 = vpack.c.b16 %v4267, %v4265
        %v4484 = vpack.c.b16 %v4268, %v4266
        %v4485 = vpack.c.b16 %v4271, %v4269
        %v4486 = vpack.c.b16 %v4272, %v4270
        %v4487 = vpack.c.b16 %v4275, %v4273
        %v4488 = vpack.c.b16 %v4276, %v4274
        %v4489 = vpack.c.b16 %v4279, %v4277
        %v4490 = vpack.c.b16 %v4280, %v4278
        %v4491 = vpack.c.b16 %v4283, %v4281
        %v4492 = vpack.c.b16 %v4284, %v4282
        %v4493 = vpack.c.b16 %v4287, %v4285
        %v4494 = vpack.c.b16 %v4288, %v4286
        %v4495 = vpack.c.b16 %v4291, %v4289
        %v4496 = vpack.c.b16 %v4292, %v4290
        %v4497 = vpack.c.b16 %v4295, %v4293
        %v4498 = vpack.c.b16 %v4296, %v4294
        %v4499 = vpack.c.b16 %v4299, %v4297
        %v4500 = vpack.c.b16 %v4300, %v4298
        %v4501 = vpack.c.b16 %v4303, %v4301
        %v4502 = vpack.c.b16 %v4304, %v4302
        %v4503 = vpack.c.b16 %v4307, %v4305
        %v4504 = vpack.c.b16 %v4308, %v4306
        %v4505 = vpack.c.b16 %v4311, %v4309
        %v4506 = vpack.c.b16 %v4312, %v4310
        %v4507 = vpack.c.b16 %v4315, %v4313
        %v4508 = vpack.c.b16 %v4316, %v4314
        %v4509 = vpack.c.b16 %v4319, %v4317
        %v4510 = vpack.c.b16 %v4320, %v4318
        %v4511 = vpack.c.b16 %v4323, %v4321
        %v4512 = vpack.c.b16 %v4324, %v4322
        %v4513 = vpack.c.b16 %v4327, %v4325
        %v4514 = vpack.c.b16 %v4328, %v4326
        %v4515 = vpack.c.b16 %v4331, %v4329
        %v4516 = vpack.c.b16 %v4332, %v4330
        %v4517 = vpack.c.b16 %v4335, %v4333
        %v4518 = vpack.c.b16 %v4336, %v4334
        %v4519 = vpack.c.b16 %v4339, %v4337
        %v4520 = vpack.c.b16 %v4340, %v4338
        %v4521 = vpack.c.b16 %v4343, %v4341
        %v4522 = vpack.c.b16 %v4344, %v4342
        %v4523 = vpack.c.b16 %v4347, %v4345
        %v4524 = vpack.c.b16 %v4348, %v4346
        %v4525 = vpack.c.b16 %v4351, %v4349
        %v4526 = vpack.c.b16 %v4352, %v4350
        %v4527 = vpack.c.b16 %v4355, %v4353
        %v4528 = vpack.c.b16 %v4356, %v4354
        %v4529 = vpack.c.b16 %v4359, %v4357
        %v4530 = vpack.c.b16 %v4360, %v4358
        %v4531 = vpack.c.b16 %v4363, %v4361
        %v4532 = vpack.c.b16 %v4364, %v4362
        %v4533 = vpack.c.b16 %v4367, %v4365
        %v4534 = vpack.c.b16 %v4368, %v4366
        %v4535 = vpack.c.b16 %v4371, %v4369
        %v4536 = vpack.c.b16 %v4372, %v4370
        %v4537 = vpack.c.b16 %v4375, %v4373
        %v4538 = vpack.c.b16 %v4376, %v4374
        %v4539 = vpack.c.b16 %v4379, %v4377
        %v4540 = vpack.c.b16 %v4380, %v4378
        %4701 = vmatprep.subr.bf16.mxu0 %v4382
        %4702 = vmatpush1.bf16.msra.mxu0 %v4381
        %4703 = vmatprep.subr.bf16.mxu0 %v4384
        %4704 = vmatpush1.bf16.msra.mxu0 %v4383
        %4705 = vmatprep.subr.bf16.mxu0 %v4386
        %4706 = vmatpush1.bf16.msra.mxu0 %v4385
        %4707 = vmatprep.subr.bf16.mxu0 %v4388
        %4708 = vmatpush1.bf16.msra.mxu0 %v4387
        %4709 = vmatprep.subr.bf16.mxu0 %v4390
        %4710 = vmatpush1.bf16.msra.mxu0 %v4389
        %4711 = vmatprep.subr.bf16.mxu0 %v4392
        %4712 = vmatpush1.bf16.msra.mxu0 %v4391
        %4713 = vmatprep.subr.bf16.mxu0 %v4394
        %4714 = vmatpush1.bf16.msra.mxu0 %v4393
        %4715 = vmatprep.subr.bf16.mxu0 %v4396
        %4716 = vmatpush1.bf16.msra.mxu0 %v4395
        %4717 = vmatprep.subr.bf16.mxu0 %v4398
        %4718 = vmatpush1.bf16.msra.mxu0 %v4397
        %4719 = vmatprep.subr.bf16.mxu0 %v4400
        %4720 = vmatpush1.bf16.msra.mxu0 %v4399
        %4721 = vmatprep.subr.bf16.mxu0 %v4402
        %4722 = vmatpush1.bf16.msra.mxu0 %v4401
        %4723 = vmatprep.subr.bf16.mxu0 %v4404
        %4724 = vmatpush1.bf16.msra.mxu0 %v4403
        %4725 = vmatprep.subr.bf16.mxu0 %v4406
        %4726 = vmatpush1.bf16.msra.mxu0 %v4405
        %4727 = vmatprep.subr.bf16.mxu0 %v4408
        %4728 = vmatpush1.bf16.msra.mxu0 %v4407
        %4729 = vmatprep.subr.bf16.mxu0 %v4410
        %4730 = vmatpush1.bf16.msra.mxu0 %v4409
        %4731 = vmatprep.subr.bf16.mxu0 %v4412
        %4732 = vmatpush1.bf16.msra.mxu0 %v4411
        %4733 = vmatprep.mubr.bf16.mxu0 %v3874
        %4734 = vmatmul.mubr.bf16.gmra.mrb[0].mxu0 %v3873
        %v4735 = vpop.f32.mrb[0].mxu0
        %v4736 = vadd.f32 %v3896, %v4735
        %v4737 = vpop.f32.mrb[0].mxu0
        %v4738 = vadd.f32 %v3900, %v4737
        %v4739 = vpop.f32.mrb[0].mxu0
        %v4740 = vadd.f32 %v3896, %v4739
        %v4741 = vpop.f32.mrb[0].mxu0
        %v4742 = vadd.f32 %v3900, %v4741
        %4743 = vdwg.mxu0
        %4744 = vmatprep.subr.bf16.mxu0 %v4414
        %4745 = vmatpush1.bf16.msra.mxu0 %v4413
        %4746 = vmatprep.subr.bf16.mxu0 %v4416
        %4747 = vmatpush1.bf16.msra.mxu0 %v4415
        %4748 = vmatprep.subr.bf16.mxu0 %v4418
        %4749 = vmatpush1.bf16.msra.mxu0 %v4417
        %4750 = vmatprep.subr.bf16.mxu0 %v4420
        %4751 = vmatpush1.bf16.msra.mxu0 %v4419
        %4752 = vmatprep.subr.bf16.mxu0 %v4422
        %4753 = vmatpush1.bf16.msra.mxu0 %v4421
        %4754 = vmatprep.subr.bf16.mxu0 %v4424
        %4755 = vmatpush1.bf16.msra.mxu0 %v4423
        %4756 = vmatprep.subr.bf16.mxu0 %v4426
        %4757 = vmatpush1.bf16.msra.mxu0 %v4425
        %4758 = vmatprep.subr.bf16.mxu0 %v4428
        %4759 = vmatpush1.bf16.msra.mxu0 %v4427
        %4760 = vmatprep.subr.bf16.mxu0 %v4430
        %4761 = vmatpush1.bf16.msra.mxu0 %v4429
        %4762 = vmatprep.subr.bf16.mxu0 %v4432
        %4763 = vmatpush1.bf16.msra.mxu0 %v4431
        %4764 = vmatprep.subr.bf16.mxu0 %v4434
        %4765 = vmatpush1.bf16.msra.mxu0 %v4433
        %4766 = vmatprep.subr.bf16.mxu0 %v4436
        %4767 = vmatpush1.bf16.msra.mxu0 %v4435
        %4768 = vmatprep.subr.bf16.mxu0 %v4438
        %4769 = vmatpush1.bf16.msra.mxu0 %v4437
        %4770 = vmatprep.subr.bf16.mxu0 %v4440
        %4771 = vmatpush1.bf16.msra.mxu0 %v4439
        %4772 = vmatprep.subr.bf16.mxu0 %v4442
        %4773 = vmatpush1.bf16.msra.mxu0 %v4441
        %4774 = vmatprep.subr.bf16.mxu0 %v4444
        %4775 = vmatpush1.bf16.msra.mxu0 %v4443
        %4776 = vmatprep.mubr.bf16.mxu0 %v3876
        %4777 = vmatmul.mubr.bf16.gmra.mrb[0].mxu0 %v3875
        %v4778 = vpop.f32.mrb[0].mxu0
        %v4779 = vadd.f32 %v4736, %v4778
        %v4780 = vpop.f32.mrb[0].mxu0
        %v4781 = vadd.f32 %v4738, %v4780
        %v4782 = vpop.f32.mrb[0].mxu0
        %v4783 = vadd.f32 %v4740, %v4782
        %v4784 = vpop.f32.mrb[0].mxu0
        %v4785 = vadd.f32 %v4742, %v4784
        %4786 = vdwg.mxu0
        %4787 = vmatprep.subr.bf16.mxu0 %v4446
        %4788 = vmatpush1.bf16.msra.mxu0 %v4445
        %4789 = vmatprep.subr.bf16.mxu0 %v4448
        %4790 = vmatpush1.bf16.msra.mxu0 %v4447
        %4791 = vmatprep.subr.bf16.mxu0 %v4450
        %4792 = vmatpush1.bf16.msra.mxu0 %v4449
        %4793 = vmatprep.subr.bf16.mxu0 %v4452
        %4794 = vmatpush1.bf16.msra.mxu0 %v4451
        %4795 = vmatprep.subr.bf16.mxu0 %v4454
        %4796 = vmatpush1.bf16.msra.mxu0 %v4453
        %4797 = vmatprep.subr.bf16.mxu0 %v4456
        %4798 = vmatpush1.bf16.msra.mxu0 %v4455
        %4799 = vmatprep.subr.bf16.mxu0 %v4458
        %4800 = vmatpush1.bf16.msra.mxu0 %v4457
        %4801 = vmatprep.subr.bf16.mxu0 %v4460
        %4802 = vmatpush1.bf16.msra.mxu0 %v4459
        %4803 = vmatprep.subr.bf16.mxu0 %v4462
        %4804 = vmatpush1.bf16.msra.mxu0 %v4461
        %4805 = vmatprep.subr.bf16.mxu0 %v4464
        %4806 = vmatpush1.bf16.msra.mxu0 %v4463
        %4807 = vmatprep.subr.bf16.mxu0 %v4466
        %4808 = vmatpush1.bf16.msra.mxu0 %v4465
        %4809 = vmatprep.subr.bf16.mxu0 %v4468
        %4810 = vmatpush1.bf16.msra.mxu0 %v4467
        %4811 = vmatprep.subr.bf16.mxu0 %v4470
        %4812 = vmatpush1.bf16.msra.mxu0 %v4469
        %4813 = vmatprep.subr.bf16.mxu0 %v4472
        %4814 = vmatpush1.bf16.msra.mxu0 %v4471
        %4815 = vmatprep.subr.bf16.mxu0 %v4474
        %4816 = vmatpush1.bf16.msra.mxu0 %v4473
        %4817 = vmatprep.subr.bf16.mxu0 %v4476
        %4818 = vmatpush1.bf16.msra.mxu0 %v4475
        %4819 = vmatprep.mubr.bf16.mxu0 %v3878
        %4820 = vmatmul.mubr.bf16.gmra.mrb[0].mxu0 %v3877
        %v4821 = vpop.f32.mrb[0].mxu0
        %v4822 = vadd.f32 %v4779, %v4821
        %v4823 = vpop.f32.mrb[0].mxu0
        %v4824 = vadd.f32 %v4781, %v4823
        %v4825 = vpop.f32.mrb[0].mxu0
        %v4826 = vadd.f32 %v4783, %v4825
        %v4827 = vpop.f32.mrb[0].mxu0
        %v4828 = vadd.f32 %v4785, %v4827
        %4829 = vdwg.mxu0
        %4830 = vmatprep.subr.bf16.mxu0 %v4478
        %4831 = vmatpush1.bf16.msra.mxu0 %v4477
        %4832 = vmatprep.subr.bf16.mxu0 %v4480
        %4833 = vmatpush1.bf16.msra.mxu0 %v4479
        %4834 = vmatprep.subr.bf16.mxu0 %v4482
        %4835 = vmatpush1.bf16.msra.mxu0 %v4481
        %4836 = vmatprep.subr.bf16.mxu0 %v4484
        %4837 = vmatpush1.bf16.msra.mxu0 %v4483
        %4838 = vmatprep.subr.bf16.mxu0 %v4486
        %4839 = vmatpush1.bf16.msra.mxu0 %v4485
        %4840 = vmatprep.subr.bf16.mxu0 %v4488
        %4841 = vmatpush1.bf16.msra.mxu0 %v4487
        %4842 = vmatprep.subr.bf16.mxu0 %v4490
        %4843 = vmatpush1.bf16.msra.mxu0 %v4489
        %4844 = vmatprep.subr.bf16.mxu0 %v4492
        %4845 = vmatpush1.bf16.msra.mxu0 %v4491
        %4846 = vmatprep.subr.bf16.mxu0 %v4494
        %4847 = vmatpush1.bf16.msra.mxu0 %v4493
        %4848 = vmatprep.subr.bf16.mxu0 %v4496
        %4849 = vmatpush1.bf16.msra.mxu0 %v4495
        %4850 = vmatprep.subr.bf16.mxu0 %v4498
        %4851 = vmatpush1.bf16.msra.mxu0 %v4497
        %4852 = vmatprep.subr.bf16.mxu0 %v4500
        %4853 = vmatpush1.bf16.msra.mxu0 %v4499
        %4854 = vmatprep.subr.bf16.mxu0 %v4502
        %4855 = vmatpush1.bf16.msra.mxu0 %v4501
        %4856 = vmatprep.subr.bf16.mxu0 %v4504
        %4857 = vmatpush1.bf16.msra.mxu0 %v4503
        %4858 = vmatprep.subr.bf16.mxu0 %v4506
        %4859 = vmatpush1.bf16.msra.mxu0 %v4505
        %4860 = vmatprep.subr.bf16.mxu0 %v4508
        %4861 = vmatpush1.bf16.msra.mxu0 %v4507
        %4862 = vmatprep.mubr.bf16.mxu0 %v3880
        %4863 = vmatmul.mubr.bf16.gmra.mrb[0].mxu0 %v3879
        %v4864 = vpop.f32.mrb[0].mxu0
        %v4865 = vadd.f32 %v4822, %v4864
        %v4866 = vpop.f32.mrb[0].mxu0
        %v4867 = vadd.f32 %v4824, %v4866
        %v4868 = vpop.f32.mrb[0].mxu0
        %v4869 = vadd.f32 %v4826, %v4868
        %v4870 = vpop.f32.mrb[0].mxu0
        %v4871 = vadd.f32 %v4828, %v4870
        %4872 = vdwg.mxu0
        %4873 = vmatprep.subr.bf16.mxu0 %v4510
        %4874 = vmatpush1.bf16.msra.mxu0 %v4509
        %4875 = vmatprep.subr.bf16.mxu0 %v4512
        %4876 = vmatpush1.bf16.msra.mxu0 %v4511
        %4877 = vmatprep.subr.bf16.mxu0 %v4514
        %4878 = vmatpush1.bf16.msra.mxu0 %v4513
        %4879 = vmatprep.subr.bf16.mxu0 %v4516
        %4880 = vmatpush1.bf16.msra.mxu0 %v4515
        %4881 = vmatprep.subr.bf16.mxu0 %v4518
        %4882 = vmatpush1.bf16.msra.mxu0 %v4517
        %4883 = vmatprep.subr.bf16.mxu0 %v4520
        %4884 = vmatpush1.bf16.msra.mxu0 %v4519
        %4885 = vmatprep.subr.bf16.mxu0 %v4522
        %4886 = vmatpush1.bf16.msra.mxu0 %v4521
        %4887 = vmatprep.subr.bf16.mxu0 %v4524
        %4888 = vmatpush1.bf16.msra.mxu0 %v4523
        %4889 = vmatprep.subr.bf16.mxu0 %v4526
        %4890 = vmatpush1.bf16.msra.mxu0 %v4525
        %4891 = vmatprep.subr.bf16.mxu0 %v4528
        %4892 = vmatpush1.bf16.msra.mxu0 %v4527
        %4893 = vmatprep.subr.bf16.mxu0 %v4530
        %4894 = vmatpush1.bf16.msra.mxu0 %v4529
        %4895 = vmatprep.subr.bf16.mxu0 %v4532
        %4896 = vmatpush1.bf16.msra.mxu0 %v4531
        %4897 = vmatprep.subr.bf16.mxu0 %v4534
        %4898 = vmatpush1.bf16.msra.mxu0 %v4533
        %4899 = vmatprep.subr.bf16.mxu0 %v4536
        %4900 = vmatpush1.bf16.msra.mxu0 %v4535
        %4901 = vmatprep.subr.bf16.mxu0 %v4538
        %4902 = vmatpush1.bf16.msra.mxu0 %v4537
        %4903 = vmatprep.subr.bf16.mxu0 %v4540
        %4904 = vmatpush1.bf16.msra.mxu0 %v4539
        %4905 = vmatprep.mubr.bf16.mxu0 %v3882
        %4906 = vmatmul.mubr.bf16.gmra.mrb[0].mxu0 %v3881
        %v4907 = vpop.f32.mrb[0].mxu0
        %v4908 = vadd.f32 %v4865, %v4907
        %v4909 = vpop.f32.mrb[0].mxu0
        %v4910 = vadd.f32 %v4867, %v4909
        %v4911 = vpop.f32.mrb[0].mxu0
        %v4912 = vadd.f32 %v4869, %v4911
        %v4913 = vpop.f32.mrb[0].mxu0
        %v4914 = vadd.f32 %v4871, %v4913
        %4915 = vdwg.mxu0
        %4916 = vst [vmem:[%s438] sm:$0xff] %v4908
        %4917 = vst [vmem:[%s438 + $0x8] sm:$0xff] %v4910
        %4918 = vst [vmem:[%s438 + $0x10] sm:$0xff] %v4912
        %4919 = vst [vmem:[%s438 + $0x18] sm:$0xff] %v4914
        %s4920 = sand.u32 %s214, 1
        %s4921 = scalar_lea.sflag [#allocation4], %s4920
        %s4922 = sand.u32 %s214, 1
        %s4923 = smul.addr %s4922, 32
        %s4924 = scalar_lea.vmem [#allocation14], %s4923
        %s4925 = sand.u32 %s240, 1
        %s4926 = scalar_lea.sflag [#allocation16], %s4925
        %s4927 = sand.u32 %s240, 1
        %s4928 = smul.addr %s4927, 16
        %s4929 = scalar_lea.vmem [#allocation15], %s4928
        // Predicated region
        $region81: #{ae_forward_batched.1} parent=51 // pred_check
          %p4930 = pneg %p224
        $region82: #{ae_forward_batched.1} parent=51 // pred_check_branch
          %4932 = sbr.rel (%p4930) target = $region84
        $region83: #{ae_forward_batched.1} parent=51 // pred_region
          %s4933 = smul.u32 2, %s33
          %s4935 = ssub.s32 512, 512
          %4936 = vsyncadd %s4921, %s4935
          %s4937 = smul.addr %s4933, 2
          %s4938 = smul.addr %s4937, 128
          %s4939 = scalar_lea.hbm %s8, %s4938
          %s4940 = sshll.u32 %s4924, 4
          %s4941 = int_to_ptr.vmem [resolvable:$true] %s4940
          %4946 = dma.vmem_to_hbm [thread:$0]  %s4941, 512, %s4939, %s4921, 256, 256, 16
        $region84: #{ae_forward_batched.1} parent=51 // pred_fallthru
          _
        // Predicated region
        $region85: #{ae_forward_batched.1} parent=51 // pred_check
          %p4947 = pneg %p250
        $region86: #{ae_forward_batched.1} parent=51 // pred_check_branch
          %4949 = sbr.rel (%p4947) target = $region88
        $region87: #{ae_forward_batched.1} parent=51 // pred_region
          %s4950 = smul.u32 2, %s33
          %s4952 = ssub.s32 256, 256
          %4953 = vsyncadd %s4926, %s4952
          %s4954 = smul.addr %s4950, 128
          %s4955 = scalar_lea.hbm %s9, %s4954
          %s4956 = sshll.u32 %s4929, 4
          %s4957 = int_to_ptr.vmem [resolvable:$true] %s4956
          %4962 = dma.vmem_to_hbm [thread:$0]  %s4957, 256, %s4955, %s4926, 128, 128, 8
        $region88: #{ae_forward_batched.1} parent=51 // pred_fallthru
          _
      $region52: #{ae_forward_batched.1} parent=5 // pred_fallthru
        _
      %p4963 = scmp.le.s32.totalorder 2, %s28
      // Predicated region
      $region89: #{ae_forward_batched.1} parent=5 // pred_check
        %p4964 = pneg %p4963
      $region90: #{ae_forward_batched.1} parent=5 // pred_check_branch
        %4966 = sbr.rel (%p4964) target = $region92
      $region91: #{ae_forward_batched.1} parent=5 // pred_region
        %s4967 = ssub.s32 %s28, 2
        // Predicated region
        $region93: #{ae_forward_batched.1} parent=91 // pred_check
          %p4968 = pneg %p230
        $region94: #{ae_forward_batched.1} parent=91 // pred_check_branch
          %4970 = sbr.rel (%p4968) target = $region96
        $region95: #{ae_forward_batched.1} parent=91 // pred_region
          %s4971 = sand.u32 %s215, 1
          %s4972 = scalar_lea.sflag [#allocation4], %s4971
          %s4973 = sand.u32 %s215, 1
          %s4974 = smul.addr %s4973, 32
          %s4975 = scalar_lea.vmem [#allocation14], %s4974
          %4976 = dma.done %s4972, 512
        $region96: #{ae_forward_batched.1} parent=91 // pred_fallthru
          _
        // Predicated region
        $region97: #{ae_forward_batched.1} parent=91 // pred_check
          %p4977 = pneg %p256
        $region98: #{ae_forward_batched.1} parent=91 // pred_check_branch
          %4979 = sbr.rel (%p4977) target = $region100
        $region99: #{ae_forward_batched.1} parent=91 // pred_region
          %s4980 = sand.u32 %s241, 1
          %s4981 = scalar_lea.sflag [#allocation16], %s4980
          %s4982 = sand.u32 %s241, 1
          %s4983 = smul.addr %s4982, 16
          %s4984 = scalar_lea.vmem [#allocation15], %s4983
          %4985 = dma.done %s4981, 256
        $region100: #{ae_forward_batched.1} parent=91 // pred_fallthru
          _
      $region92: #{ae_forward_batched.1} parent=5 // pred_fallthru
        _
    $region6: #{ae_forward_batched.1} parent=1 // loop_footer
      %s32 = sadd.s32 1, %s28
    $region7: #{ae_forward_batched.1} parent=1 // loop_footer_branch
      %27 = sbr.rel target = $region3
    $region8: #{ae_forward_batched.1} parent=1 // loop_exit
      _
    %4986 = vsyncpa [#allocation3], 1
    %s4987 = scalar_lea.sflag [#allocation3], 1
    %4988 = vsyncpa %s4987, 1
    %4989 = vsyncpa [#allocation6], 1
    %4990 = vsyncpa [#allocation9], 1
    %4991 = vsyncpa [#allocation12], 1
    %4992 = vsyncpa [#allocation4], 1
    %s4993 = scalar_lea.sflag [#allocation4], 1
    %4994 = vsyncpa %s4993, 1
    %4995 = vsyncpa [#allocation16], 1
    %s4996 = scalar_lea.sflag [#allocation16], 1
    %4997 = vsyncpa %s4996, 1

</llo_original>
